<compile_context>
chip_gen: v6e
topology: v6e:2x2x1
jax: 0.10.0
libtpu: 0.0.40
codegen_flags: <defaults>
</compile_context>

<pallas_src>
import functools
import math

import jax
import jax.numpy as jnp
from jax.experimental import pallas as pl
from jax.experimental.pallas import tpu as pltpu

_ATTN_EPS = 1e-6   # AttentionLayer._epsilon
_LN_EPS = 1e-5     # torch.nn.LayerNorm default eps


def _transformer_layer_kernel(
    x_q_ref,    # (1, C, TQ)  query slice of x (original (N, C, L) layout)
    x_k_ref,    # (1, C, L)   full keys for this batch element
    wt_ref,     # (C, D)
    wxT_ref,    # (D, C)      Wx pre-transposed
    bh_ref,     # (1, D)
    w0T_ref,    # (F, C)      FF lin0 weight, (out, in)
    bf0_ref,    # (F, 1)
    w1T_ref,    # (C, F)      FF lin1 weight, (out, in)
    cpar_ref,   # (C, 5)      cols: ln0 gamma, ln0 beta, ln1 gamma, ln1 beta, lin1 bias
    wa_ref,     # SMEM (1, D)
    ba_ref,     # SMEM (1, 1)
    out_ref,    # (1, C, TQ)
    attn_ref,   # (1, TQ, L)
    *, attn_width, mxu_dtype,
):
    f32 = jnp.float32
    x_q = x_q_ref[0].astype(f32)              # (C, TQ)   channels on sublanes
    x_k = x_k_ref[0].astype(f32)              # (C, L)
    TQ = x_q.shape[1]
    L = x_k.shape[1]
    D = wt_ref.shape[1]

    def mx(v):  # MXU input dtype (bf16 on v6e/v7x, f32 for exact mode)
        return v.astype(mxu_dtype)

    # ---- single-head additive attention -------------------------------------
    # q in (TQ, D): queries on sublanes so the (TQ, L) score slabs keep the
    # long key axis on lanes.
    q = jnp.dot(mx(x_q.T), mx(wt_ref[...]), preferred_element_type=f32)    # (TQ, D)
    qb = q + bh_ref[...].astype(f32)                                       # (TQ, D)
    kT = jnp.dot(mx(wxT_ref[...]), mx(x_k), preferred_element_type=f32)    # (D, L)

    # Score accumulation over the small d_model dim on lane-dense (TQ, L)
    # slabs -- no (TQ, L, D) tanh cube.  qb / kT / mask are hoisted out.
    scores = jnp.zeros((TQ, L), dtype=f32)
    for d in range(D):
        scores = scores + wa_ref[0, d] * jnp.tanh(qb[:, d:d + 1] + kT[d:d + 1, :])
    scores = scores + ba_ref[0, 0]

    e = jnp.exp(scores - jnp.max(scores, axis=-1, keepdims=True))
    if attn_width is not None:
        row = (jax.lax.broadcasted_iota(jnp.int32, (TQ, L), 0)
               + pl.program_id(1) * TQ)
        col = jax.lax.broadcasted_iota(jnp.int32, (TQ, L), 1)
        diff = col - row
        mask = jnp.logical_and(diff <= attn_width // 2 - 1,
                               diff >= (-attn_width) // 2)
        e = jnp.where(mask, e, 0.0)
    s = jnp.sum(e, axis=-1, keepdims=True)
    a = e / (s + _ATTN_EPS)                                                # (TQ, L)
    attn_ref[0] = a.astype(attn_ref.dtype)

    # v = a @ x, kept channels-on-sublanes: transpose the small (C, *) tiles
    # rather than the big (TQ, L) attention matrix.
    vT = jnp.dot(mx(a), mx(x_k.T), preferred_element_type=f32)             # (TQ, C)
    v = vT.T                                                               # (C, TQ)

    cpar = cpar_ref[...].astype(f32)                                       # (C, 5)
    g0, b0 = cpar[:, 0:1], cpar[:, 1:2]
    g1, b1 = cpar[:, 2:3], cpar[:, 3:4]
    bf1 = cpar[:, 4:5]

    # ---- residual + layernorm0 (channel reduction = sublane reduction) ------
    x2 = v + x_q
    mu0 = jnp.mean(x2, axis=0, keepdims=True)
    var0 = jnp.mean(jnp.square(x2 - mu0), axis=0, keepdims=True)
    x2n = (x2 - mu0) * jax.lax.rsqrt(var0 + _LN_EPS) * g0 + b0

    # ---- feed-forward --------------------------------------------------------
    # TODO(synk): training-mode dropout is omitted (identity at inference).
    hff = jnp.dot(mx(w0T_ref[...]), mx(x2n), preferred_element_type=f32)   # (F, TQ)
    hff = jnp.maximum(hff + bf0_ref[...].astype(f32), 0.0)
    x3 = jnp.dot(mx(w1T_ref[...]), mx(hff), preferred_element_type=f32) + bf1  # (C, TQ)

    # ---- residual + layernorm1 ----------------------------------------------
    x4 = x3 + x2n
    mu1 = jnp.mean(x4, axis=0, keepdims=True)
    var1 = jnp.mean(jnp.square(x4 - mu1), axis=0, keepdims=True)
    x4n = (x4 - mu1) * jax.lax.rsqrt(var1 + _LN_EPS) * g1 + b1

    out_ref[0] = x4n.astype(out_ref.dtype)


def transformer_layer_forward(x_ncl, params, attn_width=None,
                              mxu_dtype=jnp.float32, tq=128):
    """x_ncl: (N, C, L). Returns (out (N, C, L), attention weights (N, L, L))."""
    N, C, L = x_ncl.shape
    D = params["Wt"].shape[1]
    F = params["W0"].shape[1]

    tq = min(tq, L)
    if L % tq != 0:          # fall back to whole-L query blocks if not divisible
        tq = L
    n_q = L // tq

    f32 = jnp.float32
    wt = params["Wt"].astype(f32)                        # (C, D)
    wxT = params["Wx"].astype(f32).T                     # (D, C)
    bh = params["bh"].astype(f32).reshape(1, D)
    w0T = params["W0"].astype(f32).T                     # (F, C)
    bf0 = params["bf0"].astype(f32).reshape(F, 1)
    w1T = params["W1"].astype(f32).T                     # (C, F)
    cpar = jnp.stack([params["g0"], params["be0"], params["g1"],
                      params["be1"], params["bf1"]], axis=1).astype(f32)   # (C, 5)
    wa = params["Wa"].astype(f32).reshape(1, D)          # SMEM scalars
    ba = params["ba"].astype(f32).reshape(1, 1)

    kernel = functools.partial(_transformer_layer_kernel,
                               attn_width=attn_width, mxu_dtype=mxu_dtype)

    def wspec(shape):
        nd = len(shape)
        return pl.BlockSpec(shape, lambda b, qi, _nd=nd: (0,) * _nd)

    smem_spec = pl.BlockSpec(memory_space=pltpu.MemorySpace.SMEM)

    out, attn = pl.pallas_call(
        kernel,
        out_shape=(
            jax.ShapeDtypeStruct((N, C, L), x_ncl.dtype),
            jax.ShapeDtypeStruct((N, L, L), jnp.float32),
        ),
        grid=(N, n_q),
        in_specs=[
            pl.BlockSpec((1, C, tq), lambda b, qi: (b, 0, qi)),   # x queries
            pl.BlockSpec((1, C, L), lambda b, qi: (b, 0, 0)),     # x keys (full)
            wspec((C, D)),     # Wt
            wspec((D, C)),     # Wx^T
            wspec((1, D)),     # bh
            wspec((F, C)),     # W0^T
            wspec((F, 1)),     # bf0
            wspec((C, F)),     # W1^T
            wspec((C, 5)),     # packed LN gammas/betas + lin1 bias
            smem_spec,         # Wa  (SMEM scalars)
            smem_spec,         # ba  (SMEM scalar)
        ],
        out_specs=(
            pl.BlockSpec((1, C, tq), lambda b, qi: (b, 0, qi)),
            pl.BlockSpec((1, tq, L), lambda b, qi: (b, qi, 0)),
        ),
        compiler_params=pltpu.CompilerParams(
            dimension_semantics=("parallel", "parallel")),
    )(x_ncl, x_ncl, wt, wxT, bh, w0T, bf0, w1T, cpar, wa, ba)
    return out, attn


def _xavier_uniform(key, fan_in, fan_out, shape):
    bound = math.sqrt(6.0 / (fan_in + fan_out))
    return jax.random.uniform(key, shape, jnp.float32, -bound, bound)


def init_params(key, io_channels, d_model, feedforward_dim):
    # NOTE: PyTorch inits the biases to zero and LN affine to (1, 0); here the
    # small params are randomized so the self-test exercises every path.
    C, D, F = io_channels, d_model, feedforward_dim
    ks = jax.random.split(key, 12)
    return {
        # attention (PyTorch shapes: Wt/Wx (C, D), Wa (D, 1), bh (D,), ba (1,))
        "Wt": _xavier_uniform(ks[0], C, D, (C, D)),
        "Wx": _xavier_uniform(ks[1], C, D, (C, D)),
        "bh": 0.1 * jax.random.normal(ks[2], (D,), jnp.float32),
        "Wa": _xavier_uniform(ks[3], D, 1, (D, 1)),
        "ba": 0.1 * jax.random.normal(ks[4], (1,), jnp.float32),
        # layernorm0
        "g0": 1.0 + 0.1 * jax.random.normal(ks[5], (C,), jnp.float32),
        "be0": 0.1 * jax.random.normal(ks[6], (C,), jnp.float32),
        # feed-forward (stored as (in, out) == PyTorch weight.T)
        "W0": _xavier_uniform(ks[7], C, F, (C, F)),
        "bf0": 0.1 * jax.random.normal(ks[8], (F,), jnp.float32),
        "W1": _xavier_uniform(ks[9], F, C, (F, C)),
        "bf1": 0.1 * jax.random.normal(ks[10], (C,), jnp.float32),
        # layernorm1
        "g1": 1.0 + 0.1 * jax.random.normal(ks[11], (C,), jnp.float32),
        "be1": jnp.zeros((C,), jnp.float32),
    }


def _reference_forward(x_ncl, p, attn_width=None, mxu_dtype=jnp.float32):
    """Pure-JAX mirror of the PyTorch forward (same matmul input dtype)."""
    f32 = jnp.float32

    def mm(a, b):
        return jnp.matmul(a.astype(mxu_dtype), b.astype(mxu_dtype),
                          preferred_element_type=f32)

    xt = jnp.transpose(x_ncl, (0, 2, 1)).astype(f32)       # (N, L, C)
    q = mm(xt, p["Wt"])[:, :, None, :]
    k = mm(xt, p["Wx"])[:, None, :, :]
    h = jnp.tanh(q + k + p["bh"])
    e = jnp.sum(h * p["Wa"][:, 0], axis=-1) + p["ba"][0]
    e = jnp.exp(e - jnp.max(e, axis=-1, keepdims=True))
    if attn_width is not None:
        L = e.shape[-1]
        i = jnp.arange(L)[:, None]
        j = jnp.arange(L)[None, :]
        d = j - i
        mask = (d <= attn_width // 2 - 1) & (d >= (-attn_width) // 2)
        e = jnp.where(mask, e, 0.0)
    s = jnp.sum(e, axis=-1, keepdims=True)
    a = e / (s + _ATTN_EPS)
    v = mm(a, xt)
    x2 = v + xt
    mu = jnp.mean(x2, -1, keepdims=True)
    var = jnp.mean((x2 - mu) ** 2, -1, keepdims=True)
    x2n = (x2 - mu) / jnp.sqrt(var + _LN_EPS) * p["g0"] + p["be0"]
    hff = jnp.maximum(mm(x2n, p["W0"]) + p["bf0"], 0.0)
    x3 = mm(hff, p["W1"]) + p["bf1"]
    x4 = x3 + x2n
    mu1 = jnp.mean(x4, -1, keepdims=True)
    var1 = jnp.mean((x4 - mu1) ** 2, -1, keepdims=True)
    x4n = (x4 - mu1) / jnp.sqrt(var1 + _LN_EPS) * p["g1"] + p["be1"]
    return jnp.transpose(x4n, (0, 2, 1)), a


def _check(name, got, want, atol, rtol):
    diff = float(jnp.max(jnp.abs(got - want)))
    ok = bool(jnp.allclose(got, want, atol=atol, rtol=rtol))
    assert ok, f"{name}: max abs diff {diff} exceeds atol={atol} rtol={rtol}"


if __name__ == "__main__":
    # Small shapes consistent with the module's (N, C, L) input convention.
    N, C, L = 2, 8, 256
    D_MODEL, FF_DIM = 16, 32

    key = jax.random.PRNGKey(0)
    kx, kp = jax.random.split(key)
    x = jax.random.normal(kx, (N, C, L), jnp.float32)
    params = init_params(kp, C, D_MODEL, FF_DIM)

    # ---- exact f32 matmul path (tight check), with and without band mask ----
    for attn_width in (None, 7):
        out, attn = transformer_layer_forward(x, params, attn_width=attn_width,
                                              mxu_dtype=jnp.float32)
        out = jax.block_until_ready(out)
        attn = jax.block_until_ready(attn)
        ref_out, ref_attn = _reference_forward(x, params, attn_width=attn_width,
                                               mxu_dtype=jnp.float32)
        assert out.shape == (N, C, L) and attn.shape == (N, L, L)
        _check(f"out (f32, width={attn_width})", out, ref_out, 2e-3, 2e-3)
        _check(f"attn (f32, width={attn_width})", attn, ref_attn, 1e-3, 1e-3)

    # ---- bf16 MXU path (v6e/v7x perf path), vs matching-cast reference ------
    out_bf, attn_bf = transformer_layer_forward(x, params, attn_width=None,
                                                mxu_dtype=jnp.bfloat16)
    out_bf = jax.block_until_ready(out_bf)
    attn_bf = jax.block_until_ready(attn_bf)
    ref_out_bf, ref_attn_bf = _reference_forward(x, params, attn_width=None,
                                                 mxu_dtype=jnp.bfloat16)
    _check("out (bf16)", out_bf, ref_out_bf, 2e-2, 2e-2)
    _check("attn (bf16)", attn_bf, ref_attn_bf, 5e-3, 2e-2)

    print("KERNEL_OK")
</pallas_src>

<mosaic_0001>
module attributes {stable_mosaic.version = 11 : i64} {
  func.func @_transformer_layer_kernel(%arg0: i32, %arg1: i32, %arg2: memref<1x8x128xf32, #tpu.memory_space<vmem>>, %arg3: memref<1x8x256xf32, #tpu.memory_space<vmem>>, %arg4: memref<8x16xf32, #tpu.memory_space<vmem>>, %arg5: memref<16x8xf32, #tpu.memory_space<vmem>>, %arg6: memref<1x16xf32, #tpu.memory_space<vmem>>, %arg7: memref<32x8xf32, #tpu.memory_space<vmem>>, %arg8: memref<32x1xf32, #tpu.memory_space<vmem>>, %arg9: memref<8x32xf32, #tpu.memory_space<vmem>>, %arg10: memref<8x5xf32, #tpu.memory_space<vmem>>, %arg11: memref<1x16xf32, #tpu.memory_space<smem>>, %arg12: memref<1x1xf32, #tpu.memory_space<smem>>, %arg13: memref<1x8x128xf32, #tpu.memory_space<vmem>>, %arg14: memref<1x128x256xf32, #tpu.memory_space<vmem>>) attributes {dimension_semantics = [#tpu.dimension_semantics<parallel>, #tpu.dimension_semantics<parallel>], iteration_bounds = array<i64: 2, 2>, scalar_prefetch = 0 : i64, scratch_operands = 0 : i64, tpu.core_type = #tpu.core_type<tc>, window_params = [{transform_indices = @transform_0, window_bounds = array<i64: 1, 8, 128>}, {transform_indices = @transform_1, window_bounds = array<i64: 1, 8, 256>}, {pipeline_mode = #tpu.pipeline_mode<synchronous>, transform_indices = @transform_2, window_bounds = array<i64: 8, 16>}, {pipeline_mode = #tpu.pipeline_mode<synchronous>, transform_indices = @transform_3, window_bounds = array<i64: 16, 8>}, {pipeline_mode = #tpu.pipeline_mode<synchronous>, transform_indices = @transform_4, window_bounds = array<i64: 1, 16>}, {pipeline_mode = #tpu.pipeline_mode<synchronous>, transform_indices = @transform_5, window_bounds = array<i64: 32, 8>}, {pipeline_mode = #tpu.pipeline_mode<synchronous>, transform_indices = @transform_6, window_bounds = array<i64: 32, 1>}, {pipeline_mode = #tpu.pipeline_mode<synchronous>, transform_indices = @transform_7, window_bounds = array<i64: 8, 32>}, {pipeline_mode = #tpu.pipeline_mode<synchronous>, transform_indices = @transform_8, window_bounds = array<i64: 8, 5>}, {transform_indices = @transform_9, window_bounds = array<i64: 1, 16>}, {transform_indices = @transform_10, window_bounds = array<i64: 1, 1>}, {transform_indices = @transform_11, window_bounds = array<i64: 1, 8, 128>}, {transform_indices = @transform_12, window_bounds = array<i64: 1, 128, 256>}]} {
    %c0 = arith.constant 0 : index
    %c0_0 = arith.constant 0 : index
    %c0_1 = arith.constant 0 : index
    %0 = vector.load %arg2[%c0, %c0_0, %c0_1] : memref<1x8x128xf32, #tpu.memory_space<vmem>>, vector<1x8x128xf32>
    %1 = vector.shape_cast %0 : vector<1x8x128xf32> to vector<8x128xf32>
    %c0_2 = arith.constant 0 : index
    %c0_3 = arith.constant 0 : index
    %c0_4 = arith.constant 0 : index
    %2 = vector.load %arg3[%c0_2, %c0_3, %c0_4] : memref<1x8x256xf32, #tpu.memory_space<vmem>>, vector<1x8x256xf32>
    %3 = vector.shape_cast %2 : vector<1x8x256xf32> to vector<8x256xf32>
    %4 = tpu.transpose %1, [1, 0] : vector<8x128xf32> -> vector<128x8xf32>
    %c0_5 = arith.constant 0 : index
    %c0_6 = arith.constant 0 : index
    %5 = vector.load %arg4[%c0_5, %c0_6] : memref<8x16xf32, #tpu.memory_space<vmem>>, vector<8x16xf32>
    %cst = arith.constant dense<0.000000e+00> : vector<128x16xf32>
    %6 = tpu.matmul %4, %5, %cst {dimension_numbers = #tpu.dot_dimension_numbers<[1], [0], [0], [1], [0, 0, 1, 1], [], []>} : vector<128x8xf32>, vector<8x16xf32>, vector<128x16xf32> -> vector<128x16xf32>
    %c0_7 = arith.constant 0 : index
    %c0_8 = arith.constant 0 : index
    %7 = vector.load %arg6[%c0_7, %c0_8] : memref<1x16xf32, #tpu.memory_space<vmem>>, vector<1x16xf32>
    %8 = vector.broadcast %7 : vector<1x16xf32> to vector<128x16xf32>
    %9 = arith.addf %6, %8 : vector<128x16xf32>
    %c0_9 = arith.constant 0 : index
    %c0_10 = arith.constant 0 : index
    %10 = vector.load %arg5[%c0_9, %c0_10] : memref<16x8xf32, #tpu.memory_space<vmem>>, vector<16x8xf32>
    %cst_11 = arith.constant dense<0.000000e+00> : vector<16x256xf32>
    %11 = tpu.matmul %10, %3, %cst_11 {dimension_numbers = #tpu.dot_dimension_numbers<[1], [0], [0], [1], [0, 0, 1, 1], [], []>} : vector<16x8xf32>, vector<8x256xf32>, vector<16x256xf32> -> vector<16x256xf32>
    %cst_12 = arith.constant 0.000000e+00 : f32
    %12 = vector.broadcast %cst_12 : f32 to vector<128x256xf32>
    %c0_13 = arith.constant 0 : index
    %c0_14 = arith.constant 0 : index
    %13 = memref.load %arg11[%c0_13, %c0_14] : memref<1x16xf32, #tpu.memory_space<smem>>
    %14 = vector.extract_strided_slice %9 {offsets = [0, 0], sizes = [128, 1], strides = [1, 1]} : vector<128x16xf32> to vector<128x1xf32>
    %15 = vector.extract_strided_slice %11 {offsets = [0, 0], sizes = [1, 256], strides = [1, 1]} : vector<16x256xf32> to vector<1x256xf32>
    %16 = vector.broadcast %14 : vector<128x1xf32> to vector<128x256xf32>
    %17 = vector.broadcast %15 : vector<1x256xf32> to vector<128x256xf32>
    %18 = arith.addf %16, %17 : vector<128x256xf32>
    %19 = math.tanh %18 : vector<128x256xf32>
    %20 = vector.broadcast %13 : f32 to vector<128x256xf32>
    %21 = arith.mulf %20, %19 : vector<128x256xf32>
    %22 = arith.addf %12, %21 : vector<128x256xf32>
    %c0_15 = arith.constant 0 : index
    %c1 = arith.constant 1 : index
    %23 = memref.load %arg11[%c0_15, %c1] : memref<1x16xf32, #tpu.memory_space<smem>>
    %24 = vector.extract_strided_slice %9 {offsets = [0, 1], sizes = [128, 1], strides = [1, 1]} : vector<128x16xf32> to vector<128x1xf32>
    %25 = vector.extract_strided_slice %11 {offsets = [1, 0], sizes = [1, 256], strides = [1, 1]} : vector<16x256xf32> to vector<1x256xf32>
    %26 = vector.broadcast %24 : vector<128x1xf32> to vector<128x256xf32>
    %27 = vector.broadcast %25 : vector<1x256xf32> to vector<128x256xf32>
    %28 = arith.addf %26, %27 : vector<128x256xf32>
    %29 = math.tanh %28 : vector<128x256xf32>
    %30 = vector.broadcast %23 : f32 to vector<128x256xf32>
    %31 = arith.mulf %30, %29 : vector<128x256xf32>
    %32 = arith.addf %22, %31 : vector<128x256xf32>
    %c0_16 = arith.constant 0 : index
    %c2 = arith.constant 2 : index
    %33 = memref.load %arg11[%c0_16, %c2] : memref<1x16xf32, #tpu.memory_space<smem>>
    %34 = vector.extract_strided_slice %9 {offsets = [0, 2], sizes = [128, 1], strides = [1, 1]} : vector<128x16xf32> to vector<128x1xf32>
    %35 = vector.extract_strided_slice %11 {offsets = [2, 0], sizes = [1, 256], strides = [1, 1]} : vector<16x256xf32> to vector<1x256xf32>
    %36 = vector.broadcast %34 : vector<128x1xf32> to vector<128x256xf32>
    %37 = vector.broadcast %35 : vector<1x256xf32> to vector<128x256xf32>
    %38 = arith.addf %36, %37 : vector<128x256xf32>
    %39 = math.tanh %38 : vector<128x256xf32>
    %40 = vector.broadcast %33 : f32 to vector<128x256xf32>
    %41 = arith.mulf %40, %39 : vector<128x256xf32>
    %42 = arith.addf %32, %41 : vector<128x256xf32>
    %c0_17 = arith.constant 0 : index
    %c3 = arith.constant 3 : index
    %43 = memref.load %arg11[%c0_17, %c3] : memref<1x16xf32, #tpu.memory_space<smem>>
    %44 = vector.extract_strided_slice %9 {offsets = [0, 3], sizes = [128, 1], strides = [1, 1]} : vector<128x16xf32> to vector<128x1xf32>
    %45 = vector.extract_strided_slice %11 {offsets = [3, 0], sizes = [1, 256], strides = [1, 1]} : vector<16x256xf32> to vector<1x256xf32>
    %46 = vector.broadcast %44 : vector<128x1xf32> to vector<128x256xf32>
    %47 = vector.broadcast %45 : vector<1x256xf32> to vector<128x256xf32>
    %48 = arith.addf %46, %47 : vector<128x256xf32>
    %49 = math.tanh %48 : vector<128x256xf32>
    %50 = vector.broadcast %43 : f32 to vector<128x256xf32>
    %51 = arith.mulf %50, %49 : vector<128x256xf32>
    %52 = arith.addf %42, %51 : vector<128x256xf32>
    %c0_18 = arith.constant 0 : index
    %c4 = arith.constant 4 : index
    %53 = memref.load %arg11[%c0_18, %c4] : memref<1x16xf32, #tpu.memory_space<smem>>
    %54 = vector.extract_strided_slice %9 {offsets = [0, 4], sizes = [128, 1], strides = [1, 1]} : vector<128x16xf32> to vector<128x1xf32>
    %55 = vector.extract_strided_slice %11 {offsets = [4, 0], sizes = [1, 256], strides = [1, 1]} : vector<16x256xf32> to vector<1x256xf32>
    %56 = vector.broadcast %54 : vector<128x1xf32> to vector<128x256xf32>
    %57 = vector.broadcast %55 : vector<1x256xf32> to vector<128x256xf32>
    %58 = arith.addf %56, %57 : vector<128x256xf32>
    %59 = math.tanh %58 : vector<128x256xf32>
    %60 = vector.broadcast %53 : f32 to vector<128x256xf32>
    %61 = arith.mulf %60, %59 : vector<128x256xf32>
    %62 = arith.addf %52, %61 : vector<128x256xf32>
    %c0_19 = arith.constant 0 : index
    %c5 = arith.constant 5 : index
    %63 = memref.load %arg11[%c0_19, %c5] : memref<1x16xf32, #tpu.memory_space<smem>>
    %64 = vector.extract_strided_slice %9 {offsets = [0, 5], sizes = [128, 1], strides = [1, 1]} : vector<128x16xf32> to vector<128x1xf32>
    %65 = vector.extract_strided_slice %11 {offsets = [5, 0], sizes = [1, 256], strides = [1, 1]} : vector<16x256xf32> to vector<1x256xf32>
    %66 = vector.broadcast %64 : vector<128x1xf32> to vector<128x256xf32>
    %67 = vector.broadcast %65 : vector<1x256xf32> to vector<128x256xf32>
    %68 = arith.addf %66, %67 : vector<128x256xf32>
    %69 = math.tanh %68 : vector<128x256xf32>
    %70 = vector.broadcast %63 : f32 to vector<128x256xf32>
    %71 = arith.mulf %70, %69 : vector<128x256xf32>
    %72 = arith.addf %62, %71 : vector<128x256xf32>
    %c0_20 = arith.constant 0 : index
    %c6 = arith.constant 6 : index
    %73 = memref.load %arg11[%c0_20, %c6] : memref<1x16xf32, #tpu.memory_space<smem>>
    %74 = vector.extract_strided_slice %9 {offsets = [0, 6], sizes = [128, 1], strides = [1, 1]} : vector<128x16xf32> to vector<128x1xf32>
    %75 = vector.extract_strided_slice %11 {offsets = [6, 0], sizes = [1, 256], strides = [1, 1]} : vector<16x256xf32> to vector<1x256xf32>
    %76 = vector.broadcast %74 : vector<128x1xf32> to vector<128x256xf32>
    %77 = vector.broadcast %75 : vector<1x256xf32> to vector<128x256xf32>
    %78 = arith.addf %76, %77 : vector<128x256xf32>
    %79 = math.tanh %78 : vector<128x256xf32>
    %80 = vector.broadcast %73 : f32 to vector<128x256xf32>
    %81 = arith.mulf %80, %79 : vector<128x256xf32>
    %82 = arith.addf %72, %81 : vector<128x256xf32>
    %c0_21 = arith.constant 0 : index
    %c7 = arith.constant 7 : index
    %83 = memref.load %arg11[%c0_21, %c7] : memref<1x16xf32, #tpu.memory_space<smem>>
    %84 = vector.extract_strided_slice %9 {offsets = [0, 7], sizes = [128, 1], strides = [1, 1]} : vector<128x16xf32> to vector<128x1xf32>
    %85 = vector.extract_strided_slice %11 {offsets = [7, 0], sizes = [1, 256], strides = [1, 1]} : vector<16x256xf32> to vector<1x256xf32>
    %86 = vector.broadcast %84 : vector<128x1xf32> to vector<128x256xf32>
    %87 = vector.broadcast %85 : vector<1x256xf32> to vector<128x256xf32>
    %88 = arith.addf %86, %87 : vector<128x256xf32>
    %89 = math.tanh %88 : vector<128x256xf32>
    %90 = vector.broadcast %83 : f32 to vector<128x256xf32>
    %91 = arith.mulf %90, %89 : vector<128x256xf32>
    %92 = arith.addf %82, %91 : vector<128x256xf32>
    %c0_22 = arith.constant 0 : index
    %c8 = arith.constant 8 : index
    %93 = memref.load %arg11[%c0_22, %c8] : memref<1x16xf32, #tpu.memory_space<smem>>
    %94 = vector.extract_strided_slice %9 {offsets = [0, 8], sizes = [128, 1], strides = [1, 1]} : vector<128x16xf32> to vector<128x1xf32>
    %95 = vector.extract_strided_slice %11 {offsets = [8, 0], sizes = [1, 256], strides = [1, 1]} : vector<16x256xf32> to vector<1x256xf32>
    %96 = vector.broadcast %94 : vector<128x1xf32> to vector<128x256xf32>
    %97 = vector.broadcast %95 : vector<1x256xf32> to vector<128x256xf32>
    %98 = arith.addf %96, %97 : vector<128x256xf32>
    %99 = math.tanh %98 : vector<128x256xf32>
    %100 = vector.broadcast %93 : f32 to vector<128x256xf32>
    %101 = arith.mulf %100, %99 : vector<128x256xf32>
    %102 = arith.addf %92, %101 : vector<128x256xf32>
    %c0_23 = arith.constant 0 : index
    %c9 = arith.constant 9 : index
    %103 = memref.load %arg11[%c0_23, %c9] : memref<1x16xf32, #tpu.memory_space<smem>>
    %104 = vector.extract_strided_slice %9 {offsets = [0, 9], sizes = [128, 1], strides = [1, 1]} : vector<128x16xf32> to vector<128x1xf32>
    %105 = vector.extract_strided_slice %11 {offsets = [9, 0], sizes = [1, 256], strides = [1, 1]} : vector<16x256xf32> to vector<1x256xf32>
    %106 = vector.broadcast %104 : vector<128x1xf32> to vector<128x256xf32>
    %107 = vector.broadcast %105 : vector<1x256xf32> to vector<128x256xf32>
    %108 = arith.addf %106, %107 : vector<128x256xf32>
    %109 = math.tanh %108 : vector<128x256xf32>
    %110 = vector.broadcast %103 : f32 to vector<128x256xf32>
    %111 = arith.mulf %110, %109 : vector<128x256xf32>
    %112 = arith.addf %102, %111 : vector<128x256xf32>
    %c0_24 = arith.constant 0 : index
    %c10 = arith.constant 10 : index
    %113 = memref.load %arg11[%c0_24, %c10] : memref<1x16xf32, #tpu.memory_space<smem>>
    %114 = vector.extract_strided_slice %9 {offsets = [0, 10], sizes = [128, 1], strides = [1, 1]} : vector<128x16xf32> to vector<128x1xf32>
    %115 = vector.extract_strided_slice %11 {offsets = [10, 0], sizes = [1, 256], strides = [1, 1]} : vector<16x256xf32> to vector<1x256xf32>
    %116 = vector.broadcast %114 : vector<128x1xf32> to vector<128x256xf32>
    %117 = vector.broadcast %115 : vector<1x256xf32> to vector<128x256xf32>
    %118 = arith.addf %116, %117 : vector<128x256xf32>
    %119 = math.tanh %118 : vector<128x256xf32>
    %120 = vector.broadcast %113 : f32 to vector<128x256xf32>
    %121 = arith.mulf %120, %119 : vector<128x256xf32>
    %122 = arith.addf %112, %121 : vector<128x256xf32>
    %c0_25 = arith.constant 0 : index
    %c11 = arith.constant 11 : index
    %123 = memref.load %arg11[%c0_25, %c11] : memref<1x16xf32, #tpu.memory_space<smem>>
    %124 = vector.extract_strided_slice %9 {offsets = [0, 11], sizes = [128, 1], strides = [1, 1]} : vector<128x16xf32> to vector<128x1xf32>
    %125 = vector.extract_strided_slice %11 {offsets = [11, 0], sizes = [1, 256], strides = [1, 1]} : vector<16x256xf32> to vector<1x256xf32>
    %126 = vector.broadcast %124 : vector<128x1xf32> to vector<128x256xf32>
    %127 = vector.broadcast %125 : vector<1x256xf32> to vector<128x256xf32>
    %128 = arith.addf %126, %127 : vector<128x256xf32>
    %129 = math.tanh %128 : vector<128x256xf32>
    %130 = vector.broadcast %123 : f32 to vector<128x256xf32>
    %131 = arith.mulf %130, %129 : vector<128x256xf32>
    %132 = arith.addf %122, %131 : vector<128x256xf32>
    %c0_26 = arith.constant 0 : index
    %c12 = arith.constant 12 : index
    %133 = memref.load %arg11[%c0_26, %c12] : memref<1x16xf32, #tpu.memory_space<smem>>
    %134 = vector.extract_strided_slice %9 {offsets = [0, 12], sizes = [128, 1], strides = [1, 1]} : vector<128x16xf32> to vector<128x1xf32>
    %135 = vector.extract_strided_slice %11 {offsets = [12, 0], sizes = [1, 256], strides = [1, 1]} : vector<16x256xf32> to vector<1x256xf32>
    %136 = vector.broadcast %134 : vector<128x1xf32> to vector<128x256xf32>
    %137 = vector.broadcast %135 : vector<1x256xf32> to vector<128x256xf32>
    %138 = arith.addf %136, %137 : vector<128x256xf32>
    %139 = math.tanh %138 : vector<128x256xf32>
    %140 = vector.broadcast %133 : f32 to vector<128x256xf32>
    %141 = arith.mulf %140, %139 : vector<128x256xf32>
    %142 = arith.addf %132, %141 : vector<128x256xf32>
    %c0_27 = arith.constant 0 : index
    %c13 = arith.constant 13 : index
    %143 = memref.load %arg11[%c0_27, %c13] : memref<1x16xf32, #tpu.memory_space<smem>>
    %144 = vector.extract_strided_slice %9 {offsets = [0, 13], sizes = [128, 1], strides = [1, 1]} : vector<128x16xf32> to vector<128x1xf32>
    %145 = vector.extract_strided_slice %11 {offsets = [13, 0], sizes = [1, 256], strides = [1, 1]} : vector<16x256xf32> to vector<1x256xf32>
    %146 = vector.broadcast %144 : vector<128x1xf32> to vector<128x256xf32>
    %147 = vector.broadcast %145 : vector<1x256xf32> to vector<128x256xf32>
    %148 = arith.addf %146, %147 : vector<128x256xf32>
    %149 = math.tanh %148 : vector<128x256xf32>
    %150 = vector.broadcast %143 : f32 to vector<128x256xf32>
    %151 = arith.mulf %150, %149 : vector<128x256xf32>
    %152 = arith.addf %142, %151 : vector<128x256xf32>
    %c0_28 = arith.constant 0 : index
    %c14 = arith.constant 14 : index
    %153 = memref.load %arg11[%c0_28, %c14] : memref<1x16xf32, #tpu.memory_space<smem>>
    %154 = vector.extract_strided_slice %9 {offsets = [0, 14], sizes = [128, 1], strides = [1, 1]} : vector<128x16xf32> to vector<128x1xf32>
    %155 = vector.extract_strided_slice %11 {offsets = [14, 0], sizes = [1, 256], strides = [1, 1]} : vector<16x256xf32> to vector<1x256xf32>
    %156 = vector.broadcast %154 : vector<128x1xf32> to vector<128x256xf32>
    %157 = vector.broadcast %155 : vector<1x256xf32> to vector<128x256xf32>
    %158 = arith.addf %156, %157 : vector<128x256xf32>
    %159 = math.tanh %158 : vector<128x256xf32>
    %160 = vector.broadcast %153 : f32 to vector<128x256xf32>
    %161 = arith.mulf %160, %159 : vector<128x256xf32>
    %162 = arith.addf %152, %161 : vector<128x256xf32>
    %c0_29 = arith.constant 0 : index
    %c15 = arith.constant 15 : index
    %163 = memref.load %arg11[%c0_29, %c15] : memref<1x16xf32, #tpu.memory_space<smem>>
    %164 = vector.extract_strided_slice %9 {offsets = [0, 15], sizes = [128, 1], strides = [1, 1]} : vector<128x16xf32> to vector<128x1xf32>
    %165 = vector.extract_strided_slice %11 {offsets = [15, 0], sizes = [1, 256], strides = [1, 1]} : vector<16x256xf32> to vector<1x256xf32>
    %166 = vector.broadcast %164 : vector<128x1xf32> to vector<128x256xf32>
    %167 = vector.broadcast %165 : vector<1x256xf32> to vector<128x256xf32>
    %168 = arith.addf %166, %167 : vector<128x256xf32>
    %169 = math.tanh %168 : vector<128x256xf32>
    %170 = vector.broadcast %163 : f32 to vector<128x256xf32>
    %171 = arith.mulf %170, %169 : vector<128x256xf32>
    %172 = arith.addf %162, %171 : vector<128x256xf32>
    %c0_30 = arith.constant 0 : index
    %c0_31 = arith.constant 0 : index
    %173 = memref.load %arg12[%c0_30, %c0_31] : memref<1x1xf32, #tpu.memory_space<smem>>
    %174 = vector.broadcast %173 : f32 to vector<128x256xf32>
    %175 = arith.addf %172, %174 : vector<128x256xf32>
    %cst_32 = arith.constant dense<0xFF800000> : vector<128xf32>
    %176 = vector.multi_reduction <maximumf>, %175, %cst_32 [1] : vector<128x256xf32> to vector<128xf32>
    %177 = vector.shape_cast %176 : vector<128xf32> to vector<128x1xf32>
    %178 = vector.broadcast %177 : vector<128x1xf32> to vector<128x256xf32>
    %179 = arith.subf %175, %178 : vector<128x256xf32>
    %180 = math.exp %179 : vector<128x256xf32>
    %cst_33 = arith.constant dense<0.000000e+00> : vector<128xf32>
    %181 = vector.multi_reduction <add>, %180, %cst_33 [1] : vector<128x256xf32> to vector<128xf32>
    %182 = vector.shape_cast %181 : vector<128xf32> to vector<128x1xf32>
    %cst_34 = arith.constant 9.99999997E-7 : f32
    %183 = vector.broadcast %cst_34 : f32 to vector<128x1xf32>
    %184 = arith.addf %182, %183 : vector<128x1xf32>
    %185 = vector.broadcast %184 : vector<128x1xf32> to vector<128x256xf32>
    %186 = arith.divf %180, %185 : vector<128x256xf32>
    %c0_35 = arith.constant 0 : index
    %c0_36 = arith.constant 0 : index
    %c0_37 = arith.constant 0 : index
    %187 = vector.load %arg14[%c0_35, %c0_36, %c0_37] : memref<1x128x256xf32, #tpu.memory_space<vmem>>, vector<1x128x256xf32>
    %188 = vector.shape_cast %187 : vector<1x128x256xf32> to vector<128x256xf32>
    %189 = vector.shape_cast %186 : vector<128x256xf32> to vector<1x128x256xf32>
    tpu.vector_store %arg14[%c0_35, %c0_36, %c0_37], %189 {strides = array<i32>} : memref<1x128x256xf32, #tpu.memory_space<vmem>>, vector<1x128x256xf32>,
    %190 = tpu.transpose %3, [1, 0] : vector<8x256xf32> -> vector<256x8xf32>
    %cst_38 = arith.constant dense<0.000000e+00> : vector<128x8xf32>
    %191 = tpu.matmul %186, %190, %cst_38 {dimension_numbers = #tpu.dot_dimension_numbers<[1], [0], [0], [1], [0, 0, 1, 1], [], []>} : vector<128x256xf32>, vector<256x8xf32>, vector<128x8xf32> -> vector<128x8xf32>
    %192 = tpu.transpose %191, [1, 0] : vector<128x8xf32> -> vector<8x128xf32>
    %c0_39 = arith.constant 0 : index
    %c0_40 = arith.constant 0 : index
    %193 = vector.load %arg10[%c0_39, %c0_40] : memref<8x5xf32, #tpu.memory_space<vmem>>, vector<8x5xf32>
    %194 = vector.extract_strided_slice %193 {offsets = [0, 0], sizes = [8, 1], strides = [1, 1]} : vector<8x5xf32> to vector<8x1xf32>
    %195 = vector.extract_strided_slice %193 {offsets = [0, 1], sizes = [8, 1], strides = [1, 1]} : vector<8x5xf32> to vector<8x1xf32>
    %196 = vector.extract_strided_slice %193 {offsets = [0, 2], sizes = [8, 1], strides = [1, 1]} : vector<8x5xf32> to vector<8x1xf32>
    %197 = vector.extract_strided_slice %193 {offsets = [0, 3], sizes = [8, 1], strides = [1, 1]} : vector<8x5xf32> to vector<8x1xf32>
    %198 = vector.extract_strided_slice %193 {offsets = [0, 4], sizes = [8, 1], strides = [1, 1]} : vector<8x5xf32> to vector<8x1xf32>
    %199 = arith.addf %192, %1 : vector<8x128xf32>
    %cst_41 = arith.constant dense<0.000000e+00> : vector<128xf32>
    %200 = vector.multi_reduction <add>, %199, %cst_41 [0] : vector<8x128xf32> to vector<128xf32>
    %201 = vector.shape_cast %200 : vector<128xf32> to vector<1x128xf32>
    %cst_42 = arith.constant 8.000000e+00 : f32
    %202 = vector.broadcast %cst_42 : f32 to vector<1x128xf32>
    %203 = arith.divf %201, %202 : vector<1x128xf32>
    %204 = vector.broadcast %203 : vector<1x128xf32> to vector<8x128xf32>
    %205 = arith.subf %199, %204 : vector<8x128xf32>
    %206 = arith.mulf %205, %205 : vector<8x128xf32>
    %cst_43 = arith.constant dense<0.000000e+00> : vector<128xf32>
    %207 = vector.multi_reduction <add>, %206, %cst_43 [0] : vector<8x128xf32> to vector<128xf32>
    %208 = vector.shape_cast %207 : vector<128xf32> to vector<1x128xf32>
    %cst_44 = arith.constant 8.000000e+00 : f32
    %209 = vector.broadcast %cst_44 : f32 to vector<1x128xf32>
    %210 = arith.divf %208, %209 : vector<1x128xf32>
    %211 = vector.broadcast %203 : vector<1x128xf32> to vector<8x128xf32>
    %212 = arith.subf %199, %211 : vector<8x128xf32>
    %cst_45 = arith.constant 9.99999974E-6 : f32
    %213 = vector.broadcast %cst_45 : f32 to vector<1x128xf32>
    %214 = arith.addf %210, %213 : vector<1x128xf32>
    %215 = math.rsqrt %214 : vector<1x128xf32>
    %216 = vector.broadcast %215 : vector<1x128xf32> to vector<8x128xf32>
    %217 = arith.mulf %212, %216 : vector<8x128xf32>
    %218 = vector.broadcast %194 : vector<8x1xf32> to vector<8x128xf32>
    %219 = arith.mulf %217, %218 : vector<8x128xf32>
    %220 = vector.broadcast %195 : vector<8x1xf32> to vector<8x128xf32>
    %221 = arith.addf %219, %220 : vector<8x128xf32>
    %c0_46 = arith.constant 0 : index
    %c0_47 = arith.constant 0 : index
    %222 = vector.load %arg7[%c0_46, %c0_47] : memref<32x8xf32, #tpu.memory_space<vmem>>, vector<32x8xf32>
    %cst_48 = arith.constant dense<0.000000e+00> : vector<32x128xf32>
    %223 = tpu.matmul %222, %221, %cst_48 {dimension_numbers = #tpu.dot_dimension_numbers<[1], [0], [0], [1], [0, 0, 1, 1], [], []>} : vector<32x8xf32>, vector<8x128xf32>, vector<32x128xf32> -> vector<32x128xf32>
    %c0_49 = arith.constant 0 : index
    %c0_50 = arith.constant 0 : index
    %224 = vector.load %arg8[%c0_49, %c0_50] : memref<32x1xf32, #tpu.memory_space<vmem>>, vector<32x1xf32>
    %225 = vector.broadcast %224 : vector<32x1xf32> to vector<32x128xf32>
    %226 = arith.addf %223, %225 : vector<32x128xf32>
    %cst_51 = arith.constant 0.000000e+00 : f32
    %227 = vector.broadcast %cst_51 : f32 to vector<32x128xf32>
    %228 = arith.maximumf %226, %227 : vector<32x128xf32>
    %c0_52 = arith.constant 0 : index
    %c0_53 = arith.constant 0 : index
    %229 = vector.load %arg9[%c0_52, %c0_53] : memref<8x32xf32, #tpu.memory_space<vmem>>, vector<8x32xf32>
    %cst_54 = arith.constant dense<0.000000e+00> : vector<8x128xf32>
    %230 = tpu.matmul %229, %228, %cst_54 {dimension_numbers = #tpu.dot_dimension_numbers<[1], [0], [0], [1], [0, 0, 1, 1], [], []>} : vector<8x32xf32>, vector<32x128xf32>, vector<8x128xf32> -> vector<8x128xf32>
    %231 = vector.broadcast %198 : vector<8x1xf32> to vector<8x128xf32>
    %232 = arith.addf %230, %231 : vector<8x128xf32>
    %233 = arith.addf %232, %221 : vector<8x128xf32>
    %cst_55 = arith.constant dense<0.000000e+00> : vector<128xf32>
    %234 = vector.multi_reduction <add>, %233, %cst_55 [0] : vector<8x128xf32> to vector<128xf32>
    %235 = vector.shape_cast %234 : vector<128xf32> to vector<1x128xf32>
    %cst_56 = arith.constant 8.000000e+00 : f32
    %236 = vector.broadcast %cst_56 : f32 to vector<1x128xf32>
    %237 = arith.divf %235, %236 : vector<1x128xf32>
    %238 = vector.broadcast %237 : vector<1x128xf32> to vector<8x128xf32>
    %239 = arith.subf %233, %238 : vector<8x128xf32>
    %240 = arith.mulf %239, %239 : vector<8x128xf32>
    %cst_57 = arith.constant dense<0.000000e+00> : vector<128xf32>
    %241 = vector.multi_reduction <add>, %240, %cst_57 [0] : vector<8x128xf32> to vector<128xf32>
    %242 = vector.shape_cast %241 : vector<128xf32> to vector<1x128xf32>
    %cst_58 = arith.constant 8.000000e+00 : f32
    %243 = vector.broadcast %cst_58 : f32 to vector<1x128xf32>
    %244 = arith.divf %242, %243 : vector<1x128xf32>
    %245 = vector.broadcast %237 : vector<1x128xf32> to vector<8x128xf32>
    %246 = arith.subf %233, %245 : vector<8x128xf32>
    %cst_59 = arith.constant 9.99999974E-6 : f32
    %247 = vector.broadcast %cst_59 : f32 to vector<1x128xf32>
    %248 = arith.addf %244, %247 : vector<1x128xf32>
    %249 = math.rsqrt %248 : vector<1x128xf32>
    %250 = vector.broadcast %249 : vector<1x128xf32> to vector<8x128xf32>
    %251 = arith.mulf %246, %250 : vector<8x128xf32>
    %252 = vector.broadcast %196 : vector<8x1xf32> to vector<8x128xf32>
    %253 = arith.mulf %251, %252 : vector<8x128xf32>
    %254 = vector.broadcast %197 : vector<8x1xf32> to vector<8x128xf32>
    %255 = arith.addf %253, %254 : vector<8x128xf32>
    %c0_60 = arith.constant 0 : index
    %c0_61 = arith.constant 0 : index
    %c0_62 = arith.constant 0 : index
    %256 = vector.load %arg13[%c0_60, %c0_61, %c0_62] : memref<1x8x128xf32, #tpu.memory_space<vmem>>, vector<1x8x128xf32>
    %257 = vector.shape_cast %256 : vector<1x8x128xf32> to vector<8x128xf32>
    %258 = vector.shape_cast %255 : vector<8x128xf32> to vector<1x8x128xf32>
    tpu.vector_store %arg13[%c0_60, %c0_61, %c0_62], %258 {strides = array<i32>} : memref<1x8x128xf32, #tpu.memory_space<vmem>>, vector<1x8x128xf32>,
    return
  }
  func.func @transform_0(%arg0: i32, %arg1: i32) -> (i32, i32, i32) {
    %c0_i32 = arith.constant 0 : i32
    %c0_i32_0 = arith.constant 0 : i32
    return %arg0, %c0_i32, %arg1 : i32, i32, i32
  }
  func.func @transform_1(%arg0: i32, %arg1: i32) -> (i32, i32, i32) {
    %c0_i32 = arith.constant 0 : i32
    %c0_i32_0 = arith.constant 0 : i32
    %c0_i32_1 = arith.constant 0 : i32
    return %arg0, %c0_i32, %c0_i32_0 : i32, i32, i32
  }
  func.func @transform_2(%arg0: i32, %arg1: i32) -> (i32, i32) {
    %c0_i32 = arith.constant 0 : i32
    %c0_i32_0 = arith.constant 0 : i32
    %c0_i32_1 = arith.constant 0 : i32
    return %c0_i32, %c0_i32_0 : i32, i32
  }
  func.func @transform_3(%arg0: i32, %arg1: i32) -> (i32, i32) {
    %c0_i32 = arith.constant 0 : i32
    %c0_i32_0 = arith.constant 0 : i32
    %c0_i32_1 = arith.constant 0 : i32
    return %c0_i32, %c0_i32_0 : i32, i32
  }
  func.func @transform_4(%arg0: i32, %arg1: i32) -> (i32, i32) {
    %c0_i32 = arith.constant 0 : i32
    %c0_i32_0 = arith.constant 0 : i32
    %c0_i32_1 = arith.constant 0 : i32
    return %c0_i32, %c0_i32_0 : i32, i32
  }
  func.func @transform_5(%arg0: i32, %arg1: i32) -> (i32, i32) {
    %c0_i32 = arith.constant 0 : i32
    %c0_i32_0 = arith.constant 0 : i32
    %c0_i32_1 = arith.constant 0 : i32
    return %c0_i32, %c0_i32_0 : i32, i32
  }
  func.func @transform_6(%arg0: i32, %arg1: i32) -> (i32, i32) {
    %c0_i32 = arith.constant 0 : i32
    %c0_i32_0 = arith.constant 0 : i32
    %c0_i32_1 = arith.constant 0 : i32
    return %c0_i32, %c0_i32_0 : i32, i32
  }
  func.func @transform_7(%arg0: i32, %arg1: i32) -> (i32, i32) {
    %c0_i32 = arith.constant 0 : i32
    %c0_i32_0 = arith.constant 0 : i32
    %c0_i32_1 = arith.constant 0 : i32
    return %c0_i32, %c0_i32_0 : i32, i32
  }
  func.func @transform_8(%arg0: i32, %arg1: i32) -> (i32, i32) {
    %c0_i32 = arith.constant 0 : i32
    %c0_i32_0 = arith.constant 0 : i32
    %c0_i32_1 = arith.constant 0 : i32
    return %c0_i32, %c0_i32_0 : i32, i32
  }
  func.func @transform_9(%arg0: i32, %arg1: i32) -> (i32, i32) {
    %c0_i32 = arith.constant 0 : i32
    %c0_i32_0 = arith.constant 0 : i32
    %c0_i32_1 = arith.constant 0 : i32
    return %c0_i32, %c0_i32_0 : i32, i32
  }
  func.func @transform_10(%arg0: i32, %arg1: i32) -> (i32, i32) {
    %c0_i32 = arith.constant 0 : i32
    %c0_i32_0 = arith.constant 0 : i32
    %c0_i32_1 = arith.constant 0 : i32
    return %c0_i32, %c0_i32_0 : i32, i32
  }
  func.func @transform_11(%arg0: i32, %arg1: i32) -> (i32, i32, i32) {
    %c0_i32 = arith.constant 0 : i32
    %c0_i32_0 = arith.constant 0 : i32
    return %arg0, %c0_i32, %arg1 : i32, i32, i32
  }
  func.func @transform_12(%arg0: i32, %arg1: i32) -> (i32, i32, i32) {
    %c0_i32 = arith.constant 0 : i32
    %c0_i32_0 = arith.constant 0 : i32
    return %arg0, %arg1, %c0_i32 : i32, i32, i32
  }
}

</mosaic_0001>

<llo_original>
// kernel: tpu_custom_call.1
$region0: #{tpu_custom_call.1}
  #allocation0 [shape = 'u32[]', space=smem, size = 0x4, offset = 0x4, fixed_abs, tag = 'smem constant byte address 0x4 - core index']
  #allocation1 [shape = 'u32[144,128]{1,0:T(1,128)}', space=vmem, size = 0x12000, scoped, tag = 'internal scratch']
  #allocation2 [shape = 'f32[1,1]{1,0:T(1,128)S(6)}', space=smem, size = 0x200, scoped, tag = 'scoped memory for tpu_custom_call.1']
  %s0 = inlined_call_operand.vmem [shape: f32[2,8,256], index: 0, kind: input, shape index: {}]
  %s1 = inlined_call_operand.vmem [shape: f32[2,8,256], index: 1, kind: input, shape index: {}]
  %s2 = inlined_call_operand.vmem [shape: f32[8,16], index: 2, kind: input, shape index: {}]
  %s3 = inlined_call_operand.vmem [shape: f32[16,8], index: 3, kind: input, shape index: {}]
  %s4 = inlined_call_operand.vmem [shape: f32[1,16], index: 4, kind: input, shape index: {}]
  %s5 = inlined_call_operand.vmem [shape: f32[32,8], index: 5, kind: input, shape index: {}]
  %s6 = inlined_call_operand.vmem [shape: f32[32,1], index: 6, kind: input, shape index: {}]
  %s7 = inlined_call_operand.vmem [shape: f32[8,32], index: 7, kind: input, shape index: {}]
  %s8 = inlined_call_operand.vmem [shape: f32[8,5], index: 8, kind: input, shape index: {}]
  %s9 = inlined_call_operand.vmem [shape: f32[1,16], index: 9, kind: input, shape index: {}]
  %s10 = inlined_call_operand.<no memory space> [shape: f32[1,1], index: 10, kind: input, shape index: {}]
  %s11 = inlined_call_operand.hbm [shape: f32[2,8,256], index: 11, kind: output, shape index: {0}]
  %s12 = inlined_call_operand.hbm [shape: f32[2,256,256], index: 12, kind: output, shape index: {1}]
  %13 = xla_tuple %s11, %s12
  %s14 = sld [smem:[#allocation0]]
  $region89: #{tpu_custom_call.1} parent=0
    _
  %s16 = ssub.s32 1, %s14
  %s17 = scalar_select 0, %s16, %s14
  %18 = sst [smem:[#allocation2]] %s10
  $region1: #{tpu_custom_call.1} parent=0
    #allocation3 [shape = 'u8[512]{0}', space=smem, size = 0x200, scoped, tag = 'input window, operand 9, single buffered']
    #allocation4 [shape = 's32[2]{0}', space=sflag, size = 0x8, scoped, tag = 'scoped memory for tpu_custom_call.1']
    #allocation5 [shape = 's32[2]{0}', space=sflag, size = 0x8, scoped, tag = 'scoped memory for tpu_custom_call.1']
    #allocation6 [shape = 'u8[8192]{0}', space=vmem, size = 0x2000, scoped, tag = 'output window, operand 0']
    #allocation7 [shape = 'u8[262144]{0}', space=vmem, size = 0x40000, scoped, tag = 'output window, operand 1']
    #allocation8 [shape = 's32[2]{0}', space=sflag, size = 0x8, scoped, tag = 'scoped memory for tpu_custom_call.1']
    %19 = vsyncpa [#allocation5], 0
    %20 = vsyncpa [#allocation4], 0
    %s21 = scalar_lea.sflag [#allocation4], 1
    %22 = vsyncpa %s21, 0
    %23 = vsyncpa [#allocation8], 0
    %s24 = scalar_lea.sflag [#allocation8], 1
    %25 = vsyncpa %s24, 0
    loop: start=0, step=1, limit=6
    $region2: #{tpu_custom_call.1} parent=1 // loop_pre_header
      _
    $region3: #{tpu_custom_call.1} parent=1 // loop_header
      %s27 = sphi 0, %s31
      %p28 = scmp.ge.s32.totalorder %s27, 6
      %s34 = sphi 0, %s46
      %s35 = sphi 0, %s42
      %s36 = sphi 0, %s34
      %s37 = sphi 0, %s35
      %s38 = sphi 0, %s36
      %s39 = sphi 0, %s37
      %s51 = sphi 0, %s53
      %s54 = sphi 0, %s51
      %s55 = sphi 0, %s54
      %s71 = sphi 0, %s55
      %s77 = sphi 0, %s79
      %s80 = sphi 0, %s77
      %s81 = sphi 0, %s80
      %s97 = sphi 0, %s81
      %s101 = sphi 0, %s101
      %s103 = sphi 0, %s101
      %s104 = sphi 0, %s103
      %s118 = sphi 0, %s104
      %s122 = sphi 0, %s122
      %s124 = sphi 0, %s122
      %s125 = sphi 0, %s124
      %s139 = sphi 0, %s125
      %s143 = sphi 0, %s143
      %s145 = sphi 0, %s143
      %s146 = sphi 0, %s145
      %s160 = sphi 0, %s146
      %s164 = sphi 0, %s164
      %s166 = sphi 0, %s164
      %s167 = sphi 0, %s166
      %s181 = sphi 0, %s167
      %s185 = sphi 0, %s185
      %s187 = sphi 0, %s185
      %s188 = sphi 0, %s187
      %s202 = sphi 0, %s188
      %s206 = sphi 0, %s206
      %s208 = sphi 0, %s206
      %s209 = sphi 0, %s208
      %s223 = sphi 0, %s209
      %s227 = sphi 0, %s227
      %s229 = sphi 0, %s227
      %s230 = sphi 0, %s229
      %s244 = sphi 0, %s230
      %s248 = sphi 0, %s248
      %s250 = sphi 0, %s248
      %s251 = sphi 0, %s250
      %s265 = sphi 0, %s251
      %s269 = sphi 0, %s269
      %s271 = sphi 0, %s269
      %s272 = sphi 0, %s271
      %s286 = sphi 0, %s272
      %s294 = sphi 0, %s296
      %s297 = sphi 0, %s294
      %s298 = sphi 0, %s297
      %s314 = sphi 0, %s298
      %s322 = sphi 0, %s324
      %s325 = sphi 0, %s322
      %s326 = sphi 0, %s325
      %s342 = sphi 0, %s326
    $region4: #{tpu_custom_call.1} parent=1 // loop_header_branch
      %30 = sbr.rel (%p28) target = $region8
    $region5: #{tpu_custom_call.1} parent=1 // loop_body
      %s32 = ssub.s32 %s27, 1
      %s33 = ssub.s32 %s27, 2
      %s40 = sadd.s32 1, %s35
      %p41 = scmp.ge.s32.totalorder %s40, 2
      %s42 = scalar_select %p41, 0, %s40
      %s43 = sadd.s32 1, %s34
      %s44 = scalar_select %p41, %s43, %s34
      %p45 = scmp.ge.s32.totalorder %s44, 2
      %s46 = scalar_select %p45, 0, %s44
      %s47 = ssub.s32 %s34, %s46
      %s48 = ssub.s32 %s35, %s42
      %s49 = sor.u32 %s47, %s48
      %p50 = scmp.eq.s32.totalorder %s49, 0
      %s52 = sadd.s32 %s51, 1
      %s53 = scalar_select %p50, %s51, %s52
      %p56 = pneg %p50
      %p57 = scmp.eq.s32.totalorder %s27, 3
      %p58 = por %p56, %p57
      %p59 = scmp.ne.s32.totalorder %s51, %s54
      %p60 = scmp.eq.s32.totalorder %s27, 0
      %p61 = por %p59, %p60
      %p62 = scmp.ne.s32.totalorder %s51, %s54
      %p63 = scmp.eq.s32.totalorder %s32, 3
      %p64 = por %p62, %p63
      %p65 = scmp.ne.s32.totalorder %s54, %s55
      %p66 = scmp.eq.s32.totalorder %s32, 0
      %p67 = por %p65, %p66
      %p68 = scmp.ne.s32.totalorder %s54, %s55
      %p69 = scmp.eq.s32.totalorder %s33, 3
      %p70 = por %p68, %p69
      %p72 = scmp.ne.s32.totalorder %s55, %s71
      %p73 = scmp.eq.s32.totalorder %s33, 0
      %p74 = por %p72, %p73
      %s75 = ssub.s32 %s34, %s46
      %p76 = scmp.eq.s32.totalorder %s75, 0
      %s78 = sadd.s32 %s77, 1
      %s79 = scalar_select %p76, %s77, %s78
      %p82 = pneg %p76
      %p83 = scmp.eq.s32.totalorder %s27, 3
      %p84 = por %p82, %p83
      %p85 = scmp.ne.s32.totalorder %s77, %s80
      %p86 = scmp.eq.s32.totalorder %s27, 0
      %p87 = por %p85, %p86
      %p88 = scmp.ne.s32.totalorder %s77, %s80
      %p89 = scmp.eq.s32.totalorder %s32, 3
      %p90 = por %p88, %p89
      %p91 = scmp.ne.s32.totalorder %s80, %s81
      %p92 = scmp.eq.s32.totalorder %s32, 0
      %p93 = por %p91, %p92
      %p94 = scmp.ne.s32.totalorder %s80, %s81
      %p95 = scmp.eq.s32.totalorder %s33, 3
      %p96 = por %p94, %p95
      %p98 = scmp.ne.s32.totalorder %s81, %s97
      %p99 = scmp.eq.s32.totalorder %s33, 0
      %p100 = por %p98, %p99
      %s102 = sadd.s32 %s101, 1
      %p105 = scmp.eq.s32.totalorder %s27, 3
      %p106 = scmp.ne.s32.totalorder %s101, %s103
      %p107 = scmp.eq.s32.totalorder %s27, 0
      %p108 = por %p106, %p107
      %p109 = scmp.ne.s32.totalorder %s101, %s103
      %p110 = scmp.eq.s32.totalorder %s32, 3
      %p111 = por %p109, %p110
      %p112 = scmp.ne.s32.totalorder %s103, %s104
      %p113 = scmp.eq.s32.totalorder %s32, 0
      %p114 = por %p112, %p113
      %p115 = scmp.ne.s32.totalorder %s103, %s104
      %p116 = scmp.eq.s32.totalorder %s33, 3
      %p117 = por %p115, %p116
      %p119 = scmp.ne.s32.totalorder %s104, %s118
      %p120 = scmp.eq.s32.totalorder %s33, 0
      %p121 = por %p119, %p120
      %s123 = sadd.s32 %s122, 1
      %p126 = scmp.eq.s32.totalorder %s27, 3
      %p127 = scmp.ne.s32.totalorder %s122, %s124
      %p128 = scmp.eq.s32.totalorder %s27, 0
      %p129 = por %p127, %p128
      %p130 = scmp.ne.s32.totalorder %s122, %s124
      %p131 = scmp.eq.s32.totalorder %s32, 3
      %p132 = por %p130, %p131
      %p133 = scmp.ne.s32.totalorder %s124, %s125
      %p134 = scmp.eq.s32.totalorder %s32, 0
      %p135 = por %p133, %p134
      %p136 = scmp.ne.s32.totalorder %s124, %s125
      %p137 = scmp.eq.s32.totalorder %s33, 3
      %p138 = por %p136, %p137
      %p140 = scmp.ne.s32.totalorder %s125, %s139
      %p141 = scmp.eq.s32.totalorder %s33, 0
      %p142 = por %p140, %p141
      %s144 = sadd.s32 %s143, 1
      %p147 = scmp.eq.s32.totalorder %s27, 3
      %p148 = scmp.ne.s32.totalorder %s143, %s145
      %p149 = scmp.eq.s32.totalorder %s27, 0
      %p150 = por %p148, %p149
      %p151 = scmp.ne.s32.totalorder %s143, %s145
      %p152 = scmp.eq.s32.totalorder %s32, 3
      %p153 = por %p151, %p152
      %p154 = scmp.ne.s32.totalorder %s145, %s146
      %p155 = scmp.eq.s32.totalorder %s32, 0
      %p156 = por %p154, %p155
      %p157 = scmp.ne.s32.totalorder %s145, %s146
      %p158 = scmp.eq.s32.totalorder %s33, 3
      %p159 = por %p157, %p158
      %p161 = scmp.ne.s32.totalorder %s146, %s160
      %p162 = scmp.eq.s32.totalorder %s33, 0
      %p163 = por %p161, %p162
      %s165 = sadd.s32 %s164, 1
      %p168 = scmp.eq.s32.totalorder %s27, 3
      %p169 = scmp.ne.s32.totalorder %s164, %s166
      %p170 = scmp.eq.s32.totalorder %s27, 0
      %p171 = por %p169, %p170
      %p172 = scmp.ne.s32.totalorder %s164, %s166
      %p173 = scmp.eq.s32.totalorder %s32, 3
      %p174 = por %p172, %p173
      %p175 = scmp.ne.s32.totalorder %s166, %s167
      %p176 = scmp.eq.s32.totalorder %s32, 0
      %p177 = por %p175, %p176
      %p178 = scmp.ne.s32.totalorder %s166, %s167
      %p179 = scmp.eq.s32.totalorder %s33, 3
      %p180 = por %p178, %p179
      %p182 = scmp.ne.s32.totalorder %s167, %s181
      %p183 = scmp.eq.s32.totalorder %s33, 0
      %p184 = por %p182, %p183
      %s186 = sadd.s32 %s185, 1
      %p189 = scmp.eq.s32.totalorder %s27, 3
      %p190 = scmp.ne.s32.totalorder %s185, %s187
      %p191 = scmp.eq.s32.totalorder %s27, 0
      %p192 = por %p190, %p191
      %p193 = scmp.ne.s32.totalorder %s185, %s187
      %p194 = scmp.eq.s32.totalorder %s32, 3
      %p195 = por %p193, %p194
      %p196 = scmp.ne.s32.totalorder %s187, %s188
      %p197 = scmp.eq.s32.totalorder %s32, 0
      %p198 = por %p196, %p197
      %p199 = scmp.ne.s32.totalorder %s187, %s188
      %p200 = scmp.eq.s32.totalorder %s33, 3
      %p201 = por %p199, %p200
      %p203 = scmp.ne.s32.totalorder %s188, %s202
      %p204 = scmp.eq.s32.totalorder %s33, 0
      %p205 = por %p203, %p204
      %s207 = sadd.s32 %s206, 1
      %p210 = scmp.eq.s32.totalorder %s27, 3
      %p211 = scmp.ne.s32.totalorder %s206, %s208
      %p212 = scmp.eq.s32.totalorder %s27, 0
      %p213 = por %p211, %p212
      %p214 = scmp.ne.s32.totalorder %s206, %s208
      %p215 = scmp.eq.s32.totalorder %s32, 3
      %p216 = por %p214, %p215
      %p217 = scmp.ne.s32.totalorder %s208, %s209
      %p218 = scmp.eq.s32.totalorder %s32, 0
      %p219 = por %p217, %p218
      %p220 = scmp.ne.s32.totalorder %s208, %s209
      %p221 = scmp.eq.s32.totalorder %s33, 3
      %p222 = por %p220, %p221
      %p224 = scmp.ne.s32.totalorder %s209, %s223
      %p225 = scmp.eq.s32.totalorder %s33, 0
      %p226 = por %p224, %p225
      %s228 = sadd.s32 %s227, 1
      %p231 = scmp.eq.s32.totalorder %s27, 3
      %p232 = scmp.ne.s32.totalorder %s227, %s229
      %p233 = scmp.eq.s32.totalorder %s27, 0
      %p234 = por %p232, %p233
      %p235 = scmp.ne.s32.totalorder %s227, %s229
      %p236 = scmp.eq.s32.totalorder %s32, 3
      %p237 = por %p235, %p236
      %p238 = scmp.ne.s32.totalorder %s229, %s230
      %p239 = scmp.eq.s32.totalorder %s32, 0
      %p240 = por %p238, %p239
      %p241 = scmp.ne.s32.totalorder %s229, %s230
      %p242 = scmp.eq.s32.totalorder %s33, 3
      %p243 = por %p241, %p242
      %p245 = scmp.ne.s32.totalorder %s230, %s244
      %p246 = scmp.eq.s32.totalorder %s33, 0
      %p247 = por %p245, %p246
      %s249 = sadd.s32 %s248, 1
      %p252 = scmp.eq.s32.totalorder %s27, 3
      %p253 = scmp.ne.s32.totalorder %s248, %s250
      %p254 = scmp.eq.s32.totalorder %s27, 0
      %p255 = por %p253, %p254
      %p256 = scmp.ne.s32.totalorder %s248, %s250
      %p257 = scmp.eq.s32.totalorder %s32, 3
      %p258 = por %p256, %p257
      %p259 = scmp.ne.s32.totalorder %s250, %s251
      %p260 = scmp.eq.s32.totalorder %s32, 0
      %p261 = por %p259, %p260
      %p262 = scmp.ne.s32.totalorder %s250, %s251
      %p263 = scmp.eq.s32.totalorder %s33, 3
      %p264 = por %p262, %p263
      %p266 = scmp.ne.s32.totalorder %s251, %s265
      %p267 = scmp.eq.s32.totalorder %s33, 0
      %p268 = por %p266, %p267
      %s270 = sadd.s32 %s269, 1
      %p273 = scmp.eq.s32.totalorder %s27, 3
      %p274 = scmp.ne.s32.totalorder %s269, %s271
      %p275 = scmp.eq.s32.totalorder %s27, 0
      %p276 = por %p274, %p275
      %p277 = scmp.ne.s32.totalorder %s269, %s271
      %p278 = scmp.eq.s32.totalorder %s32, 3
      %p279 = por %p277, %p278
      %p280 = scmp.ne.s32.totalorder %s271, %s272
      %p281 = scmp.eq.s32.totalorder %s32, 0
      %p282 = por %p280, %p281
      %p283 = scmp.ne.s32.totalorder %s271, %s272
      %p284 = scmp.eq.s32.totalorder %s33, 3
      %p285 = por %p283, %p284
      %p287 = scmp.ne.s32.totalorder %s272, %s286
      %p288 = scmp.eq.s32.totalorder %s33, 0
      %p289 = por %p287, %p288
      %s290 = ssub.s32 %s34, %s46
      %s291 = ssub.s32 %s35, %s42
      %s292 = sor.u32 %s290, %s291
      %p293 = scmp.eq.s32.totalorder %s292, 0
      %s295 = sadd.s32 %s294, 1
      %s296 = scalar_select %p293, %s294, %s295
      %p299 = pneg %p293
      %p300 = scmp.eq.s32.totalorder %s27, 3
      %p301 = por %p299, %p300
      %p302 = scmp.ne.s32.totalorder %s294, %s297
      %p303 = scmp.eq.s32.totalorder %s27, 0
      %p304 = por %p302, %p303
      %p305 = scmp.ne.s32.totalorder %s294, %s297
      %p306 = scmp.eq.s32.totalorder %s32, 3
      %p307 = por %p305, %p306
      %p308 = scmp.ne.s32.totalorder %s297, %s298
      %p309 = scmp.eq.s32.totalorder %s32, 0
      %p310 = por %p308, %p309
      %p311 = scmp.ne.s32.totalorder %s297, %s298
      %p312 = scmp.eq.s32.totalorder %s33, 3
      %p313 = por %p311, %p312
      %p315 = scmp.ne.s32.totalorder %s298, %s314
      %p316 = scmp.eq.s32.totalorder %s33, 0
      %p317 = por %p315, %p316
      %s318 = ssub.s32 %s34, %s46
      %s319 = ssub.s32 %s35, %s42
      %s320 = sor.u32 %s318, %s319
      %p321 = scmp.eq.s32.totalorder %s320, 0
      %s323 = sadd.s32 %s322, 1
      %s324 = scalar_select %p321, %s322, %s323
      %p327 = pneg %p321
      %p328 = scmp.eq.s32.totalorder %s27, 3
      %p329 = por %p327, %p328
      %p330 = scmp.ne.s32.totalorder %s322, %s325
      %p331 = scmp.eq.s32.totalorder %s27, 0
      %p332 = por %p330, %p331
      %p333 = scmp.ne.s32.totalorder %s322, %s325
      %p334 = scmp.eq.s32.totalorder %s32, 3
      %p335 = por %p333, %p334
      %p336 = scmp.ne.s32.totalorder %s325, %s326
      %p337 = scmp.eq.s32.totalorder %s32, 0
      %p338 = por %p336, %p337
      %p339 = scmp.ne.s32.totalorder %s325, %s326
      %p340 = scmp.eq.s32.totalorder %s33, 3
      %p341 = por %p339, %p340
      %p343 = scmp.ne.s32.totalorder %s326, %s342
      %p344 = scmp.eq.s32.totalorder %s33, 0
      %p345 = por %p343, %p344
      %p346 = scmp.le.s32.totalorder 1, %s27
      %p347 = scmp.lt.s32.totalorder %s27, 5
      %p348 = pnand %p346, %p347
      %p349 = pneg %p348
      // Predicated region
      $region9: #{tpu_custom_call.1} parent=5 // pred_check
        _
      $region10: #{tpu_custom_call.1} parent=5 // pred_check_branch
        %351 = sbr.rel (%p348) target = $region12
      $region11: #{tpu_custom_call.1} parent=5 // pred_region
        %s352 = ssub.s32 %s27, 1
        // Predicated region
        $region13: #{tpu_custom_call.1} parent=11 // pred_check
          %p353 = pneg %p114
        $region14: #{tpu_custom_call.1} parent=11 // pred_check_branch
          %355 = sbr.rel (%p353) target = $region16
        $region15: #{tpu_custom_call.1} parent=11 // pred_region
          _
        $region16: #{tpu_custom_call.1} parent=11 // pred_fallthru
          _
        // Predicated region
        $region17: #{tpu_custom_call.1} parent=11 // pred_check
          %p356 = pneg %p135
        $region18: #{tpu_custom_call.1} parent=11 // pred_check_branch
          %358 = sbr.rel (%p356) target = $region20
        $region19: #{tpu_custom_call.1} parent=11 // pred_region
          _
        $region20: #{tpu_custom_call.1} parent=11 // pred_fallthru
          _
        // Predicated region
        $region21: #{tpu_custom_call.1} parent=11 // pred_check
          %p359 = pneg %p156
        $region22: #{tpu_custom_call.1} parent=11 // pred_check_branch
          %361 = sbr.rel (%p359) target = $region24
        $region23: #{tpu_custom_call.1} parent=11 // pred_region
          _
        $region24: #{tpu_custom_call.1} parent=11 // pred_fallthru
          _
        // Predicated region
        $region25: #{tpu_custom_call.1} parent=11 // pred_check
          %p362 = pneg %p177
        $region26: #{tpu_custom_call.1} parent=11 // pred_check_branch
          %364 = sbr.rel (%p362) target = $region28
        $region27: #{tpu_custom_call.1} parent=11 // pred_region
          _
        $region28: #{tpu_custom_call.1} parent=11 // pred_fallthru
          _
        // Predicated region
        $region29: #{tpu_custom_call.1} parent=11 // pred_check
          %p365 = pneg %p198
        $region30: #{tpu_custom_call.1} parent=11 // pred_check_branch
          %367 = sbr.rel (%p365) target = $region32
        $region31: #{tpu_custom_call.1} parent=11 // pred_region
          _
        $region32: #{tpu_custom_call.1} parent=11 // pred_fallthru
          _
        // Predicated region
        $region33: #{tpu_custom_call.1} parent=11 // pred_check
          %p368 = pneg %p219
        $region34: #{tpu_custom_call.1} parent=11 // pred_check_branch
          %370 = sbr.rel (%p368) target = $region36
        $region35: #{tpu_custom_call.1} parent=11 // pred_region
          _
        $region36: #{tpu_custom_call.1} parent=11 // pred_fallthru
          _
        // Predicated region
        $region37: #{tpu_custom_call.1} parent=11 // pred_check
          %p371 = pneg %p240
        $region38: #{tpu_custom_call.1} parent=11 // pred_check_branch
          %373 = sbr.rel (%p371) target = $region40
        $region39: #{tpu_custom_call.1} parent=11 // pred_region
          _
        $region40: #{tpu_custom_call.1} parent=11 // pred_fallthru
          _
        // Predicated region
        $region41: #{tpu_custom_call.1} parent=11 // pred_check
          %p374 = pneg %p261
        $region42: #{tpu_custom_call.1} parent=11 // pred_check_branch
          %376 = sbr.rel (%p374) target = $region44
        $region43: #{tpu_custom_call.1} parent=11 // pred_region
          %s378 = ssub.s32 16, 16
          %379 = vsyncadd [#allocation5], %s378
          %s381 = sshll.u32 %s9, 4
          %s382 = int_to_ptr.vmem [resolvable:$true] %s381
          %384 = dma.vmem_to_smem %s382, 16, [#allocation3], [#allocation5]
        $region44: #{tpu_custom_call.1} parent=11 // pred_fallthru
          _
        // Predicated region
        $region45: #{tpu_custom_call.1} parent=11 // pred_check
          %p385 = pneg %p282
        $region46: #{tpu_custom_call.1} parent=11 // pred_check_branch
          %387 = sbr.rel (%p385) target = $region48
        $region47: #{tpu_custom_call.1} parent=11 // pred_region
          _
        $region48: #{tpu_custom_call.1} parent=11 // pred_fallthru
          _
      $region12: #{tpu_custom_call.1} parent=5 // pred_fallthru
        _
      %p388 = scmp.lt.s32.totalorder %s27, 4
      // Predicated region
      $region49: #{tpu_custom_call.1} parent=5 // pred_check
        %p389 = pneg %p388
      $region50: #{tpu_custom_call.1} parent=5 // pred_check_branch
        %391 = sbr.rel (%p389) target = $region52
      $region51: #{tpu_custom_call.1} parent=5 // pred_region
        // Predicated region
        $region53: #{tpu_custom_call.1} parent=51 // pred_check
          %p392 = pneg %p61
        $region54: #{tpu_custom_call.1} parent=51 // pred_check_branch
          %394 = sbr.rel (%p392) target = $region56
        $region55: #{tpu_custom_call.1} parent=51 // pred_region
          %p395 = scmp.lt.s32.totalorder %s34, 1
          %s396 = scalar_select %p395, %s34, 1
          %p397 = scmp.lt.s32.totalorder %s35, 1
          %s398 = scalar_select %p397, %s35, 1
          %s399 = smul.addr %s396, 2
          %s400 = sadd.s32 %s398, %s399
          %s401 = smul.addr %s400, 8
          %s402 = scalar_lea.vmem %s0, %s401
        $region56: #{tpu_custom_call.1} parent=51 // pred_fallthru
          _
        // Predicated region
        $region57: #{tpu_custom_call.1} parent=51 // pred_check
          %p403 = pneg %p87
        $region58: #{tpu_custom_call.1} parent=51 // pred_check_branch
          %405 = sbr.rel (%p403) target = $region60
        $region59: #{tpu_custom_call.1} parent=51 // pred_region
          %p406 = scmp.lt.s32.totalorder %s34, 1
          %s407 = scalar_select %p406, %s34, 1
          %s408 = smul.addr %s407, 2
          %s409 = smul.addr %s408, 8
          %s410 = scalar_lea.vmem %s1, %s409
        $region60: #{tpu_custom_call.1} parent=51 // pred_fallthru
          _
      $region52: #{tpu_custom_call.1} parent=5 // pred_fallthru
        _
      %p411 = scmp.le.s32.totalorder 1, %s27
      %p412 = scmp.lt.s32.totalorder %s27, 5
      %p413 = pnand %p411, %p412
      %p414 = pneg %p413
      // Predicated region
      $region61: #{tpu_custom_call.1} parent=5 // pred_check
        _
      $region62: #{tpu_custom_call.1} parent=5 // pred_check_branch
        %416 = sbr.rel (%p413) target = $region64
      $region63: #{tpu_custom_call.1} parent=5 // pred_region
        %s417 = ssub.s32 %s27, 1
        // Predicated region
        $region65: #{tpu_custom_call.1} parent=63 // pred_check
          %p418 = pneg %p261
        $region66: #{tpu_custom_call.1} parent=63 // pred_check_branch
          %420 = sbr.rel (%p418) target = $region68
        $region67: #{tpu_custom_call.1} parent=63 // pred_region
          %421 = dma.done [#allocation5], 16
        $region68: #{tpu_custom_call.1} parent=63 // pred_fallthru
          _
        %422 = sfence
        %p423 = scmp.lt.s32.totalorder %s36, 1
        %s424 = scalar_select %p423, %s36, 1
        %p425 = scmp.lt.s32.totalorder %s37, 1
        %s426 = scalar_select %p425, %s37, 1
        %s427 = smul.addr %s424, 2
        %s428 = sadd.s32 %s426, %s427
        %s429 = smul.addr %s428, 8
        %s430 = scalar_lea.vmem %s0, %s429
        %p431 = pneg %p67
        %p432 = pneg %p64
        %p433 = scmp.lt.s32.totalorder %s36, 1
        %s434 = scalar_select %p433, %s36, 1
        %s435 = smul.addr %s434, 2
        %s436 = smul.addr %s435, 8
        %s437 = scalar_lea.vmem %s1, %s436
        %p438 = pneg %p93
        %p439 = pneg %p90
        %p440 = pneg %p114
        %p441 = pneg %p111
        %p442 = pneg %p135
        %p443 = pneg %p132
        %p444 = pneg %p156
        %p445 = pneg %p153
        %p446 = pneg %p177
        %p447 = pneg %p174
        %p448 = pneg %p198
        %p449 = pneg %p195
        %p450 = pneg %p219
        %p451 = pneg %p216
        %p452 = pneg %p240
        %p453 = pneg %p237
        %p454 = pneg %p261
        %p455 = pneg %p258
        %p456 = pneg %p282
        %p457 = pneg %p279
        %p458 = pneg %p310
        %p459 = pneg %p307
        %s460 = sand.u32 %s297, 1
        %s461 = scalar_lea.sflag [#allocation4], %s460
        %s462 = sand.u32 %s297, 1
        %s463 = smul.addr %s462, 8
        %s464 = scalar_lea.vmem [#allocation6], %s463
        %p465 = pneg %p338
        %p466 = pneg %p335
        %s467 = sand.u32 %s325, 1
        %s468 = scalar_lea.sflag [#allocation8], %s467
        %s469 = sand.u32 %s325, 1
        %s470 = smul.addr %s469, 256
        %s471 = scalar_lea.vmem [#allocation7], %s470
        %p472 = scmp.lt.s32.totalorder %s36, 1
        %s473 = scalar_select %p472, %s36, 1
        %p474 = scmp.lt.s32.totalorder %s37, 1
        %s475 = scalar_select %p474, %s37, 1
        %s476 = smul.addr %s473, 2
        %s477 = sadd.s32 %s475, %s476
        %s478 = smul.addr %s477, 8
        %s479 = scalar_lea.vmem %s0, %s478
        %p480 = scmp.lt.s32.totalorder %s36, 1
        %s481 = scalar_select %p480, %s36, 1
        %s482 = smul.addr %s481, 2
        %s483 = smul.addr %s482, 8
        %s484 = scalar_lea.vmem %s1, %s483
        %s485 = smul.u32 16, %s37
        %v486 = vld [vmem:[%s479] sm:$0xff]
        %v487 = vld [vmem:[%s484] sm:$0xff]
        %v488 = vld [vmem:[%s484 + $0x8] sm:$0xff]
        %489 = vxpose.xlu0.b32.start [1/16] %v486, 128
        %490 = vxpose.xlu0.b32.cont [2/16] 0.0, 128
        %491 = vxpose.xlu0.b32.cont [3/16] 0.0, 128
        %492 = vxpose.xlu0.b32.cont [4/16] 0.0, 128
        %493 = vxpose.xlu0.b32.cont [5/16] 0.0, 128
        %494 = vxpose.xlu0.b32.cont [6/16] 0.0, 128
        %495 = vxpose.xlu0.b32.cont [7/16] 0.0, 128
        %496 = vxpose.xlu0.b32.cont [8/16] 0.0, 128
        %497 = vxpose.xlu0.b32.cont [9/16] 0.0, 128
        %498 = vxpose.xlu0.b32.cont [10/16] 0.0, 128
        %499 = vxpose.xlu0.b32.cont [11/16] 0.0, 128
        %500 = vxpose.xlu0.b32.cont [12/16] 0.0, 128
        %501 = vxpose.xlu0.b32.cont [13/16] 0.0, 128
        %502 = vxpose.xlu0.b32.cont [14/16] 0.0, 128
        %503 = vxpose.xlu0.b32.cont [15/16] 0.0, 128
        %504 = vxpose.xlu0.b32.end [16/16] 0.0, 128
        %v505 = vpop.trf.xlu0
        %v506 = vpop.trf.xlu0
        %v507 = vpop.trf.xlu0
        %v508 = vpop.trf.xlu0
        %v509 = vpop.trf.xlu0
        %v510 = vpop.trf.xlu0
        %v511 = vpop.trf.xlu0
        %v512 = vpop.trf.xlu0
        %v513 = vpop.trf.xlu0
        %v514 = vpop.trf.xlu0
        %v515 = vpop.trf.xlu0
        %v516 = vpop.trf.xlu0
        %v517 = vpop.trf.xlu0
        %v518 = vpop.trf.xlu0
        %v519 = vpop.trf.xlu0
        %v520 = vpop.trf.xlu0
        %v521 = vld [vmem:[%s2] sm:$0xff]
        %v522 = vld [vmem:[%s4] sm:$0x1]
        %v524 = vlaneseq
        %v525 = vshrl.u32 %v524, 7
        %v526 = vsub.s32 0, %v525
        %v527 = vrot.slane %v522, %v526
        %vm529 = vcmask 64512
        %v531 = vsel %vm529, %v505, 0
        %v534 = vsel %vm529, %v506, 0
        %v537 = vsel %vm529, %v507, 0
        %v540 = vsel %vm529, %v508, 0
        %v543 = vsel %vm529, %v509, 0
        %v546 = vsel %vm529, %v510, 0
        %v549 = vsel %vm529, %v511, 0
        %v552 = vsel %vm529, %v512, 0
        %v555 = vsel %vm529, %v513, 0
        %v558 = vsel %vm529, %v514, 0
        %v561 = vsel %vm529, %v515, 0
        %v564 = vsel %vm529, %v516, 0
        %v567 = vsel %vm529, %v517, 0
        %v570 = vsel %vm529, %v518, 0
        %v573 = vsel %vm529, %v519, 0
        %v576 = vsel %vm529, %v520, 0
        %578 = vmatprep.subr.mxu0 0.0
        %579 = vmatpush1.msra.mxu0 0.0
        %580 = vmatprep.subr.mxu0 0.0
        %581 = vmatpush1.msra.mxu0 0.0
        %582 = vmatprep.subr.mxu0 0.0
        %583 = vmatpush1.msra.mxu0 0.0
        %584 = vmatprep.subr.mxu0 0.0
        %585 = vmatpush1.msra.mxu0 0.0
        %586 = vmatprep.subr.mxu0 0.0
        %587 = vmatpush1.msra.mxu0 0.0
        %588 = vmatprep.subr.mxu0 0.0
        %589 = vmatpush1.msra.mxu0 0.0
        %590 = vmatprep.subr.mxu0 0.0
        %591 = vmatpush1.msra.mxu0 0.0
        %592 = vmatprep.subr.mxu0 0.0
        %593 = vmatpush1.msra.mxu0 0.0
        %594 = vmatprep.subr.mxu0 0.0
        %595 = vmatpush1.msra.mxu0 0.0
        %596 = vmatprep.subr.mxu0 0.0
        %597 = vmatpush1.msra.mxu0 0.0
        %598 = vmatprep.subr.mxu0 0.0
        %599 = vmatpush1.msra.mxu0 0.0
        %600 = vmatprep.subr.mxu0 0.0
        %601 = vmatpush1.msra.mxu0 0.0
        %602 = vmatprep.subr.mxu0 0.0
        %603 = vmatpush1.msra.mxu0 0.0
        %604 = vmatprep.subr.mxu0 0.0
        %605 = vmatpush1.msra.mxu0 0.0
        %606 = vmatprep.subr.mxu0 0.0
        %607 = vmatpush1.msra.mxu0 0.0
        %608 = vmatprep.subr.mxu0 0.0
        %609 = vmatpush1.msra.mxu0 %v521
        %610 = vmatprep.subr.mxu0 0.0
        %611 = vmatpush2.msra.mxu0 0.0
        %612 = vmatprep.subr.mxu0 0.0
        %613 = vmatpush2.msra.mxu0 0.0
        %614 = vmatprep.subr.mxu0 0.0
        %615 = vmatpush2.msra.mxu0 0.0
        %616 = vmatprep.subr.mxu0 0.0
        %617 = vmatpush2.msra.mxu0 0.0
        %618 = vmatprep.subr.mxu0 0.0
        %619 = vmatpush2.msra.mxu0 0.0
        %620 = vmatprep.subr.mxu0 0.0
        %621 = vmatpush2.msra.mxu0 0.0
        %622 = vmatprep.subr.mxu0 0.0
        %623 = vmatpush2.msra.mxu0 0.0
        %624 = vmatprep.subr.mxu0 0.0
        %625 = vmatpush2.msra.mxu0 0.0
        %626 = vmatprep.subr.mxu0 0.0
        %627 = vmatpush2.msra.mxu0 0.0
        %628 = vmatprep.subr.mxu0 0.0
        %629 = vmatpush2.msra.mxu0 0.0
        %630 = vmatprep.subr.mxu0 0.0
        %631 = vmatpush2.msra.mxu0 0.0
        %632 = vmatprep.subr.mxu0 0.0
        %633 = vmatpush2.msra.mxu0 0.0
        %634 = vmatprep.subr.mxu0 0.0
        %635 = vmatpush2.msra.mxu0 0.0
        %636 = vmatprep.subr.mxu0 0.0
        %637 = vmatpush2.msra.mxu0 0.0
        %638 = vmatprep.subr.mxu0 0.0
        %639 = vmatpush2.msra.mxu0 0.0
        %640 = vmatprep.subr.mxu0 0.0
        %641 = vmatpush2.msra.mxu0 0.0
        %642 = vmatprep.mubr.f32.mxu0 0.0
        %643 = vmatmul.mubr.f32.gmra.mxu0 %v531
        %v644 = vpop.f32.mrf.mxu0
        %v645 = vadd.f32 %v527, %v644
        %v646 = vpop.f32.mrf.mxu0
        %647 = vmatprep.mubr.f32.mxu0 0.0
        %648 = vmatmul.mubr.f32.gmra.mxu0 %v534
        %v649 = vpop.f32.mrf.mxu0
        %v650 = vadd.f32 %v527, %v649
        %v651 = vpop.f32.mrf.mxu0
        %652 = vmatprep.mubr.f32.mxu0 0.0
        %653 = vmatmul.mubr.f32.gmra.mxu0 %v537
        %v654 = vpop.f32.mrf.mxu0
        %v655 = vadd.f32 %v527, %v654
        %v656 = vpop.f32.mrf.mxu0
        %657 = vmatprep.mubr.f32.mxu0 0.0
        %658 = vmatmul.mubr.f32.gmra.mxu0 %v540
        %v659 = vpop.f32.mrf.mxu0
        %v660 = vadd.f32 %v527, %v659
        %v661 = vpop.f32.mrf.mxu0
        %662 = vmatprep.mubr.f32.mxu0 0.0
        %663 = vmatmul.mubr.f32.gmra.mxu0 %v543
        %v664 = vpop.f32.mrf.mxu0
        %v665 = vadd.f32 %v527, %v664
        %v666 = vpop.f32.mrf.mxu0
        %667 = vmatprep.mubr.f32.mxu0 0.0
        %668 = vmatmul.mubr.f32.gmra.mxu0 %v546
        %v669 = vpop.f32.mrf.mxu0
        %v670 = vadd.f32 %v527, %v669
        %v671 = vpop.f32.mrf.mxu0
        %672 = vmatprep.mubr.f32.mxu0 0.0
        %673 = vmatmul.mubr.f32.gmra.mxu0 %v549
        %v674 = vpop.f32.mrf.mxu0
        %v675 = vadd.f32 %v527, %v674
        %v676 = vpop.f32.mrf.mxu0
        %677 = vmatprep.mubr.f32.mxu0 0.0
        %678 = vmatmul.mubr.f32.gmra.mxu0 %v552
        %v679 = vpop.f32.mrf.mxu0
        %v680 = vadd.f32 %v527, %v679
        %v681 = vpop.f32.mrf.mxu0
        %682 = vmatprep.mubr.f32.mxu0 0.0
        %683 = vmatmul.mubr.f32.gmra.mxu0 %v555
        %v684 = vpop.f32.mrf.mxu0
        %v685 = vadd.f32 %v527, %v684
        %v686 = vpop.f32.mrf.mxu0
        %687 = vmatprep.mubr.f32.mxu0 0.0
        %688 = vmatmul.mubr.f32.gmra.mxu0 %v558
        %v689 = vpop.f32.mrf.mxu0
        %v690 = vadd.f32 %v527, %v689
        %v691 = vpop.f32.mrf.mxu0
        %692 = vmatprep.mubr.f32.mxu0 0.0
        %693 = vmatmul.mubr.f32.gmra.mxu0 %v561
        %v694 = vpop.f32.mrf.mxu0
        %v695 = vadd.f32 %v527, %v694
        %v696 = vpop.f32.mrf.mxu0
        %697 = vmatprep.mubr.f32.mxu0 0.0
        %698 = vmatmul.mubr.f32.gmra.mxu0 %v564
        %v699 = vpop.f32.mrf.mxu0
        %v700 = vadd.f32 %v527, %v699
        %v701 = vpop.f32.mrf.mxu0
        %702 = vmatprep.mubr.f32.mxu0 0.0
        %703 = vmatmul.mubr.f32.gmra.mxu0 %v567
        %v704 = vpop.f32.mrf.mxu0
        %v705 = vadd.f32 %v527, %v704
        %v706 = vpop.f32.mrf.mxu0
        %707 = vmatprep.mubr.f32.mxu0 0.0
        %708 = vmatmul.mubr.f32.gmra.mxu0 %v570
        %v709 = vpop.f32.mrf.mxu0
        %v710 = vadd.f32 %v527, %v709
        %v711 = vpop.f32.mrf.mxu0
        %712 = vmatprep.mubr.f32.mxu0 0.0
        %713 = vmatmul.mubr.f32.gmra.mxu0 %v573
        %v714 = vpop.f32.mrf.mxu0
        %v715 = vadd.f32 %v527, %v714
        %v716 = vpop.f32.mrf.mxu0
        %717 = vmatprep.mubr.f32.mxu0 0.0
        %718 = vmatmul.mubr.f32.gmra.mxu0 %v576
        %v719 = vpop.f32.mrf.mxu0
        %v720 = vadd.f32 %v527, %v719
        %v721 = vpop.f32.mrf.mxu0
        %722 = vdwg.mxu0
        %v723 = vld [vmem:[%s3] sm:$0xff]
        %v724 = vld [vmem:[%s3 + $0x8] sm:$0xff]
        %v726 = vsel %vm529, %v723, 0
        %v729 = vsel %vm529, %v724, 0
        %731 = vmatprep.subr.mxu0 0.0
        %732 = vmatpush1.msra.mxu0 0.0
        %733 = vmatprep.subr.mxu0 0.0
        %734 = vmatpush1.msra.mxu0 0.0
        %735 = vmatprep.subr.mxu0 0.0
        %736 = vmatpush1.msra.mxu0 0.0
        %737 = vmatprep.subr.mxu0 0.0
        %738 = vmatpush1.msra.mxu0 0.0
        %739 = vmatprep.subr.mxu0 0.0
        %740 = vmatpush1.msra.mxu0 0.0
        %741 = vmatprep.subr.mxu0 0.0
        %742 = vmatpush1.msra.mxu0 0.0
        %743 = vmatprep.subr.mxu0 0.0
        %744 = vmatpush1.msra.mxu0 0.0
        %745 = vmatprep.subr.mxu0 0.0
        %746 = vmatpush1.msra.mxu0 0.0
        %747 = vmatprep.subr.mxu0 0.0
        %748 = vmatpush1.msra.mxu0 0.0
        %749 = vmatprep.subr.mxu0 0.0
        %750 = vmatpush1.msra.mxu0 0.0
        %751 = vmatprep.subr.mxu0 0.0
        %752 = vmatpush1.msra.mxu0 0.0
        %753 = vmatprep.subr.mxu0 0.0
        %754 = vmatpush1.msra.mxu0 0.0
        %755 = vmatprep.subr.mxu0 0.0
        %756 = vmatpush1.msra.mxu0 0.0
        %757 = vmatprep.subr.mxu0 0.0
        %758 = vmatpush1.msra.mxu0 0.0
        %759 = vmatprep.subr.mxu0 0.0
        %760 = vmatpush1.msra.mxu0 0.0
        %761 = vmatprep.subr.mxu0 %v488
        %762 = vmatpush1.msra.mxu0 %v487
        %763 = vmatprep.subr.mxu0 0.0
        %764 = vmatpush2.msra.mxu0 0.0
        %765 = vmatprep.subr.mxu0 0.0
        %766 = vmatpush2.msra.mxu0 0.0
        %767 = vmatprep.subr.mxu0 0.0
        %768 = vmatpush2.msra.mxu0 0.0
        %769 = vmatprep.subr.mxu0 0.0
        %770 = vmatpush2.msra.mxu0 0.0
        %771 = vmatprep.subr.mxu0 0.0
        %772 = vmatpush2.msra.mxu0 0.0
        %773 = vmatprep.subr.mxu0 0.0
        %774 = vmatpush2.msra.mxu0 0.0
        %775 = vmatprep.subr.mxu0 0.0
        %776 = vmatpush2.msra.mxu0 0.0
        %777 = vmatprep.subr.mxu0 0.0
        %778 = vmatpush2.msra.mxu0 0.0
        %779 = vmatprep.subr.mxu0 0.0
        %780 = vmatpush2.msra.mxu0 0.0
        %781 = vmatprep.subr.mxu0 0.0
        %782 = vmatpush2.msra.mxu0 0.0
        %783 = vmatprep.subr.mxu0 0.0
        %784 = vmatpush2.msra.mxu0 0.0
        %785 = vmatprep.subr.mxu0 0.0
        %786 = vmatpush2.msra.mxu0 0.0
        %787 = vmatprep.subr.mxu0 0.0
        %788 = vmatpush2.msra.mxu0 0.0
        %789 = vmatprep.subr.mxu0 0.0
        %790 = vmatpush2.msra.mxu0 0.0
        %791 = vmatprep.subr.mxu0 0.0
        %792 = vmatpush2.msra.mxu0 0.0
        %793 = vmatprep.subr.mxu0 0.0
        %794 = vmatpush2.msra.mxu0 0.0
        %795 = vmatprep.mubr.f32.mxu0 0.0
        %796 = vmatmul.mubr.f32.gmra.mxu0 %v726
        %v797 = vpop.f32.mrf.mxu0
        %v798 = vadd.f32 0.0, %v797
        %v799 = vpop.f32.mrf.mxu0
        %v800 = vadd.f32 0.0, %v799
        %801 = vmatprep.mubr.f32.mxu0 0.0
        %802 = vmatmul.mubr.f32.gmra.mxu0 %v729
        %v803 = vpop.f32.mrf.mxu0
        %v804 = vadd.f32 0.0, %v803
        %v805 = vpop.f32.mrf.mxu0
        %v806 = vadd.f32 0.0, %v805
        %807 = vdwg.mxu0
        %s808 = sld [smem:[#allocation3]]
        %810 = vset.pattern.permute.xlu0 0
        %811 = vperm.xlu0 %810, %v645
        %v812 = vpop.permute.xlu0 %811
        %815 = vset.pattern.permute.xlu0 0
        %816 = vperm.xlu0 %815, %v650
        %v817 = vpop.permute.xlu0 %816
        %820 = vset.pattern.permute.xlu0 0
        %821 = vperm.xlu0 %820, %v655
        %v822 = vpop.permute.xlu0 %821
        %825 = vset.pattern.permute.xlu0 0
        %826 = vperm.xlu0 %825, %v660
        %v827 = vpop.permute.xlu0 %826
        %830 = vset.pattern.permute.xlu0 0
        %831 = vperm.xlu0 %830, %v665
        %v832 = vpop.permute.xlu0 %831
        %835 = vset.pattern.permute.xlu0 0
        %836 = vperm.xlu0 %835, %v670
        %v837 = vpop.permute.xlu0 %836
        %840 = vset.pattern.permute.xlu0 0
        %841 = vperm.xlu0 %840, %v675
        %v842 = vpop.permute.xlu0 %841
        %845 = vset.pattern.permute.xlu0 0
        %846 = vperm.xlu0 %845, %v680
        %v847 = vpop.permute.xlu0 %846
        %850 = vset.pattern.permute.xlu0 0
        %851 = vperm.xlu0 %850, %v685
        %v852 = vpop.permute.xlu0 %851
        %855 = vset.pattern.permute.xlu0 0
        %856 = vperm.xlu0 %855, %v690
        %v857 = vpop.permute.xlu0 %856
        %860 = vset.pattern.permute.xlu0 0
        %861 = vperm.xlu0 %860, %v695
        %v862 = vpop.permute.xlu0 %861
        %865 = vset.pattern.permute.xlu0 0
        %866 = vperm.xlu0 %865, %v700
        %v867 = vpop.permute.xlu0 %866
        %870 = vset.pattern.permute.xlu0 0
        %871 = vperm.xlu0 %870, %v705
        %v872 = vpop.permute.xlu0 %871
        %875 = vset.pattern.permute.xlu0 0
        %876 = vperm.xlu0 %875, %v710
        %v877 = vpop.permute.xlu0 %876
        %880 = vset.pattern.permute.xlu0 0
        %881 = vperm.xlu0 %880, %v715
        %v882 = vpop.permute.xlu0 %881
        %885 = vset.pattern.permute.xlu0 0
        %886 = vperm.xlu0 %885, %v720
        %v887 = vpop.permute.xlu0 %886
        %v889 = vlaneseq
        %v890 = vshrl.u32 %v889, 7
        %v891 = vsub.s32 0, %v890
        %v892 = vrot.slane %v798, %v891
        %v893 = vlaneseq
        %v894 = vshrl.u32 %v893, 7
        %v895 = vsub.s32 0, %v894
        %v896 = vrot.slane %v800, %v895
        %v897 = vadd.f32 %v812, %v892
        %v898 = vadd.f32 %v812, %v896
        %v899 = vadd.f32 %v817, %v892
        %v900 = vadd.f32 %v817, %v896
        %v901 = vadd.f32 %v822, %v892
        %v902 = vadd.f32 %v822, %v896
        %v903 = vadd.f32 %v827, %v892
        %v904 = vadd.f32 %v827, %v896
        %v905 = vadd.f32 %v832, %v892
        %v906 = vadd.f32 %v832, %v896
        %v907 = vadd.f32 %v837, %v892
        %v908 = vadd.f32 %v837, %v896
        %v909 = vadd.f32 %v842, %v892
        %v910 = vadd.f32 %v842, %v896
        %v911 = vadd.f32 %v847, %v892
        %v912 = vadd.f32 %v847, %v896
        %v913 = vadd.f32 %v852, %v892
        %v914 = vadd.f32 %v852, %v896
        %v915 = vadd.f32 %v857, %v892
        %v916 = vadd.f32 %v857, %v896
        %v917 = vadd.f32 %v862, %v892
        %v918 = vadd.f32 %v862, %v896
        %v919 = vadd.f32 %v867, %v892
        %v920 = vadd.f32 %v867, %v896
        %v921 = vadd.f32 %v872, %v892
        %v922 = vadd.f32 %v872, %v896
        %v923 = vadd.f32 %v877, %v892
        %v924 = vadd.f32 %v877, %v896
        %v925 = vadd.f32 %v882, %v892
        %v926 = vadd.f32 %v882, %v896
        %v927 = vadd.f32 %v887, %v892
        %v928 = vadd.f32 %v887, %v896
        %v929 = vtanh.pop %v897
        %v930 = vtanh.pop %v898
        %v931 = vtanh.pop %v899
        %v932 = vtanh.pop %v900
        %v933 = vtanh.pop %v901
        %v934 = vtanh.pop %v902
        %v935 = vtanh.pop %v903
        %v936 = vtanh.pop %v904
        %v937 = vtanh.pop %v905
        %v938 = vtanh.pop %v906
        %v939 = vtanh.pop %v907
        %v940 = vtanh.pop %v908
        %v941 = vtanh.pop %v909
        %v942 = vtanh.pop %v910
        %v943 = vtanh.pop %v911
        %v944 = vtanh.pop %v912
        %v945 = vtanh.pop %v913
        %v946 = vtanh.pop %v914
        %v947 = vtanh.pop %v915
        %v948 = vtanh.pop %v916
        %v949 = vtanh.pop %v917
        %v950 = vtanh.pop %v918
        %v951 = vtanh.pop %v919
        %v952 = vtanh.pop %v920
        %v953 = vtanh.pop %v921
        %v954 = vtanh.pop %v922
        %v955 = vtanh.pop %v923
        %v956 = vtanh.pop %v924
        %v957 = vtanh.pop %v925
        %v958 = vtanh.pop %v926
        %v959 = vtanh.pop %v927
        %v960 = vtanh.pop %v928
        %v961 = vstv %s808
        %v962 = vmul.f32 %v961, %v929
        %v963 = vmul.f32 %v961, %v930
        %v964 = vmul.f32 %v961, %v931
        %v965 = vmul.f32 %v961, %v932
        %v966 = vmul.f32 %v961, %v933
        %v967 = vmul.f32 %v961, %v934
        %v968 = vmul.f32 %v961, %v935
        %v969 = vmul.f32 %v961, %v936
        %v970 = vmul.f32 %v961, %v937
        %v971 = vmul.f32 %v961, %v938
        %v972 = vmul.f32 %v961, %v939
        %v973 = vmul.f32 %v961, %v940
        %v974 = vmul.f32 %v961, %v941
        %v975 = vmul.f32 %v961, %v942
        %v976 = vmul.f32 %v961, %v943
        %v977 = vmul.f32 %v961, %v944
        %v978 = vmul.f32 %v961, %v945
        %v979 = vmul.f32 %v961, %v946
        %v980 = vmul.f32 %v961, %v947
        %v981 = vmul.f32 %v961, %v948
        %v982 = vmul.f32 %v961, %v949
        %v983 = vmul.f32 %v961, %v950
        %v984 = vmul.f32 %v961, %v951
        %v985 = vmul.f32 %v961, %v952
        %v986 = vmul.f32 %v961, %v953
        %v987 = vmul.f32 %v961, %v954
        %v988 = vmul.f32 %v961, %v955
        %v989 = vmul.f32 %v961, %v956
        %v990 = vmul.f32 %v961, %v957
        %v991 = vmul.f32 %v961, %v958
        %v992 = vmul.f32 %v961, %v959
        %v993 = vmul.f32 %v961, %v960
        %v994 = vadd.f32 %v962, 0.0
        %v995 = vadd.f32 %v963, 0.0
        %v996 = vadd.f32 %v964, 0.0
        %v997 = vadd.f32 %v965, 0.0
        %v998 = vadd.f32 %v966, 0.0
        %v999 = vadd.f32 %v967, 0.0
        %v1000 = vadd.f32 %v968, 0.0
        %v1001 = vadd.f32 %v969, 0.0
        %v1002 = vadd.f32 %v970, 0.0
        %v1003 = vadd.f32 %v971, 0.0
        %v1004 = vadd.f32 %v972, 0.0
        %v1005 = vadd.f32 %v973, 0.0
        %v1006 = vadd.f32 %v974, 0.0
        %v1007 = vadd.f32 %v975, 0.0
        %v1008 = vadd.f32 %v976, 0.0
        %v1009 = vadd.f32 %v977, 0.0
        %v1010 = vadd.f32 %v978, 0.0
        %v1011 = vadd.f32 %v979, 0.0
        %v1012 = vadd.f32 %v980, 0.0
        %v1013 = vadd.f32 %v981, 0.0
        %v1014 = vadd.f32 %v982, 0.0
        %v1015 = vadd.f32 %v983, 0.0
        %v1016 = vadd.f32 %v984, 0.0
        %v1017 = vadd.f32 %v985, 0.0
        %v1018 = vadd.f32 %v986, 0.0
        %v1019 = vadd.f32 %v987, 0.0
        %v1020 = vadd.f32 %v988, 0.0
        %v1021 = vadd.f32 %v989, 0.0
        %v1022 = vadd.f32 %v990, 0.0
        %v1023 = vadd.f32 %v991, 0.0
        %v1024 = vadd.f32 %v992, 0.0
        %v1025 = vadd.f32 %v993, 0.0
        %s1026 = sld [smem:[#allocation3 + $0x1]]
        %1027 = vset.pattern.permute.xlu0 1
        %1028 = vperm.xlu0 %1027, %v645
        %v1029 = vpop.permute.xlu0 %1028
        %1031 = vset.pattern.permute.xlu0 1
        %1032 = vperm.xlu0 %1031, %v650
        %v1033 = vpop.permute.xlu0 %1032
        %1035 = vset.pattern.permute.xlu0 1
        %1036 = vperm.xlu0 %1035, %v655
        %v1037 = vpop.permute.xlu0 %1036
        %1039 = vset.pattern.permute.xlu0 1
        %1040 = vperm.xlu0 %1039, %v660
        %v1041 = vpop.permute.xlu0 %1040
        %1043 = vset.pattern.permute.xlu0 1
        %1044 = vperm.xlu0 %1043, %v665
        %v1045 = vpop.permute.xlu0 %1044
        %1047 = vset.pattern.permute.xlu0 1
        %1048 = vperm.xlu0 %1047, %v670
        %v1049 = vpop.permute.xlu0 %1048
        %1051 = vset.pattern.permute.xlu0 1
        %1052 = vperm.xlu0 %1051, %v675
        %v1053 = vpop.permute.xlu0 %1052
        %1055 = vset.pattern.permute.xlu0 1
        %1056 = vperm.xlu0 %1055, %v680
        %v1057 = vpop.permute.xlu0 %1056
        %1059 = vset.pattern.permute.xlu0 1
        %1060 = vperm.xlu0 %1059, %v685
        %v1061 = vpop.permute.xlu0 %1060
        %1063 = vset.pattern.permute.xlu0 1
        %1064 = vperm.xlu0 %1063, %v690
        %v1065 = vpop.permute.xlu0 %1064
        %1067 = vset.pattern.permute.xlu0 1
        %1068 = vperm.xlu0 %1067, %v695
        %v1069 = vpop.permute.xlu0 %1068
        %1071 = vset.pattern.permute.xlu0 1
        %1072 = vperm.xlu0 %1071, %v700
        %v1073 = vpop.permute.xlu0 %1072
        %1075 = vset.pattern.permute.xlu0 1
        %1076 = vperm.xlu0 %1075, %v705
        %v1077 = vpop.permute.xlu0 %1076
        %1079 = vset.pattern.permute.xlu0 1
        %1080 = vperm.xlu0 %1079, %v710
        %v1081 = vpop.permute.xlu0 %1080
        %1083 = vset.pattern.permute.xlu0 1
        %1084 = vperm.xlu0 %1083, %v715
        %v1085 = vpop.permute.xlu0 %1084
        %1087 = vset.pattern.permute.xlu0 1
        %1088 = vperm.xlu0 %1087, %v720
        %v1089 = vpop.permute.xlu0 %1088
        %v1091 = vlaneseq
        %v1092 = vshrl.u32 %v1091, 7
        %v1093 = vsub.s32 1, %v1092
        %v1094 = vrot.slane %v798, %v1093
        %v1095 = vlaneseq
        %v1096 = vshrl.u32 %v1095, 7
        %v1097 = vsub.s32 1, %v1096
        %v1098 = vrot.slane %v800, %v1097
        %v1099 = vadd.f32 %v1029, %v1094
        %v1100 = vadd.f32 %v1029, %v1098
        %v1101 = vadd.f32 %v1033, %v1094
        %v1102 = vadd.f32 %v1033, %v1098
        %v1103 = vadd.f32 %v1037, %v1094
        %v1104 = vadd.f32 %v1037, %v1098
        %v1105 = vadd.f32 %v1041, %v1094
        %v1106 = vadd.f32 %v1041, %v1098
        %v1107 = vadd.f32 %v1045, %v1094
        %v1108 = vadd.f32 %v1045, %v1098
        %v1109 = vadd.f32 %v1049, %v1094
        %v1110 = vadd.f32 %v1049, %v1098
        %v1111 = vadd.f32 %v1053, %v1094
        %v1112 = vadd.f32 %v1053, %v1098
        %v1113 = vadd.f32 %v1057, %v1094
        %v1114 = vadd.f32 %v1057, %v1098
        %v1115 = vadd.f32 %v1061, %v1094
        %v1116 = vadd.f32 %v1061, %v1098
        %v1117 = vadd.f32 %v1065, %v1094
        %v1118 = vadd.f32 %v1065, %v1098
        %v1119 = vadd.f32 %v1069, %v1094
        %v1120 = vadd.f32 %v1069, %v1098
        %v1121 = vadd.f32 %v1073, %v1094
        %v1122 = vadd.f32 %v1073, %v1098
        %v1123 = vadd.f32 %v1077, %v1094
        %v1124 = vadd.f32 %v1077, %v1098
        %v1125 = vadd.f32 %v1081, %v1094
        %v1126 = vadd.f32 %v1081, %v1098
        %v1127 = vadd.f32 %v1085, %v1094
        %v1128 = vadd.f32 %v1085, %v1098
        %v1129 = vadd.f32 %v1089, %v1094
        %v1130 = vadd.f32 %v1089, %v1098
        %v1131 = vtanh.pop %v1099
        %v1132 = vtanh.pop %v1100
        %v1133 = vtanh.pop %v1101
        %v1134 = vtanh.pop %v1102
        %v1135 = vtanh.pop %v1103
        %v1136 = vtanh.pop %v1104
        %v1137 = vtanh.pop %v1105
        %v1138 = vtanh.pop %v1106
        %v1139 = vtanh.pop %v1107
        %v1140 = vtanh.pop %v1108
        %v1141 = vtanh.pop %v1109
        %v1142 = vtanh.pop %v1110
        %v1143 = vtanh.pop %v1111
        %v1144 = vtanh.pop %v1112
        %v1145 = vtanh.pop %v1113
        %v1146 = vtanh.pop %v1114
        %v1147 = vtanh.pop %v1115
        %v1148 = vtanh.pop %v1116
        %v1149 = vtanh.pop %v1117
        %v1150 = vtanh.pop %v1118
        %v1151 = vtanh.pop %v1119
        %v1152 = vtanh.pop %v1120
        %v1153 = vtanh.pop %v1121
        %v1154 = vtanh.pop %v1122
        %v1155 = vtanh.pop %v1123
        %v1156 = vtanh.pop %v1124
        %v1157 = vtanh.pop %v1125
        %v1158 = vtanh.pop %v1126
        %v1159 = vtanh.pop %v1127
        %v1160 = vtanh.pop %v1128
        %v1161 = vtanh.pop %v1129
        %v1162 = vtanh.pop %v1130
        %v1163 = vstv %s1026
        %v1164 = vmul.f32 %v1163, %v1131
        %v1165 = vmul.f32 %v1163, %v1132
        %v1166 = vmul.f32 %v1163, %v1133
        %v1167 = vmul.f32 %v1163, %v1134
        %v1168 = vmul.f32 %v1163, %v1135
        %v1169 = vmul.f32 %v1163, %v1136
        %v1170 = vmul.f32 %v1163, %v1137
        %v1171 = vmul.f32 %v1163, %v1138
        %v1172 = vmul.f32 %v1163, %v1139
        %v1173 = vmul.f32 %v1163, %v1140
        %v1174 = vmul.f32 %v1163, %v1141
        %v1175 = vmul.f32 %v1163, %v1142
        %v1176 = vmul.f32 %v1163, %v1143
        %v1177 = vmul.f32 %v1163, %v1144
        %v1178 = vmul.f32 %v1163, %v1145
        %v1179 = vmul.f32 %v1163, %v1146
        %v1180 = vmul.f32 %v1163, %v1147
        %v1181 = vmul.f32 %v1163, %v1148
        %v1182 = vmul.f32 %v1163, %v1149
        %v1183 = vmul.f32 %v1163, %v1150
        %v1184 = vmul.f32 %v1163, %v1151
        %v1185 = vmul.f32 %v1163, %v1152
        %v1186 = vmul.f32 %v1163, %v1153
        %v1187 = vmul.f32 %v1163, %v1154
        %v1188 = vmul.f32 %v1163, %v1155
        %v1189 = vmul.f32 %v1163, %v1156
        %v1190 = vmul.f32 %v1163, %v1157
        %v1191 = vmul.f32 %v1163, %v1158
        %v1192 = vmul.f32 %v1163, %v1159
        %v1193 = vmul.f32 %v1163, %v1160
        %v1194 = vmul.f32 %v1163, %v1161
        %v1195 = vmul.f32 %v1163, %v1162
        %v1196 = vadd.f32 %v994, %v1164
        %v1197 = vadd.f32 %v995, %v1165
        %v1198 = vadd.f32 %v996, %v1166
        %v1199 = vadd.f32 %v997, %v1167
        %v1200 = vadd.f32 %v998, %v1168
        %v1201 = vadd.f32 %v999, %v1169
        %v1202 = vadd.f32 %v1000, %v1170
        %v1203 = vadd.f32 %v1001, %v1171
        %v1204 = vadd.f32 %v1002, %v1172
        %v1205 = vadd.f32 %v1003, %v1173
        %v1206 = vadd.f32 %v1004, %v1174
        %v1207 = vadd.f32 %v1005, %v1175
        %v1208 = vadd.f32 %v1006, %v1176
        %v1209 = vadd.f32 %v1007, %v1177
        %v1210 = vadd.f32 %v1008, %v1178
        %v1211 = vadd.f32 %v1009, %v1179
        %v1212 = vadd.f32 %v1010, %v1180
        %v1213 = vadd.f32 %v1011, %v1181
        %v1214 = vadd.f32 %v1012, %v1182
        %v1215 = vadd.f32 %v1013, %v1183
        %v1216 = vadd.f32 %v1014, %v1184
        %v1217 = vadd.f32 %v1015, %v1185
        %v1218 = vadd.f32 %v1016, %v1186
        %v1219 = vadd.f32 %v1017, %v1187
        %v1220 = vadd.f32 %v1018, %v1188
        %v1221 = vadd.f32 %v1019, %v1189
        %v1222 = vadd.f32 %v1020, %v1190
        %v1223 = vadd.f32 %v1021, %v1191
        %v1224 = vadd.f32 %v1022, %v1192
        %v1225 = vadd.f32 %v1023, %v1193
        %v1226 = vadd.f32 %v1024, %v1194
        %v1227 = vadd.f32 %v1025, %v1195
        %s1228 = sld [smem:[#allocation3 + $0x2]]
        %1229 = vset.pattern.permute.xlu0 2
        %1230 = vperm.xlu0 %1229, %v645
        %v1231 = vpop.permute.xlu0 %1230
        %1233 = vset.pattern.permute.xlu0 2
        %1234 = vperm.xlu0 %1233, %v650
        %v1235 = vpop.permute.xlu0 %1234
        %1237 = vset.pattern.permute.xlu0 2
        %1238 = vperm.xlu0 %1237, %v655
        %v1239 = vpop.permute.xlu0 %1238
        %1241 = vset.pattern.permute.xlu0 2
        %1242 = vperm.xlu0 %1241, %v660
        %v1243 = vpop.permute.xlu0 %1242
        %1245 = vset.pattern.permute.xlu0 2
        %1246 = vperm.xlu0 %1245, %v665
        %v1247 = vpop.permute.xlu0 %1246
        %1249 = vset.pattern.permute.xlu0 2
        %1250 = vperm.xlu0 %1249, %v670
        %v1251 = vpop.permute.xlu0 %1250
        %1253 = vset.pattern.permute.xlu0 2
        %1254 = vperm.xlu0 %1253, %v675
        %v1255 = vpop.permute.xlu0 %1254
        %1257 = vset.pattern.permute.xlu0 2
        %1258 = vperm.xlu0 %1257, %v680
        %v1259 = vpop.permute.xlu0 %1258
        %1261 = vset.pattern.permute.xlu0 2
        %1262 = vperm.xlu0 %1261, %v685
        %v1263 = vpop.permute.xlu0 %1262
        %1265 = vset.pattern.permute.xlu0 2
        %1266 = vperm.xlu0 %1265, %v690
        %v1267 = vpop.permute.xlu0 %1266
        %1269 = vset.pattern.permute.xlu0 2
        %1270 = vperm.xlu0 %1269, %v695
        %v1271 = vpop.permute.xlu0 %1270
        %1273 = vset.pattern.permute.xlu0 2
        %1274 = vperm.xlu0 %1273, %v700
        %v1275 = vpop.permute.xlu0 %1274
        %1277 = vset.pattern.permute.xlu0 2
        %1278 = vperm.xlu0 %1277, %v705
        %v1279 = vpop.permute.xlu0 %1278
        %1281 = vset.pattern.permute.xlu0 2
        %1282 = vperm.xlu0 %1281, %v710
        %v1283 = vpop.permute.xlu0 %1282
        %1285 = vset.pattern.permute.xlu0 2
        %1286 = vperm.xlu0 %1285, %v715
        %v1287 = vpop.permute.xlu0 %1286
        %1289 = vset.pattern.permute.xlu0 2
        %1290 = vperm.xlu0 %1289, %v720
        %v1291 = vpop.permute.xlu0 %1290
        %v1293 = vlaneseq
        %v1294 = vshrl.u32 %v1293, 7
        %v1295 = vsub.s32 2, %v1294
        %v1296 = vrot.slane %v798, %v1295
        %v1297 = vlaneseq
        %v1298 = vshrl.u32 %v1297, 7
        %v1299 = vsub.s32 2, %v1298
        %v1300 = vrot.slane %v800, %v1299
        %v1301 = vadd.f32 %v1231, %v1296
        %v1302 = vadd.f32 %v1231, %v1300
        %v1303 = vadd.f32 %v1235, %v1296
        %v1304 = vadd.f32 %v1235, %v1300
        %v1305 = vadd.f32 %v1239, %v1296
        %v1306 = vadd.f32 %v1239, %v1300
        %v1307 = vadd.f32 %v1243, %v1296
        %v1308 = vadd.f32 %v1243, %v1300
        %v1309 = vadd.f32 %v1247, %v1296
        %v1310 = vadd.f32 %v1247, %v1300
        %v1311 = vadd.f32 %v1251, %v1296
        %v1312 = vadd.f32 %v1251, %v1300
        %v1313 = vadd.f32 %v1255, %v1296
        %v1314 = vadd.f32 %v1255, %v1300
        %v1315 = vadd.f32 %v1259, %v1296
        %v1316 = vadd.f32 %v1259, %v1300
        %v1317 = vadd.f32 %v1263, %v1296
        %v1318 = vadd.f32 %v1263, %v1300
        %v1319 = vadd.f32 %v1267, %v1296
        %v1320 = vadd.f32 %v1267, %v1300
        %v1321 = vadd.f32 %v1271, %v1296
        %v1322 = vadd.f32 %v1271, %v1300
        %v1323 = vadd.f32 %v1275, %v1296
        %v1324 = vadd.f32 %v1275, %v1300
        %v1325 = vadd.f32 %v1279, %v1296
        %v1326 = vadd.f32 %v1279, %v1300
        %v1327 = vadd.f32 %v1283, %v1296
        %v1328 = vadd.f32 %v1283, %v1300
        %v1329 = vadd.f32 %v1287, %v1296
        %v1330 = vadd.f32 %v1287, %v1300
        %v1331 = vadd.f32 %v1291, %v1296
        %v1332 = vadd.f32 %v1291, %v1300
        %v1333 = vtanh.pop %v1301
        %v1334 = vtanh.pop %v1302
        %v1335 = vtanh.pop %v1303
        %v1336 = vtanh.pop %v1304
        %v1337 = vtanh.pop %v1305
        %v1338 = vtanh.pop %v1306
        %v1339 = vtanh.pop %v1307
        %v1340 = vtanh.pop %v1308
        %v1341 = vtanh.pop %v1309
        %v1342 = vtanh.pop %v1310
        %v1343 = vtanh.pop %v1311
        %v1344 = vtanh.pop %v1312
        %v1345 = vtanh.pop %v1313
        %v1346 = vtanh.pop %v1314
        %v1347 = vtanh.pop %v1315
        %v1348 = vtanh.pop %v1316
        %v1349 = vtanh.pop %v1317
        %v1350 = vtanh.pop %v1318
        %v1351 = vtanh.pop %v1319
        %v1352 = vtanh.pop %v1320
        %v1353 = vtanh.pop %v1321
        %v1354 = vtanh.pop %v1322
        %v1355 = vtanh.pop %v1323
        %v1356 = vtanh.pop %v1324
        %v1357 = vtanh.pop %v1325
        %v1358 = vtanh.pop %v1326
        %v1359 = vtanh.pop %v1327
        %v1360 = vtanh.pop %v1328
        %v1361 = vtanh.pop %v1329
        %v1362 = vtanh.pop %v1330
        %v1363 = vtanh.pop %v1331
        %v1364 = vtanh.pop %v1332
        %v1365 = vstv %s1228
        %v1366 = vmul.f32 %v1365, %v1333
        %v1367 = vmul.f32 %v1365, %v1334
        %v1368 = vmul.f32 %v1365, %v1335
        %v1369 = vmul.f32 %v1365, %v1336
        %v1370 = vmul.f32 %v1365, %v1337
        %v1371 = vmul.f32 %v1365, %v1338
        %v1372 = vmul.f32 %v1365, %v1339
        %v1373 = vmul.f32 %v1365, %v1340
        %v1374 = vmul.f32 %v1365, %v1341
        %v1375 = vmul.f32 %v1365, %v1342
        %v1376 = vmul.f32 %v1365, %v1343
        %v1377 = vmul.f32 %v1365, %v1344
        %v1378 = vmul.f32 %v1365, %v1345
        %v1379 = vmul.f32 %v1365, %v1346
        %v1380 = vmul.f32 %v1365, %v1347
        %v1381 = vmul.f32 %v1365, %v1348
        %v1382 = vmul.f32 %v1365, %v1349
        %v1383 = vmul.f32 %v1365, %v1350
        %v1384 = vmul.f32 %v1365, %v1351
        %v1385 = vmul.f32 %v1365, %v1352
        %v1386 = vmul.f32 %v1365, %v1353
        %v1387 = vmul.f32 %v1365, %v1354
        %v1388 = vmul.f32 %v1365, %v1355
        %v1389 = vmul.f32 %v1365, %v1356
        %v1390 = vmul.f32 %v1365, %v1357
        %v1391 = vmul.f32 %v1365, %v1358
        %v1392 = vmul.f32 %v1365, %v1359
        %v1393 = vmul.f32 %v1365, %v1360
        %v1394 = vmul.f32 %v1365, %v1361
        %v1395 = vmul.f32 %v1365, %v1362
        %v1396 = vmul.f32 %v1365, %v1363
        %v1397 = vmul.f32 %v1365, %v1364
        %v1398 = vadd.f32 %v1196, %v1366
        %v1399 = vadd.f32 %v1197, %v1367
        %v1400 = vadd.f32 %v1198, %v1368
        %v1401 = vadd.f32 %v1199, %v1369
        %v1402 = vadd.f32 %v1200, %v1370
        %v1403 = vadd.f32 %v1201, %v1371
        %v1404 = vadd.f32 %v1202, %v1372
        %v1405 = vadd.f32 %v1203, %v1373
        %v1406 = vadd.f32 %v1204, %v1374
        %v1407 = vadd.f32 %v1205, %v1375
        %v1408 = vadd.f32 %v1206, %v1376
        %v1409 = vadd.f32 %v1207, %v1377
        %v1410 = vadd.f32 %v1208, %v1378
        %v1411 = vadd.f32 %v1209, %v1379
        %v1412 = vadd.f32 %v1210, %v1380
        %v1413 = vadd.f32 %v1211, %v1381
        %v1414 = vadd.f32 %v1212, %v1382
        %v1415 = vadd.f32 %v1213, %v1383
        %v1416 = vadd.f32 %v1214, %v1384
        %v1417 = vadd.f32 %v1215, %v1385
        %v1418 = vadd.f32 %v1216, %v1386
        %v1419 = vadd.f32 %v1217, %v1387
        %v1420 = vadd.f32 %v1218, %v1388
        %v1421 = vadd.f32 %v1219, %v1389
        %v1422 = vadd.f32 %v1220, %v1390
        %v1423 = vadd.f32 %v1221, %v1391
        %v1424 = vadd.f32 %v1222, %v1392
        %v1425 = vadd.f32 %v1223, %v1393
        %v1426 = vadd.f32 %v1224, %v1394
        %v1427 = vadd.f32 %v1225, %v1395
        %v1428 = vadd.f32 %v1226, %v1396
        %v1429 = vadd.f32 %v1227, %v1397
        %s1430 = sld [smem:[#allocation3 + $0x3]]
        %1431 = vset.pattern.permute.xlu0 3
        %1432 = vperm.xlu0 %1431, %v645
        %v1433 = vpop.permute.xlu0 %1432
        %1435 = vset.pattern.permute.xlu0 3
        %1436 = vperm.xlu0 %1435, %v650
        %v1437 = vpop.permute.xlu0 %1436
        %1439 = vset.pattern.permute.xlu0 3
        %1440 = vperm.xlu0 %1439, %v655
        %v1441 = vpop.permute.xlu0 %1440
        %1443 = vset.pattern.permute.xlu0 3
        %1444 = vperm.xlu0 %1443, %v660
        %v1445 = vpop.permute.xlu0 %1444
        %1447 = vset.pattern.permute.xlu0 3
        %1448 = vperm.xlu0 %1447, %v665
        %v1449 = vpop.permute.xlu0 %1448
        %1451 = vset.pattern.permute.xlu0 3
        %1452 = vperm.xlu0 %1451, %v670
        %v1453 = vpop.permute.xlu0 %1452
        %1455 = vset.pattern.permute.xlu0 3
        %1456 = vperm.xlu0 %1455, %v675
        %v1457 = vpop.permute.xlu0 %1456
        %1459 = vset.pattern.permute.xlu0 3
        %1460 = vperm.xlu0 %1459, %v680
        %v1461 = vpop.permute.xlu0 %1460
        %1463 = vset.pattern.permute.xlu0 3
        %1464 = vperm.xlu0 %1463, %v685
        %v1465 = vpop.permute.xlu0 %1464
        %1467 = vset.pattern.permute.xlu0 3
        %1468 = vperm.xlu0 %1467, %v690
        %v1469 = vpop.permute.xlu0 %1468
        %1471 = vset.pattern.permute.xlu0 3
        %1472 = vperm.xlu0 %1471, %v695
        %v1473 = vpop.permute.xlu0 %1472
        %1475 = vset.pattern.permute.xlu0 3
        %1476 = vperm.xlu0 %1475, %v700
        %v1477 = vpop.permute.xlu0 %1476
        %1479 = vset.pattern.permute.xlu0 3
        %1480 = vperm.xlu0 %1479, %v705
        %v1481 = vpop.permute.xlu0 %1480
        %1483 = vset.pattern.permute.xlu0 3
        %1484 = vperm.xlu0 %1483, %v710
        %v1485 = vpop.permute.xlu0 %1484
        %1487 = vset.pattern.permute.xlu0 3
        %1488 = vperm.xlu0 %1487, %v715
        %v1489 = vpop.permute.xlu0 %1488
        %1491 = vset.pattern.permute.xlu0 3
        %1492 = vperm.xlu0 %1491, %v720
        %v1493 = vpop.permute.xlu0 %1492
        %v1495 = vlaneseq
        %v1496 = vshrl.u32 %v1495, 7
        %v1497 = vsub.s32 3, %v1496
        %v1498 = vrot.slane %v798, %v1497
        %v1499 = vlaneseq
        %v1500 = vshrl.u32 %v1499, 7
        %v1501 = vsub.s32 3, %v1500
        %v1502 = vrot.slane %v800, %v1501
        %v1503 = vadd.f32 %v1433, %v1498
        %v1504 = vadd.f32 %v1433, %v1502
        %v1505 = vadd.f32 %v1437, %v1498
        %v1506 = vadd.f32 %v1437, %v1502
        %v1507 = vadd.f32 %v1441, %v1498
        %v1508 = vadd.f32 %v1441, %v1502
        %v1509 = vadd.f32 %v1445, %v1498
        %v1510 = vadd.f32 %v1445, %v1502
        %v1511 = vadd.f32 %v1449, %v1498
        %v1512 = vadd.f32 %v1449, %v1502
        %v1513 = vadd.f32 %v1453, %v1498
        %v1514 = vadd.f32 %v1453, %v1502
        %v1515 = vadd.f32 %v1457, %v1498
        %v1516 = vadd.f32 %v1457, %v1502
        %v1517 = vadd.f32 %v1461, %v1498
        %v1518 = vadd.f32 %v1461, %v1502
        %v1519 = vadd.f32 %v1465, %v1498
        %v1520 = vadd.f32 %v1465, %v1502
        %v1521 = vadd.f32 %v1469, %v1498
        %v1522 = vadd.f32 %v1469, %v1502
        %v1523 = vadd.f32 %v1473, %v1498
        %v1524 = vadd.f32 %v1473, %v1502
        %v1525 = vadd.f32 %v1477, %v1498
        %v1526 = vadd.f32 %v1477, %v1502
        %v1527 = vadd.f32 %v1481, %v1498
        %v1528 = vadd.f32 %v1481, %v1502
        %v1529 = vadd.f32 %v1485, %v1498
        %v1530 = vadd.f32 %v1485, %v1502
        %v1531 = vadd.f32 %v1489, %v1498
        %v1532 = vadd.f32 %v1489, %v1502
        %v1533 = vadd.f32 %v1493, %v1498
        %v1534 = vadd.f32 %v1493, %v1502
        %v1535 = vtanh.pop %v1503
        %v1536 = vtanh.pop %v1504
        %v1537 = vtanh.pop %v1505
        %v1538 = vtanh.pop %v1506
        %v1539 = vtanh.pop %v1507
        %v1540 = vtanh.pop %v1508
        %v1541 = vtanh.pop %v1509
        %v1542 = vtanh.pop %v1510
        %v1543 = vtanh.pop %v1511
        %v1544 = vtanh.pop %v1512
        %v1545 = vtanh.pop %v1513
        %v1546 = vtanh.pop %v1514
        %v1547 = vtanh.pop %v1515
        %v1548 = vtanh.pop %v1516
        %v1549 = vtanh.pop %v1517
        %v1550 = vtanh.pop %v1518
        %v1551 = vtanh.pop %v1519
        %v1552 = vtanh.pop %v1520
        %v1553 = vtanh.pop %v1521
        %v1554 = vtanh.pop %v1522
        %v1555 = vtanh.pop %v1523
        %v1556 = vtanh.pop %v1524
        %v1557 = vtanh.pop %v1525
        %v1558 = vtanh.pop %v1526
        %v1559 = vtanh.pop %v1527
        %v1560 = vtanh.pop %v1528
        %v1561 = vtanh.pop %v1529
        %v1562 = vtanh.pop %v1530
        %v1563 = vtanh.pop %v1531
        %v1564 = vtanh.pop %v1532
        %v1565 = vtanh.pop %v1533
        %v1566 = vtanh.pop %v1534
        %v1567 = vstv %s1430
        %v1568 = vmul.f32 %v1567, %v1535
        %v1569 = vmul.f32 %v1567, %v1536
        %v1570 = vmul.f32 %v1567, %v1537
        %v1571 = vmul.f32 %v1567, %v1538
        %v1572 = vmul.f32 %v1567, %v1539
        %v1573 = vmul.f32 %v1567, %v1540
        %v1574 = vmul.f32 %v1567, %v1541
        %v1575 = vmul.f32 %v1567, %v1542
        %v1576 = vmul.f32 %v1567, %v1543
        %v1577 = vmul.f32 %v1567, %v1544
        %v1578 = vmul.f32 %v1567, %v1545
        %v1579 = vmul.f32 %v1567, %v1546
        %v1580 = vmul.f32 %v1567, %v1547
        %v1581 = vmul.f32 %v1567, %v1548
        %v1582 = vmul.f32 %v1567, %v1549
        %v1583 = vmul.f32 %v1567, %v1550
        %v1584 = vmul.f32 %v1567, %v1551
        %v1585 = vmul.f32 %v1567, %v1552
        %v1586 = vmul.f32 %v1567, %v1553
        %v1587 = vmul.f32 %v1567, %v1554
        %v1588 = vmul.f32 %v1567, %v1555
        %v1589 = vmul.f32 %v1567, %v1556
        %v1590 = vmul.f32 %v1567, %v1557
        %v1591 = vmul.f32 %v1567, %v1558
        %v1592 = vmul.f32 %v1567, %v1559
        %v1593 = vmul.f32 %v1567, %v1560
        %v1594 = vmul.f32 %v1567, %v1561
        %v1595 = vmul.f32 %v1567, %v1562
        %v1596 = vmul.f32 %v1567, %v1563
        %v1597 = vmul.f32 %v1567, %v1564
        %v1598 = vmul.f32 %v1567, %v1565
        %v1599 = vmul.f32 %v1567, %v1566
        %v1600 = vadd.f32 %v1398, %v1568
        %v1601 = vadd.f32 %v1399, %v1569
        %v1602 = vadd.f32 %v1400, %v1570
        %v1603 = vadd.f32 %v1401, %v1571
        %v1604 = vadd.f32 %v1402, %v1572
        %v1605 = vadd.f32 %v1403, %v1573
        %v1606 = vadd.f32 %v1404, %v1574
        %v1607 = vadd.f32 %v1405, %v1575
        %v1608 = vadd.f32 %v1406, %v1576
        %v1609 = vadd.f32 %v1407, %v1577
        %v1610 = vadd.f32 %v1408, %v1578
        %v1611 = vadd.f32 %v1409, %v1579
        %v1612 = vadd.f32 %v1410, %v1580
        %v1613 = vadd.f32 %v1411, %v1581
        %v1614 = vadd.f32 %v1412, %v1582
        %v1615 = vadd.f32 %v1413, %v1583
        %v1616 = vadd.f32 %v1414, %v1584
        %v1617 = vadd.f32 %v1415, %v1585
        %v1618 = vadd.f32 %v1416, %v1586
        %v1619 = vadd.f32 %v1417, %v1587
        %v1620 = vadd.f32 %v1418, %v1588
        %v1621 = vadd.f32 %v1419, %v1589
        %v1622 = vadd.f32 %v1420, %v1590
        %v1623 = vadd.f32 %v1421, %v1591
        %v1624 = vadd.f32 %v1422, %v1592
        %v1625 = vadd.f32 %v1423, %v1593
        %v1626 = vadd.f32 %v1424, %v1594
        %v1627 = vadd.f32 %v1425, %v1595
        %v1628 = vadd.f32 %v1426, %v1596
        %v1629 = vadd.f32 %v1427, %v1597
        %v1630 = vadd.f32 %v1428, %v1598
        %v1631 = vadd.f32 %v1429, %v1599
        %s1632 = sld [smem:[#allocation3 + $0x4]]
        %1633 = vset.pattern.permute.xlu0 4
        %1634 = vperm.xlu0 %1633, %v645
        %v1635 = vpop.permute.xlu0 %1634
        %1637 = vset.pattern.permute.xlu0 4
        %1638 = vperm.xlu0 %1637, %v650
        %v1639 = vpop.permute.xlu0 %1638
        %1641 = vset.pattern.permute.xlu0 4
        %1642 = vperm.xlu0 %1641, %v655
        %v1643 = vpop.permute.xlu0 %1642
        %1645 = vset.pattern.permute.xlu0 4
        %1646 = vperm.xlu0 %1645, %v660
        %v1647 = vpop.permute.xlu0 %1646
        %1649 = vset.pattern.permute.xlu0 4
        %1650 = vperm.xlu0 %1649, %v665
        %v1651 = vpop.permute.xlu0 %1650
        %1653 = vset.pattern.permute.xlu0 4
        %1654 = vperm.xlu0 %1653, %v670
        %v1655 = vpop.permute.xlu0 %1654
        %1657 = vset.pattern.permute.xlu0 4
        %1658 = vperm.xlu0 %1657, %v675
        %v1659 = vpop.permute.xlu0 %1658
        %1661 = vset.pattern.permute.xlu0 4
        %1662 = vperm.xlu0 %1661, %v680
        %v1663 = vpop.permute.xlu0 %1662
        %1665 = vset.pattern.permute.xlu0 4
        %1666 = vperm.xlu0 %1665, %v685
        %v1667 = vpop.permute.xlu0 %1666
        %1669 = vset.pattern.permute.xlu0 4
        %1670 = vperm.xlu0 %1669, %v690
        %v1671 = vpop.permute.xlu0 %1670
        %1673 = vset.pattern.permute.xlu0 4
        %1674 = vperm.xlu0 %1673, %v695
        %v1675 = vpop.permute.xlu0 %1674
        %1677 = vset.pattern.permute.xlu0 4
        %1678 = vperm.xlu0 %1677, %v700
        %v1679 = vpop.permute.xlu0 %1678
        %1681 = vset.pattern.permute.xlu0 4
        %1682 = vperm.xlu0 %1681, %v705
        %v1683 = vpop.permute.xlu0 %1682
        %1685 = vset.pattern.permute.xlu0 4
        %1686 = vperm.xlu0 %1685, %v710
        %v1687 = vpop.permute.xlu0 %1686
        %1689 = vset.pattern.permute.xlu0 4
        %1690 = vperm.xlu0 %1689, %v715
        %v1691 = vpop.permute.xlu0 %1690
        %1693 = vset.pattern.permute.xlu0 4
        %1694 = vperm.xlu0 %1693, %v720
        %v1695 = vpop.permute.xlu0 %1694
        %v1697 = vlaneseq
        %v1698 = vshrl.u32 %v1697, 7
        %v1699 = vsub.s32 4, %v1698
        %v1700 = vrot.slane %v798, %v1699
        %v1701 = vlaneseq
        %v1702 = vshrl.u32 %v1701, 7
        %v1703 = vsub.s32 4, %v1702
        %v1704 = vrot.slane %v800, %v1703
        %v1705 = vadd.f32 %v1635, %v1700
        %v1706 = vadd.f32 %v1635, %v1704
        %v1707 = vadd.f32 %v1639, %v1700
        %v1708 = vadd.f32 %v1639, %v1704
        %v1709 = vadd.f32 %v1643, %v1700
        %v1710 = vadd.f32 %v1643, %v1704
        %v1711 = vadd.f32 %v1647, %v1700
        %v1712 = vadd.f32 %v1647, %v1704
        %v1713 = vadd.f32 %v1651, %v1700
        %v1714 = vadd.f32 %v1651, %v1704
        %v1715 = vadd.f32 %v1655, %v1700
        %v1716 = vadd.f32 %v1655, %v1704
        %v1717 = vadd.f32 %v1659, %v1700
        %v1718 = vadd.f32 %v1659, %v1704
        %v1719 = vadd.f32 %v1663, %v1700
        %v1720 = vadd.f32 %v1663, %v1704
        %v1721 = vadd.f32 %v1667, %v1700
        %v1722 = vadd.f32 %v1667, %v1704
        %v1723 = vadd.f32 %v1671, %v1700
        %v1724 = vadd.f32 %v1671, %v1704
        %v1725 = vadd.f32 %v1675, %v1700
        %v1726 = vadd.f32 %v1675, %v1704
        %v1727 = vadd.f32 %v1679, %v1700
        %v1728 = vadd.f32 %v1679, %v1704
        %v1729 = vadd.f32 %v1683, %v1700
        %v1730 = vadd.f32 %v1683, %v1704
        %v1731 = vadd.f32 %v1687, %v1700
        %v1732 = vadd.f32 %v1687, %v1704
        %v1733 = vadd.f32 %v1691, %v1700
        %v1734 = vadd.f32 %v1691, %v1704
        %v1735 = vadd.f32 %v1695, %v1700
        %v1736 = vadd.f32 %v1695, %v1704
        %v1737 = vtanh.pop %v1705
        %v1738 = vtanh.pop %v1706
        %v1739 = vtanh.pop %v1707
        %v1740 = vtanh.pop %v1708
        %v1741 = vtanh.pop %v1709
        %v1742 = vtanh.pop %v1710
        %v1743 = vtanh.pop %v1711
        %v1744 = vtanh.pop %v1712
        %v1745 = vtanh.pop %v1713
        %v1746 = vtanh.pop %v1714
        %v1747 = vtanh.pop %v1715
        %v1748 = vtanh.pop %v1716
        %v1749 = vtanh.pop %v1717
        %v1750 = vtanh.pop %v1718
        %v1751 = vtanh.pop %v1719
        %v1752 = vtanh.pop %v1720
        %v1753 = vtanh.pop %v1721
        %v1754 = vtanh.pop %v1722
        %v1755 = vtanh.pop %v1723
        %v1756 = vtanh.pop %v1724
        %v1757 = vtanh.pop %v1725
        %v1758 = vtanh.pop %v1726
        %v1759 = vtanh.pop %v1727
        %v1760 = vtanh.pop %v1728
        %v1761 = vtanh.pop %v1729
        %v1762 = vtanh.pop %v1730
        %v1763 = vtanh.pop %v1731
        %v1764 = vtanh.pop %v1732
        %v1765 = vtanh.pop %v1733
        %v1766 = vtanh.pop %v1734
        %v1767 = vtanh.pop %v1735
        %v1768 = vtanh.pop %v1736
        %v1769 = vstv %s1632
        %v1770 = vmul.f32 %v1769, %v1737
        %v1771 = vmul.f32 %v1769, %v1738
        %v1772 = vmul.f32 %v1769, %v1739
        %v1773 = vmul.f32 %v1769, %v1740
        %v1774 = vmul.f32 %v1769, %v1741
        %v1775 = vmul.f32 %v1769, %v1742
        %v1776 = vmul.f32 %v1769, %v1743
        %v1777 = vmul.f32 %v1769, %v1744
        %v1778 = vmul.f32 %v1769, %v1745
        %v1779 = vmul.f32 %v1769, %v1746
        %v1780 = vmul.f32 %v1769, %v1747
        %v1781 = vmul.f32 %v1769, %v1748
        %v1782 = vmul.f32 %v1769, %v1749
        %v1783 = vmul.f32 %v1769, %v1750
        %v1784 = vmul.f32 %v1769, %v1751
        %v1785 = vmul.f32 %v1769, %v1752
        %v1786 = vmul.f32 %v1769, %v1753
        %v1787 = vmul.f32 %v1769, %v1754
        %v1788 = vmul.f32 %v1769, %v1755
        %v1789 = vmul.f32 %v1769, %v1756
        %v1790 = vmul.f32 %v1769, %v1757
        %v1791 = vmul.f32 %v1769, %v1758
        %v1792 = vmul.f32 %v1769, %v1759
        %v1793 = vmul.f32 %v1769, %v1760
        %v1794 = vmul.f32 %v1769, %v1761
        %v1795 = vmul.f32 %v1769, %v1762
        %v1796 = vmul.f32 %v1769, %v1763
        %v1797 = vmul.f32 %v1769, %v1764
        %v1798 = vmul.f32 %v1769, %v1765
        %v1799 = vmul.f32 %v1769, %v1766
        %v1800 = vmul.f32 %v1769, %v1767
        %v1801 = vmul.f32 %v1769, %v1768
        %v1802 = vadd.f32 %v1600, %v1770
        %v1803 = vadd.f32 %v1601, %v1771
        %v1804 = vadd.f32 %v1602, %v1772
        %v1805 = vadd.f32 %v1603, %v1773
        %v1806 = vadd.f32 %v1604, %v1774
        %v1807 = vadd.f32 %v1605, %v1775
        %v1808 = vadd.f32 %v1606, %v1776
        %v1809 = vadd.f32 %v1607, %v1777
        %v1810 = vadd.f32 %v1608, %v1778
        %v1811 = vadd.f32 %v1609, %v1779
        %v1812 = vadd.f32 %v1610, %v1780
        %v1813 = vadd.f32 %v1611, %v1781
        %v1814 = vadd.f32 %v1612, %v1782
        %v1815 = vadd.f32 %v1613, %v1783
        %v1816 = vadd.f32 %v1614, %v1784
        %v1817 = vadd.f32 %v1615, %v1785
        %v1818 = vadd.f32 %v1616, %v1786
        %v1819 = vadd.f32 %v1617, %v1787
        %v1820 = vadd.f32 %v1618, %v1788
        %v1821 = vadd.f32 %v1619, %v1789
        %v1822 = vadd.f32 %v1620, %v1790
        %v1823 = vadd.f32 %v1621, %v1791
        %v1824 = vadd.f32 %v1622, %v1792
        %v1825 = vadd.f32 %v1623, %v1793
        %v1826 = vadd.f32 %v1624, %v1794
        %v1827 = vadd.f32 %v1625, %v1795
        %v1828 = vadd.f32 %v1626, %v1796
        %v1829 = vadd.f32 %v1627, %v1797
        %v1830 = vadd.f32 %v1628, %v1798
        %v1831 = vadd.f32 %v1629, %v1799
        %v1832 = vadd.f32 %v1630, %v1800
        %v1833 = vadd.f32 %v1631, %v1801
        %s1834 = sld [smem:[#allocation3 + $0x5]]
        %1835 = vset.pattern.permute.xlu0 5
        %1836 = vperm.xlu0 %1835, %v645
        %v1837 = vpop.permute.xlu0 %1836
        %1839 = vset.pattern.permute.xlu0 5
        %1840 = vperm.xlu0 %1839, %v650
        %v1841 = vpop.permute.xlu0 %1840
        %1843 = vset.pattern.permute.xlu0 5
        %1844 = vperm.xlu0 %1843, %v655
        %v1845 = vpop.permute.xlu0 %1844
        %1847 = vset.pattern.permute.xlu0 5
        %1848 = vperm.xlu0 %1847, %v660
        %v1849 = vpop.permute.xlu0 %1848
        %1851 = vset.pattern.permute.xlu0 5
        %1852 = vperm.xlu0 %1851, %v665
        %v1853 = vpop.permute.xlu0 %1852
        %1855 = vset.pattern.permute.xlu0 5
        %1856 = vperm.xlu0 %1855, %v670
        %v1857 = vpop.permute.xlu0 %1856
        %1859 = vset.pattern.permute.xlu0 5
        %1860 = vperm.xlu0 %1859, %v675
        %v1861 = vpop.permute.xlu0 %1860
        %1863 = vset.pattern.permute.xlu0 5
        %1864 = vperm.xlu0 %1863, %v680
        %v1865 = vpop.permute.xlu0 %1864
        %1867 = vset.pattern.permute.xlu0 5
        %1868 = vperm.xlu0 %1867, %v685
        %v1869 = vpop.permute.xlu0 %1868
        %1871 = vset.pattern.permute.xlu0 5
        %1872 = vperm.xlu0 %1871, %v690
        %v1873 = vpop.permute.xlu0 %1872
        %1875 = vset.pattern.permute.xlu0 5
        %1876 = vperm.xlu0 %1875, %v695
        %v1877 = vpop.permute.xlu0 %1876
        %1879 = vset.pattern.permute.xlu0 5
        %1880 = vperm.xlu0 %1879, %v700
        %v1881 = vpop.permute.xlu0 %1880
        %1883 = vset.pattern.permute.xlu0 5
        %1884 = vperm.xlu0 %1883, %v705
        %v1885 = vpop.permute.xlu0 %1884
        %1887 = vset.pattern.permute.xlu0 5
        %1888 = vperm.xlu0 %1887, %v710
        %v1889 = vpop.permute.xlu0 %1888
        %1891 = vset.pattern.permute.xlu0 5
        %1892 = vperm.xlu0 %1891, %v715
        %v1893 = vpop.permute.xlu0 %1892
        %1895 = vset.pattern.permute.xlu0 5
        %1896 = vperm.xlu0 %1895, %v720
        %v1897 = vpop.permute.xlu0 %1896
        %v1899 = vlaneseq
        %v1900 = vshrl.u32 %v1899, 7
        %v1901 = vsub.s32 5, %v1900
        %v1902 = vrot.slane %v798, %v1901
        %v1903 = vlaneseq
        %v1904 = vshrl.u32 %v1903, 7
        %v1905 = vsub.s32 5, %v1904
        %v1906 = vrot.slane %v800, %v1905
        %v1907 = vadd.f32 %v1837, %v1902
        %v1908 = vadd.f32 %v1837, %v1906
        %v1909 = vadd.f32 %v1841, %v1902
        %v1910 = vadd.f32 %v1841, %v1906
        %v1911 = vadd.f32 %v1845, %v1902
        %v1912 = vadd.f32 %v1845, %v1906
        %v1913 = vadd.f32 %v1849, %v1902
        %v1914 = vadd.f32 %v1849, %v1906
        %v1915 = vadd.f32 %v1853, %v1902
        %v1916 = vadd.f32 %v1853, %v1906
        %v1917 = vadd.f32 %v1857, %v1902
        %v1918 = vadd.f32 %v1857, %v1906
        %v1919 = vadd.f32 %v1861, %v1902
        %v1920 = vadd.f32 %v1861, %v1906
        %v1921 = vadd.f32 %v1865, %v1902
        %v1922 = vadd.f32 %v1865, %v1906
        %v1923 = vadd.f32 %v1869, %v1902
        %v1924 = vadd.f32 %v1869, %v1906
        %v1925 = vadd.f32 %v1873, %v1902
        %v1926 = vadd.f32 %v1873, %v1906
        %v1927 = vadd.f32 %v1877, %v1902
        %v1928 = vadd.f32 %v1877, %v1906
        %v1929 = vadd.f32 %v1881, %v1902
        %v1930 = vadd.f32 %v1881, %v1906
        %v1931 = vadd.f32 %v1885, %v1902
        %v1932 = vadd.f32 %v1885, %v1906
        %v1933 = vadd.f32 %v1889, %v1902
        %v1934 = vadd.f32 %v1889, %v1906
        %v1935 = vadd.f32 %v1893, %v1902
        %v1936 = vadd.f32 %v1893, %v1906
        %v1937 = vadd.f32 %v1897, %v1902
        %v1938 = vadd.f32 %v1897, %v1906
        %v1939 = vtanh.pop %v1907
        %v1940 = vtanh.pop %v1908
        %v1941 = vtanh.pop %v1909
        %v1942 = vtanh.pop %v1910
        %v1943 = vtanh.pop %v1911
        %v1944 = vtanh.pop %v1912
        %v1945 = vtanh.pop %v1913
        %v1946 = vtanh.pop %v1914
        %v1947 = vtanh.pop %v1915
        %v1948 = vtanh.pop %v1916
        %v1949 = vtanh.pop %v1917
        %v1950 = vtanh.pop %v1918
        %v1951 = vtanh.pop %v1919
        %v1952 = vtanh.pop %v1920
        %v1953 = vtanh.pop %v1921
        %v1954 = vtanh.pop %v1922
        %v1955 = vtanh.pop %v1923
        %v1956 = vtanh.pop %v1924
        %v1957 = vtanh.pop %v1925
        %v1958 = vtanh.pop %v1926
        %v1959 = vtanh.pop %v1927
        %v1960 = vtanh.pop %v1928
        %v1961 = vtanh.pop %v1929
        %v1962 = vtanh.pop %v1930
        %v1963 = vtanh.pop %v1931
        %v1964 = vtanh.pop %v1932
        %v1965 = vtanh.pop %v1933
        %v1966 = vtanh.pop %v1934
        %v1967 = vtanh.pop %v1935
        %v1968 = vtanh.pop %v1936
        %v1969 = vtanh.pop %v1937
        %v1970 = vtanh.pop %v1938
        %v1971 = vstv %s1834
        %v1972 = vmul.f32 %v1971, %v1939
        %v1973 = vmul.f32 %v1971, %v1940
        %v1974 = vmul.f32 %v1971, %v1941
        %v1975 = vmul.f32 %v1971, %v1942
        %v1976 = vmul.f32 %v1971, %v1943
        %v1977 = vmul.f32 %v1971, %v1944
        %v1978 = vmul.f32 %v1971, %v1945
        %v1979 = vmul.f32 %v1971, %v1946
        %v1980 = vmul.f32 %v1971, %v1947
        %v1981 = vmul.f32 %v1971, %v1948
        %v1982 = vmul.f32 %v1971, %v1949
        %v1983 = vmul.f32 %v1971, %v1950
        %v1984 = vmul.f32 %v1971, %v1951
        %v1985 = vmul.f32 %v1971, %v1952
        %v1986 = vmul.f32 %v1971, %v1953
        %v1987 = vmul.f32 %v1971, %v1954
        %v1988 = vmul.f32 %v1971, %v1955
        %v1989 = vmul.f32 %v1971, %v1956
        %v1990 = vmul.f32 %v1971, %v1957
        %v1991 = vmul.f32 %v1971, %v1958
        %v1992 = vmul.f32 %v1971, %v1959
        %v1993 = vmul.f32 %v1971, %v1960
        %v1994 = vmul.f32 %v1971, %v1961
        %v1995 = vmul.f32 %v1971, %v1962
        %v1996 = vmul.f32 %v1971, %v1963
        %v1997 = vmul.f32 %v1971, %v1964
        %v1998 = vmul.f32 %v1971, %v1965
        %v1999 = vmul.f32 %v1971, %v1966
        %v2000 = vmul.f32 %v1971, %v1967
        %v2001 = vmul.f32 %v1971, %v1968
        %v2002 = vmul.f32 %v1971, %v1969
        %v2003 = vmul.f32 %v1971, %v1970
        %v2004 = vadd.f32 %v1802, %v1972
        %v2005 = vadd.f32 %v1803, %v1973
        %v2006 = vadd.f32 %v1804, %v1974
        %v2007 = vadd.f32 %v1805, %v1975
        %v2008 = vadd.f32 %v1806, %v1976
        %v2009 = vadd.f32 %v1807, %v1977
        %v2010 = vadd.f32 %v1808, %v1978
        %v2011 = vadd.f32 %v1809, %v1979
        %v2012 = vadd.f32 %v1810, %v1980
        %v2013 = vadd.f32 %v1811, %v1981
        %v2014 = vadd.f32 %v1812, %v1982
        %v2015 = vadd.f32 %v1813, %v1983
        %v2016 = vadd.f32 %v1814, %v1984
        %v2017 = vadd.f32 %v1815, %v1985
        %v2018 = vadd.f32 %v1816, %v1986
        %v2019 = vadd.f32 %v1817, %v1987
        %v2020 = vadd.f32 %v1818, %v1988
        %v2021 = vadd.f32 %v1819, %v1989
        %v2022 = vadd.f32 %v1820, %v1990
        %v2023 = vadd.f32 %v1821, %v1991
        %v2024 = vadd.f32 %v1822, %v1992
        %v2025 = vadd.f32 %v1823, %v1993
        %v2026 = vadd.f32 %v1824, %v1994
        %v2027 = vadd.f32 %v1825, %v1995
        %v2028 = vadd.f32 %v1826, %v1996
        %v2029 = vadd.f32 %v1827, %v1997
        %v2030 = vadd.f32 %v1828, %v1998
        %v2031 = vadd.f32 %v1829, %v1999
        %v2032 = vadd.f32 %v1830, %v2000
        %v2033 = vadd.f32 %v1831, %v2001
        %v2034 = vadd.f32 %v1832, %v2002
        %v2035 = vadd.f32 %v1833, %v2003
        %s2036 = sld [smem:[#allocation3 + $0x6]]
        %2037 = vset.pattern.permute.xlu0 6
        %2038 = vperm.xlu0 %2037, %v645
        %v2039 = vpop.permute.xlu0 %2038
        %2041 = vset.pattern.permute.xlu0 6
        %2042 = vperm.xlu0 %2041, %v650
        %v2043 = vpop.permute.xlu0 %2042
        %2045 = vset.pattern.permute.xlu0 6
        %2046 = vperm.xlu0 %2045, %v655
        %v2047 = vpop.permute.xlu0 %2046
        %2049 = vset.pattern.permute.xlu0 6
        %2050 = vperm.xlu0 %2049, %v660
        %v2051 = vpop.permute.xlu0 %2050
        %2053 = vset.pattern.permute.xlu0 6
        %2054 = vperm.xlu0 %2053, %v665
        %v2055 = vpop.permute.xlu0 %2054
        %2057 = vset.pattern.permute.xlu0 6
        %2058 = vperm.xlu0 %2057, %v670
        %v2059 = vpop.permute.xlu0 %2058
        %2061 = vset.pattern.permute.xlu0 6
        %2062 = vperm.xlu0 %2061, %v675
        %v2063 = vpop.permute.xlu0 %2062
        %2065 = vset.pattern.permute.xlu0 6
        %2066 = vperm.xlu0 %2065, %v680
        %v2067 = vpop.permute.xlu0 %2066
        %2069 = vset.pattern.permute.xlu0 6
        %2070 = vperm.xlu0 %2069, %v685
        %v2071 = vpop.permute.xlu0 %2070
        %2073 = vset.pattern.permute.xlu0 6
        %2074 = vperm.xlu0 %2073, %v690
        %v2075 = vpop.permute.xlu0 %2074
        %2077 = vset.pattern.permute.xlu0 6
        %2078 = vperm.xlu0 %2077, %v695
        %v2079 = vpop.permute.xlu0 %2078
        %2081 = vset.pattern.permute.xlu0 6
        %2082 = vperm.xlu0 %2081, %v700
        %v2083 = vpop.permute.xlu0 %2082
        %2085 = vset.pattern.permute.xlu0 6
        %2086 = vperm.xlu0 %2085, %v705
        %v2087 = vpop.permute.xlu0 %2086
        %2089 = vset.pattern.permute.xlu0 6
        %2090 = vperm.xlu0 %2089, %v710
        %v2091 = vpop.permute.xlu0 %2090
        %2093 = vset.pattern.permute.xlu0 6
        %2094 = vperm.xlu0 %2093, %v715
        %v2095 = vpop.permute.xlu0 %2094
        %2097 = vset.pattern.permute.xlu0 6
        %2098 = vperm.xlu0 %2097, %v720
        %v2099 = vpop.permute.xlu0 %2098
        %v2101 = vlaneseq
        %v2102 = vshrl.u32 %v2101, 7
        %v2103 = vsub.s32 6, %v2102
        %v2104 = vrot.slane %v798, %v2103
        %v2105 = vlaneseq
        %v2106 = vshrl.u32 %v2105, 7
        %v2107 = vsub.s32 6, %v2106
        %v2108 = vrot.slane %v800, %v2107
        %v2109 = vadd.f32 %v2039, %v2104
        %v2110 = vadd.f32 %v2039, %v2108
        %v2111 = vadd.f32 %v2043, %v2104
        %v2112 = vadd.f32 %v2043, %v2108
        %v2113 = vadd.f32 %v2047, %v2104
        %v2114 = vadd.f32 %v2047, %v2108
        %v2115 = vadd.f32 %v2051, %v2104
        %v2116 = vadd.f32 %v2051, %v2108
        %v2117 = vadd.f32 %v2055, %v2104
        %v2118 = vadd.f32 %v2055, %v2108
        %v2119 = vadd.f32 %v2059, %v2104
        %v2120 = vadd.f32 %v2059, %v2108
        %v2121 = vadd.f32 %v2063, %v2104
        %v2122 = vadd.f32 %v2063, %v2108
        %v2123 = vadd.f32 %v2067, %v2104
        %v2124 = vadd.f32 %v2067, %v2108
        %v2125 = vadd.f32 %v2071, %v2104
        %v2126 = vadd.f32 %v2071, %v2108
        %v2127 = vadd.f32 %v2075, %v2104
        %v2128 = vadd.f32 %v2075, %v2108
        %v2129 = vadd.f32 %v2079, %v2104
        %v2130 = vadd.f32 %v2079, %v2108
        %v2131 = vadd.f32 %v2083, %v2104
        %v2132 = vadd.f32 %v2083, %v2108
        %v2133 = vadd.f32 %v2087, %v2104
        %v2134 = vadd.f32 %v2087, %v2108
        %v2135 = vadd.f32 %v2091, %v2104
        %v2136 = vadd.f32 %v2091, %v2108
        %v2137 = vadd.f32 %v2095, %v2104
        %v2138 = vadd.f32 %v2095, %v2108
        %v2139 = vadd.f32 %v2099, %v2104
        %v2140 = vadd.f32 %v2099, %v2108
        %v2141 = vtanh.pop %v2109
        %v2142 = vtanh.pop %v2110
        %v2143 = vtanh.pop %v2111
        %v2144 = vtanh.pop %v2112
        %v2145 = vtanh.pop %v2113
        %v2146 = vtanh.pop %v2114
        %v2147 = vtanh.pop %v2115
        %v2148 = vtanh.pop %v2116
        %v2149 = vtanh.pop %v2117
        %v2150 = vtanh.pop %v2118
        %v2151 = vtanh.pop %v2119
        %v2152 = vtanh.pop %v2120
        %v2153 = vtanh.pop %v2121
        %v2154 = vtanh.pop %v2122
        %v2155 = vtanh.pop %v2123
        %v2156 = vtanh.pop %v2124
        %v2157 = vtanh.pop %v2125
        %v2158 = vtanh.pop %v2126
        %v2159 = vtanh.pop %v2127
        %v2160 = vtanh.pop %v2128
        %v2161 = vtanh.pop %v2129
        %v2162 = vtanh.pop %v2130
        %v2163 = vtanh.pop %v2131
        %v2164 = vtanh.pop %v2132
        %v2165 = vtanh.pop %v2133
        %v2166 = vtanh.pop %v2134
        %v2167 = vtanh.pop %v2135
        %v2168 = vtanh.pop %v2136
        %v2169 = vtanh.pop %v2137
        %v2170 = vtanh.pop %v2138
        %v2171 = vtanh.pop %v2139
        %v2172 = vtanh.pop %v2140
        %v2173 = vstv %s2036
        %v2174 = vmul.f32 %v2173, %v2141
        %v2175 = vmul.f32 %v2173, %v2142
        %v2176 = vmul.f32 %v2173, %v2143
        %v2177 = vmul.f32 %v2173, %v2144
        %v2178 = vmul.f32 %v2173, %v2145
        %v2179 = vmul.f32 %v2173, %v2146
        %v2180 = vmul.f32 %v2173, %v2147
        %v2181 = vmul.f32 %v2173, %v2148
        %v2182 = vmul.f32 %v2173, %v2149
        %v2183 = vmul.f32 %v2173, %v2150
        %v2184 = vmul.f32 %v2173, %v2151
        %v2185 = vmul.f32 %v2173, %v2152
        %v2186 = vmul.f32 %v2173, %v2153
        %v2187 = vmul.f32 %v2173, %v2154
        %v2188 = vmul.f32 %v2173, %v2155
        %v2189 = vmul.f32 %v2173, %v2156
        %v2190 = vmul.f32 %v2173, %v2157
        %v2191 = vmul.f32 %v2173, %v2158
        %v2192 = vmul.f32 %v2173, %v2159
        %v2193 = vmul.f32 %v2173, %v2160
        %v2194 = vmul.f32 %v2173, %v2161
        %v2195 = vmul.f32 %v2173, %v2162
        %v2196 = vmul.f32 %v2173, %v2163
        %v2197 = vmul.f32 %v2173, %v2164
        %v2198 = vmul.f32 %v2173, %v2165
        %v2199 = vmul.f32 %v2173, %v2166
        %v2200 = vmul.f32 %v2173, %v2167
        %v2201 = vmul.f32 %v2173, %v2168
        %v2202 = vmul.f32 %v2173, %v2169
        %v2203 = vmul.f32 %v2173, %v2170
        %v2204 = vmul.f32 %v2173, %v2171
        %v2205 = vmul.f32 %v2173, %v2172
        %v2206 = vadd.f32 %v2004, %v2174
        %v2207 = vadd.f32 %v2005, %v2175
        %v2208 = vadd.f32 %v2006, %v2176
        %v2209 = vadd.f32 %v2007, %v2177
        %v2210 = vadd.f32 %v2008, %v2178
        %v2211 = vadd.f32 %v2009, %v2179
        %v2212 = vadd.f32 %v2010, %v2180
        %v2213 = vadd.f32 %v2011, %v2181
        %v2214 = vadd.f32 %v2012, %v2182
        %v2215 = vadd.f32 %v2013, %v2183
        %v2216 = vadd.f32 %v2014, %v2184
        %v2217 = vadd.f32 %v2015, %v2185
        %v2218 = vadd.f32 %v2016, %v2186
        %v2219 = vadd.f32 %v2017, %v2187
        %v2220 = vadd.f32 %v2018, %v2188
        %v2221 = vadd.f32 %v2019, %v2189
        %v2222 = vadd.f32 %v2020, %v2190
        %v2223 = vadd.f32 %v2021, %v2191
        %v2224 = vadd.f32 %v2022, %v2192
        %v2225 = vadd.f32 %v2023, %v2193
        %v2226 = vadd.f32 %v2024, %v2194
        %v2227 = vadd.f32 %v2025, %v2195
        %v2228 = vadd.f32 %v2026, %v2196
        %v2229 = vadd.f32 %v2027, %v2197
        %v2230 = vadd.f32 %v2028, %v2198
        %v2231 = vadd.f32 %v2029, %v2199
        %v2232 = vadd.f32 %v2030, %v2200
        %v2233 = vadd.f32 %v2031, %v2201
        %v2234 = vadd.f32 %v2032, %v2202
        %v2235 = vadd.f32 %v2033, %v2203
        %v2236 = vadd.f32 %v2034, %v2204
        %v2237 = vadd.f32 %v2035, %v2205
        %s2238 = sld [smem:[#allocation3 + $0x7]]
        %2239 = vset.pattern.permute.xlu0 7
        %2240 = vperm.xlu0 %2239, %v645
        %v2241 = vpop.permute.xlu0 %2240
        %2243 = vset.pattern.permute.xlu0 7
        %2244 = vperm.xlu0 %2243, %v650
        %v2245 = vpop.permute.xlu0 %2244
        %2247 = vset.pattern.permute.xlu0 7
        %2248 = vperm.xlu0 %2247, %v655
        %v2249 = vpop.permute.xlu0 %2248
        %2251 = vset.pattern.permute.xlu0 7
        %2252 = vperm.xlu0 %2251, %v660
        %v2253 = vpop.permute.xlu0 %2252
        %2255 = vset.pattern.permute.xlu0 7
        %2256 = vperm.xlu0 %2255, %v665
        %v2257 = vpop.permute.xlu0 %2256
        %2259 = vset.pattern.permute.xlu0 7
        %2260 = vperm.xlu0 %2259, %v670
        %v2261 = vpop.permute.xlu0 %2260
        %2263 = vset.pattern.permute.xlu0 7
        %2264 = vperm.xlu0 %2263, %v675
        %v2265 = vpop.permute.xlu0 %2264
        %2267 = vset.pattern.permute.xlu0 7
        %2268 = vperm.xlu0 %2267, %v680
        %v2269 = vpop.permute.xlu0 %2268
        %2271 = vset.pattern.permute.xlu0 7
        %2272 = vperm.xlu0 %2271, %v685
        %v2273 = vpop.permute.xlu0 %2272
        %2275 = vset.pattern.permute.xlu0 7
        %2276 = vperm.xlu0 %2275, %v690
        %v2277 = vpop.permute.xlu0 %2276
        %2279 = vset.pattern.permute.xlu0 7
        %2280 = vperm.xlu0 %2279, %v695
        %v2281 = vpop.permute.xlu0 %2280
        %2283 = vset.pattern.permute.xlu0 7
        %2284 = vperm.xlu0 %2283, %v700
        %v2285 = vpop.permute.xlu0 %2284
        %2287 = vset.pattern.permute.xlu0 7
        %2288 = vperm.xlu0 %2287, %v705
        %v2289 = vpop.permute.xlu0 %2288
        %2291 = vset.pattern.permute.xlu0 7
        %2292 = vperm.xlu0 %2291, %v710
        %v2293 = vpop.permute.xlu0 %2292
        %2295 = vset.pattern.permute.xlu0 7
        %2296 = vperm.xlu0 %2295, %v715
        %v2297 = vpop.permute.xlu0 %2296
        %2299 = vset.pattern.permute.xlu0 7
        %2300 = vperm.xlu0 %2299, %v720
        %v2301 = vpop.permute.xlu0 %2300
        %v2303 = vlaneseq
        %v2304 = vshrl.u32 %v2303, 7
        %v2305 = vsub.s32 7, %v2304
        %v2306 = vrot.slane %v798, %v2305
        %v2307 = vlaneseq
        %v2308 = vshrl.u32 %v2307, 7
        %v2309 = vsub.s32 7, %v2308
        %v2310 = vrot.slane %v800, %v2309
        %v2311 = vadd.f32 %v2241, %v2306
        %v2312 = vadd.f32 %v2241, %v2310
        %v2313 = vadd.f32 %v2245, %v2306
        %v2314 = vadd.f32 %v2245, %v2310
        %v2315 = vadd.f32 %v2249, %v2306
        %v2316 = vadd.f32 %v2249, %v2310
        %v2317 = vadd.f32 %v2253, %v2306
        %v2318 = vadd.f32 %v2253, %v2310
        %v2319 = vadd.f32 %v2257, %v2306
        %v2320 = vadd.f32 %v2257, %v2310
        %v2321 = vadd.f32 %v2261, %v2306
        %v2322 = vadd.f32 %v2261, %v2310
        %v2323 = vadd.f32 %v2265, %v2306
        %v2324 = vadd.f32 %v2265, %v2310
        %v2325 = vadd.f32 %v2269, %v2306
        %v2326 = vadd.f32 %v2269, %v2310
        %v2327 = vadd.f32 %v2273, %v2306
        %v2328 = vadd.f32 %v2273, %v2310
        %v2329 = vadd.f32 %v2277, %v2306
        %v2330 = vadd.f32 %v2277, %v2310
        %v2331 = vadd.f32 %v2281, %v2306
        %v2332 = vadd.f32 %v2281, %v2310
        %v2333 = vadd.f32 %v2285, %v2306
        %v2334 = vadd.f32 %v2285, %v2310
        %v2335 = vadd.f32 %v2289, %v2306
        %v2336 = vadd.f32 %v2289, %v2310
        %v2337 = vadd.f32 %v2293, %v2306
        %v2338 = vadd.f32 %v2293, %v2310
        %v2339 = vadd.f32 %v2297, %v2306
        %v2340 = vadd.f32 %v2297, %v2310
        %v2341 = vadd.f32 %v2301, %v2306
        %v2342 = vadd.f32 %v2301, %v2310
        %v2343 = vtanh.pop %v2311
        %v2344 = vtanh.pop %v2312
        %v2345 = vtanh.pop %v2313
        %v2346 = vtanh.pop %v2314
        %v2347 = vtanh.pop %v2315
        %v2348 = vtanh.pop %v2316
        %v2349 = vtanh.pop %v2317
        %v2350 = vtanh.pop %v2318
        %v2351 = vtanh.pop %v2319
        %v2352 = vtanh.pop %v2320
        %v2353 = vtanh.pop %v2321
        %v2354 = vtanh.pop %v2322
        %v2355 = vtanh.pop %v2323
        %v2356 = vtanh.pop %v2324
        %v2357 = vtanh.pop %v2325
        %v2358 = vtanh.pop %v2326
        %v2359 = vtanh.pop %v2327
        %v2360 = vtanh.pop %v2328
        %v2361 = vtanh.pop %v2329
        %v2362 = vtanh.pop %v2330
        %v2363 = vtanh.pop %v2331
        %v2364 = vtanh.pop %v2332
        %v2365 = vtanh.pop %v2333
        %v2366 = vtanh.pop %v2334
        %v2367 = vtanh.pop %v2335
        %v2368 = vtanh.pop %v2336
        %v2369 = vtanh.pop %v2337
        %v2370 = vtanh.pop %v2338
        %v2371 = vtanh.pop %v2339
        %v2372 = vtanh.pop %v2340
        %v2373 = vtanh.pop %v2341
        %v2374 = vtanh.pop %v2342
        %v2375 = vstv %s2238
        %v2376 = vmul.f32 %v2375, %v2343
        %v2377 = vmul.f32 %v2375, %v2344
        %v2378 = vmul.f32 %v2375, %v2345
        %v2379 = vmul.f32 %v2375, %v2346
        %v2380 = vmul.f32 %v2375, %v2347
        %v2381 = vmul.f32 %v2375, %v2348
        %v2382 = vmul.f32 %v2375, %v2349
        %v2383 = vmul.f32 %v2375, %v2350
        %v2384 = vmul.f32 %v2375, %v2351
        %v2385 = vmul.f32 %v2375, %v2352
        %v2386 = vmul.f32 %v2375, %v2353
        %v2387 = vmul.f32 %v2375, %v2354
        %v2388 = vmul.f32 %v2375, %v2355
        %v2389 = vmul.f32 %v2375, %v2356
        %v2390 = vmul.f32 %v2375, %v2357
        %v2391 = vmul.f32 %v2375, %v2358
        %v2392 = vmul.f32 %v2375, %v2359
        %v2393 = vmul.f32 %v2375, %v2360
        %v2394 = vmul.f32 %v2375, %v2361
        %v2395 = vmul.f32 %v2375, %v2362
        %v2396 = vmul.f32 %v2375, %v2363
        %v2397 = vmul.f32 %v2375, %v2364
        %v2398 = vmul.f32 %v2375, %v2365
        %v2399 = vmul.f32 %v2375, %v2366
        %v2400 = vmul.f32 %v2375, %v2367
        %v2401 = vmul.f32 %v2375, %v2368
        %v2402 = vmul.f32 %v2375, %v2369
        %v2403 = vmul.f32 %v2375, %v2370
        %v2404 = vmul.f32 %v2375, %v2371
        %v2405 = vmul.f32 %v2375, %v2372
        %v2406 = vmul.f32 %v2375, %v2373
        %v2407 = vmul.f32 %v2375, %v2374
        %v2408 = vadd.f32 %v2206, %v2376
        %v2409 = vadd.f32 %v2207, %v2377
        %v2410 = vadd.f32 %v2208, %v2378
        %v2411 = vadd.f32 %v2209, %v2379
        %v2412 = vadd.f32 %v2210, %v2380
        %v2413 = vadd.f32 %v2211, %v2381
        %v2414 = vadd.f32 %v2212, %v2382
        %v2415 = vadd.f32 %v2213, %v2383
        %v2416 = vadd.f32 %v2214, %v2384
        %v2417 = vadd.f32 %v2215, %v2385
        %v2418 = vadd.f32 %v2216, %v2386
        %v2419 = vadd.f32 %v2217, %v2387
        %v2420 = vadd.f32 %v2218, %v2388
        %v2421 = vadd.f32 %v2219, %v2389
        %v2422 = vadd.f32 %v2220, %v2390
        %v2423 = vadd.f32 %v2221, %v2391
        %v2424 = vadd.f32 %v2222, %v2392
        %v2425 = vadd.f32 %v2223, %v2393
        %v2426 = vadd.f32 %v2224, %v2394
        %v2427 = vadd.f32 %v2225, %v2395
        %v2428 = vadd.f32 %v2226, %v2396
        %v2429 = vadd.f32 %v2227, %v2397
        %v2430 = vadd.f32 %v2228, %v2398
        %v2431 = vadd.f32 %v2229, %v2399
        %v2432 = vadd.f32 %v2230, %v2400
        %v2433 = vadd.f32 %v2231, %v2401
        %v2434 = vadd.f32 %v2232, %v2402
        %v2435 = vadd.f32 %v2233, %v2403
        %v2436 = vadd.f32 %v2234, %v2404
        %v2437 = vadd.f32 %v2235, %v2405
        %v2438 = vadd.f32 %v2236, %v2406
        %v2439 = vadd.f32 %v2237, %v2407
        %s2440 = sld [smem:[#allocation3 + $0x8]]
        %2441 = vset.pattern.permute.xlu0 8
        %2442 = vperm.xlu0 %2441, %v645
        %v2443 = vpop.permute.xlu0 %2442
        %2445 = vset.pattern.permute.xlu0 8
        %2446 = vperm.xlu0 %2445, %v650
        %v2447 = vpop.permute.xlu0 %2446
        %2449 = vset.pattern.permute.xlu0 8
        %2450 = vperm.xlu0 %2449, %v655
        %v2451 = vpop.permute.xlu0 %2450
        %2453 = vset.pattern.permute.xlu0 8
        %2454 = vperm.xlu0 %2453, %v660
        %v2455 = vpop.permute.xlu0 %2454
        %2457 = vset.pattern.permute.xlu0 8
        %2458 = vperm.xlu0 %2457, %v665
        %v2459 = vpop.permute.xlu0 %2458
        %2461 = vset.pattern.permute.xlu0 8
        %2462 = vperm.xlu0 %2461, %v670
        %v2463 = vpop.permute.xlu0 %2462
        %2465 = vset.pattern.permute.xlu0 8
        %2466 = vperm.xlu0 %2465, %v675
        %v2467 = vpop.permute.xlu0 %2466
        %2469 = vset.pattern.permute.xlu0 8
        %2470 = vperm.xlu0 %2469, %v680
        %v2471 = vpop.permute.xlu0 %2470
        %2473 = vset.pattern.permute.xlu0 8
        %2474 = vperm.xlu0 %2473, %v685
        %v2475 = vpop.permute.xlu0 %2474
        %2477 = vset.pattern.permute.xlu0 8
        %2478 = vperm.xlu0 %2477, %v690
        %v2479 = vpop.permute.xlu0 %2478
        %2481 = vset.pattern.permute.xlu0 8
        %2482 = vperm.xlu0 %2481, %v695
        %v2483 = vpop.permute.xlu0 %2482
        %2485 = vset.pattern.permute.xlu0 8
        %2486 = vperm.xlu0 %2485, %v700
        %v2487 = vpop.permute.xlu0 %2486
        %2489 = vset.pattern.permute.xlu0 8
        %2490 = vperm.xlu0 %2489, %v705
        %v2491 = vpop.permute.xlu0 %2490
        %2493 = vset.pattern.permute.xlu0 8
        %2494 = vperm.xlu0 %2493, %v710
        %v2495 = vpop.permute.xlu0 %2494
        %2497 = vset.pattern.permute.xlu0 8
        %2498 = vperm.xlu0 %2497, %v715
        %v2499 = vpop.permute.xlu0 %2498
        %2501 = vset.pattern.permute.xlu0 8
        %2502 = vperm.xlu0 %2501, %v720
        %v2503 = vpop.permute.xlu0 %2502
        %v2505 = vlaneseq
        %v2506 = vshrl.u32 %v2505, 7
        %v2507 = vsub.s32 0, %v2506
        %v2508 = vrot.slane %v804, %v2507
        %v2509 = vlaneseq
        %v2510 = vshrl.u32 %v2509, 7
        %v2511 = vsub.s32 0, %v2510
        %v2512 = vrot.slane %v806, %v2511
        %v2513 = vadd.f32 %v2443, %v2508
        %v2514 = vadd.f32 %v2443, %v2512
        %v2515 = vadd.f32 %v2447, %v2508
        %v2516 = vadd.f32 %v2447, %v2512
        %v2517 = vadd.f32 %v2451, %v2508
        %v2518 = vadd.f32 %v2451, %v2512
        %v2519 = vadd.f32 %v2455, %v2508
        %v2520 = vadd.f32 %v2455, %v2512
        %v2521 = vadd.f32 %v2459, %v2508
        %v2522 = vadd.f32 %v2459, %v2512
        %v2523 = vadd.f32 %v2463, %v2508
        %v2524 = vadd.f32 %v2463, %v2512
        %v2525 = vadd.f32 %v2467, %v2508
        %v2526 = vadd.f32 %v2467, %v2512
        %v2527 = vadd.f32 %v2471, %v2508
        %v2528 = vadd.f32 %v2471, %v2512
        %v2529 = vadd.f32 %v2475, %v2508
        %v2530 = vadd.f32 %v2475, %v2512
        %v2531 = vadd.f32 %v2479, %v2508
        %v2532 = vadd.f32 %v2479, %v2512
        %v2533 = vadd.f32 %v2483, %v2508
        %v2534 = vadd.f32 %v2483, %v2512
        %v2535 = vadd.f32 %v2487, %v2508
        %v2536 = vadd.f32 %v2487, %v2512
        %v2537 = vadd.f32 %v2491, %v2508
        %v2538 = vadd.f32 %v2491, %v2512
        %v2539 = vadd.f32 %v2495, %v2508
        %v2540 = vadd.f32 %v2495, %v2512
        %v2541 = vadd.f32 %v2499, %v2508
        %v2542 = vadd.f32 %v2499, %v2512
        %v2543 = vadd.f32 %v2503, %v2508
        %v2544 = vadd.f32 %v2503, %v2512
        %v2545 = vtanh.pop %v2513
        %v2546 = vtanh.pop %v2514
        %v2547 = vtanh.pop %v2515
        %v2548 = vtanh.pop %v2516
        %v2549 = vtanh.pop %v2517
        %v2550 = vtanh.pop %v2518
        %v2551 = vtanh.pop %v2519
        %v2552 = vtanh.pop %v2520
        %v2553 = vtanh.pop %v2521
        %v2554 = vtanh.pop %v2522
        %v2555 = vtanh.pop %v2523
        %v2556 = vtanh.pop %v2524
        %v2557 = vtanh.pop %v2525
        %v2558 = vtanh.pop %v2526
        %v2559 = vtanh.pop %v2527
        %v2560 = vtanh.pop %v2528
        %v2561 = vtanh.pop %v2529
        %v2562 = vtanh.pop %v2530
        %v2563 = vtanh.pop %v2531
        %v2564 = vtanh.pop %v2532
        %v2565 = vtanh.pop %v2533
        %v2566 = vtanh.pop %v2534
        %v2567 = vtanh.pop %v2535
        %v2568 = vtanh.pop %v2536
        %v2569 = vtanh.pop %v2537
        %v2570 = vtanh.pop %v2538
        %v2571 = vtanh.pop %v2539
        %v2572 = vtanh.pop %v2540
        %v2573 = vtanh.pop %v2541
        %v2574 = vtanh.pop %v2542
        %v2575 = vtanh.pop %v2543
        %v2576 = vtanh.pop %v2544
        %v2577 = vstv %s2440
        %v2578 = vmul.f32 %v2577, %v2545
        %v2579 = vmul.f32 %v2577, %v2546
        %v2580 = vmul.f32 %v2577, %v2547
        %v2581 = vmul.f32 %v2577, %v2548
        %v2582 = vmul.f32 %v2577, %v2549
        %v2583 = vmul.f32 %v2577, %v2550
        %v2584 = vmul.f32 %v2577, %v2551
        %v2585 = vmul.f32 %v2577, %v2552
        %v2586 = vmul.f32 %v2577, %v2553
        %v2587 = vmul.f32 %v2577, %v2554
        %v2588 = vmul.f32 %v2577, %v2555
        %v2589 = vmul.f32 %v2577, %v2556
        %v2590 = vmul.f32 %v2577, %v2557
        %v2591 = vmul.f32 %v2577, %v2558
        %v2592 = vmul.f32 %v2577, %v2559
        %v2593 = vmul.f32 %v2577, %v2560
        %v2594 = vmul.f32 %v2577, %v2561
        %v2595 = vmul.f32 %v2577, %v2562
        %v2596 = vmul.f32 %v2577, %v2563
        %v2597 = vmul.f32 %v2577, %v2564
        %v2598 = vmul.f32 %v2577, %v2565
        %v2599 = vmul.f32 %v2577, %v2566
        %v2600 = vmul.f32 %v2577, %v2567
        %v2601 = vmul.f32 %v2577, %v2568
        %v2602 = vmul.f32 %v2577, %v2569
        %v2603 = vmul.f32 %v2577, %v2570
        %v2604 = vmul.f32 %v2577, %v2571
        %v2605 = vmul.f32 %v2577, %v2572
        %v2606 = vmul.f32 %v2577, %v2573
        %v2607 = vmul.f32 %v2577, %v2574
        %v2608 = vmul.f32 %v2577, %v2575
        %v2609 = vmul.f32 %v2577, %v2576
        %v2610 = vadd.f32 %v2408, %v2578
        %v2611 = vadd.f32 %v2409, %v2579
        %v2612 = vadd.f32 %v2410, %v2580
        %v2613 = vadd.f32 %v2411, %v2581
        %v2614 = vadd.f32 %v2412, %v2582
        %v2615 = vadd.f32 %v2413, %v2583
        %v2616 = vadd.f32 %v2414, %v2584
        %v2617 = vadd.f32 %v2415, %v2585
        %v2618 = vadd.f32 %v2416, %v2586
        %v2619 = vadd.f32 %v2417, %v2587
        %v2620 = vadd.f32 %v2418, %v2588
        %v2621 = vadd.f32 %v2419, %v2589
        %v2622 = vadd.f32 %v2420, %v2590
        %v2623 = vadd.f32 %v2421, %v2591
        %v2624 = vadd.f32 %v2422, %v2592
        %v2625 = vadd.f32 %v2423, %v2593
        %v2626 = vadd.f32 %v2424, %v2594
        %v2627 = vadd.f32 %v2425, %v2595
        %v2628 = vadd.f32 %v2426, %v2596
        %v2629 = vadd.f32 %v2427, %v2597
        %v2630 = vadd.f32 %v2428, %v2598
        %v2631 = vadd.f32 %v2429, %v2599
        %v2632 = vadd.f32 %v2430, %v2600
        %v2633 = vadd.f32 %v2431, %v2601
        %v2634 = vadd.f32 %v2432, %v2602
        %v2635 = vadd.f32 %v2433, %v2603
        %v2636 = vadd.f32 %v2434, %v2604
        %v2637 = vadd.f32 %v2435, %v2605
        %v2638 = vadd.f32 %v2436, %v2606
        %v2639 = vadd.f32 %v2437, %v2607
        %v2640 = vadd.f32 %v2438, %v2608
        %v2641 = vadd.f32 %v2439, %v2609
        %s2642 = sld [smem:[#allocation3 + $0x9]]
        %2643 = vset.pattern.permute.xlu0 9
        %2644 = vperm.xlu0 %2643, %v645
        %v2645 = vpop.permute.xlu0 %2644
        %2647 = vset.pattern.permute.xlu0 9
        %2648 = vperm.xlu0 %2647, %v650
        %v2649 = vpop.permute.xlu0 %2648
        %2651 = vset.pattern.permute.xlu0 9
        %2652 = vperm.xlu0 %2651, %v655
        %v2653 = vpop.permute.xlu0 %2652
        %2655 = vset.pattern.permute.xlu0 9
        %2656 = vperm.xlu0 %2655, %v660
        %v2657 = vpop.permute.xlu0 %2656
        %2659 = vset.pattern.permute.xlu0 9
        %2660 = vperm.xlu0 %2659, %v665
        %v2661 = vpop.permute.xlu0 %2660
        %2663 = vset.pattern.permute.xlu0 9
        %2664 = vperm.xlu0 %2663, %v670
        %v2665 = vpop.permute.xlu0 %2664
        %2667 = vset.pattern.permute.xlu0 9
        %2668 = vperm.xlu0 %2667, %v675
        %v2669 = vpop.permute.xlu0 %2668
        %2671 = vset.pattern.permute.xlu0 9
        %2672 = vperm.xlu0 %2671, %v680
        %v2673 = vpop.permute.xlu0 %2672
        %2675 = vset.pattern.permute.xlu0 9
        %2676 = vperm.xlu0 %2675, %v685
        %v2677 = vpop.permute.xlu0 %2676
        %2679 = vset.pattern.permute.xlu0 9
        %2680 = vperm.xlu0 %2679, %v690
        %v2681 = vpop.permute.xlu0 %2680
        %2683 = vset.pattern.permute.xlu0 9
        %2684 = vperm.xlu0 %2683, %v695
        %v2685 = vpop.permute.xlu0 %2684
        %2687 = vset.pattern.permute.xlu0 9
        %2688 = vperm.xlu0 %2687, %v700
        %v2689 = vpop.permute.xlu0 %2688
        %2691 = vset.pattern.permute.xlu0 9
        %2692 = vperm.xlu0 %2691, %v705
        %v2693 = vpop.permute.xlu0 %2692
        %2695 = vset.pattern.permute.xlu0 9
        %2696 = vperm.xlu0 %2695, %v710
        %v2697 = vpop.permute.xlu0 %2696
        %2699 = vset.pattern.permute.xlu0 9
        %2700 = vperm.xlu0 %2699, %v715
        %v2701 = vpop.permute.xlu0 %2700
        %2703 = vset.pattern.permute.xlu0 9
        %2704 = vperm.xlu0 %2703, %v720
        %v2705 = vpop.permute.xlu0 %2704
        %v2707 = vlaneseq
        %v2708 = vshrl.u32 %v2707, 7
        %v2709 = vsub.s32 1, %v2708
        %v2710 = vrot.slane %v804, %v2709
        %v2711 = vlaneseq
        %v2712 = vshrl.u32 %v2711, 7
        %v2713 = vsub.s32 1, %v2712
        %v2714 = vrot.slane %v806, %v2713
        %v2715 = vadd.f32 %v2645, %v2710
        %v2716 = vadd.f32 %v2645, %v2714
        %v2717 = vadd.f32 %v2649, %v2710
        %v2718 = vadd.f32 %v2649, %v2714
        %v2719 = vadd.f32 %v2653, %v2710
        %v2720 = vadd.f32 %v2653, %v2714
        %v2721 = vadd.f32 %v2657, %v2710
        %v2722 = vadd.f32 %v2657, %v2714
        %v2723 = vadd.f32 %v2661, %v2710
        %v2724 = vadd.f32 %v2661, %v2714
        %v2725 = vadd.f32 %v2665, %v2710
        %v2726 = vadd.f32 %v2665, %v2714
        %v2727 = vadd.f32 %v2669, %v2710
        %v2728 = vadd.f32 %v2669, %v2714
        %v2729 = vadd.f32 %v2673, %v2710
        %v2730 = vadd.f32 %v2673, %v2714
        %v2731 = vadd.f32 %v2677, %v2710
        %v2732 = vadd.f32 %v2677, %v2714
        %v2733 = vadd.f32 %v2681, %v2710
        %v2734 = vadd.f32 %v2681, %v2714
        %v2735 = vadd.f32 %v2685, %v2710
        %v2736 = vadd.f32 %v2685, %v2714
        %v2737 = vadd.f32 %v2689, %v2710
        %v2738 = vadd.f32 %v2689, %v2714
        %v2739 = vadd.f32 %v2693, %v2710
        %v2740 = vadd.f32 %v2693, %v2714
        %v2741 = vadd.f32 %v2697, %v2710
        %v2742 = vadd.f32 %v2697, %v2714
        %v2743 = vadd.f32 %v2701, %v2710
        %v2744 = vadd.f32 %v2701, %v2714
        %v2745 = vadd.f32 %v2705, %v2710
        %v2746 = vadd.f32 %v2705, %v2714
        %v2747 = vtanh.pop %v2715
        %v2748 = vtanh.pop %v2716
        %v2749 = vtanh.pop %v2717
        %v2750 = vtanh.pop %v2718
        %v2751 = vtanh.pop %v2719
        %v2752 = vtanh.pop %v2720
        %v2753 = vtanh.pop %v2721
        %v2754 = vtanh.pop %v2722
        %v2755 = vtanh.pop %v2723
        %v2756 = vtanh.pop %v2724
        %v2757 = vtanh.pop %v2725
        %v2758 = vtanh.pop %v2726
        %v2759 = vtanh.pop %v2727
        %v2760 = vtanh.pop %v2728
        %v2761 = vtanh.pop %v2729
        %v2762 = vtanh.pop %v2730
        %v2763 = vtanh.pop %v2731
        %v2764 = vtanh.pop %v2732
        %v2765 = vtanh.pop %v2733
        %v2766 = vtanh.pop %v2734
        %v2767 = vtanh.pop %v2735
        %v2768 = vtanh.pop %v2736
        %v2769 = vtanh.pop %v2737
        %v2770 = vtanh.pop %v2738
        %v2771 = vtanh.pop %v2739
        %v2772 = vtanh.pop %v2740
        %v2773 = vtanh.pop %v2741
        %v2774 = vtanh.pop %v2742
        %v2775 = vtanh.pop %v2743
        %v2776 = vtanh.pop %v2744
        %v2777 = vtanh.pop %v2745
        %v2778 = vtanh.pop %v2746
        %v2779 = vstv %s2642
        %v2780 = vmul.f32 %v2779, %v2747
        %v2781 = vmul.f32 %v2779, %v2748
        %v2782 = vmul.f32 %v2779, %v2749
        %v2783 = vmul.f32 %v2779, %v2750
        %v2784 = vmul.f32 %v2779, %v2751
        %v2785 = vmul.f32 %v2779, %v2752
        %v2786 = vmul.f32 %v2779, %v2753
        %v2787 = vmul.f32 %v2779, %v2754
        %v2788 = vmul.f32 %v2779, %v2755
        %v2789 = vmul.f32 %v2779, %v2756
        %v2790 = vmul.f32 %v2779, %v2757
        %v2791 = vmul.f32 %v2779, %v2758
        %v2792 = vmul.f32 %v2779, %v2759
        %v2793 = vmul.f32 %v2779, %v2760
        %v2794 = vmul.f32 %v2779, %v2761
        %v2795 = vmul.f32 %v2779, %v2762
        %v2796 = vmul.f32 %v2779, %v2763
        %v2797 = vmul.f32 %v2779, %v2764
        %v2798 = vmul.f32 %v2779, %v2765
        %v2799 = vmul.f32 %v2779, %v2766
        %v2800 = vmul.f32 %v2779, %v2767
        %v2801 = vmul.f32 %v2779, %v2768
        %v2802 = vmul.f32 %v2779, %v2769
        %v2803 = vmul.f32 %v2779, %v2770
        %v2804 = vmul.f32 %v2779, %v2771
        %v2805 = vmul.f32 %v2779, %v2772
        %v2806 = vmul.f32 %v2779, %v2773
        %v2807 = vmul.f32 %v2779, %v2774
        %v2808 = vmul.f32 %v2779, %v2775
        %v2809 = vmul.f32 %v2779, %v2776
        %v2810 = vmul.f32 %v2779, %v2777
        %v2811 = vmul.f32 %v2779, %v2778
        %v2812 = vadd.f32 %v2610, %v2780
        %v2813 = vadd.f32 %v2611, %v2781
        %v2814 = vadd.f32 %v2612, %v2782
        %v2815 = vadd.f32 %v2613, %v2783
        %v2816 = vadd.f32 %v2614, %v2784
        %v2817 = vadd.f32 %v2615, %v2785
        %v2818 = vadd.f32 %v2616, %v2786
        %v2819 = vadd.f32 %v2617, %v2787
        %v2820 = vadd.f32 %v2618, %v2788
        %v2821 = vadd.f32 %v2619, %v2789
        %v2822 = vadd.f32 %v2620, %v2790
        %v2823 = vadd.f32 %v2621, %v2791
        %v2824 = vadd.f32 %v2622, %v2792
        %v2825 = vadd.f32 %v2623, %v2793
        %v2826 = vadd.f32 %v2624, %v2794
        %v2827 = vadd.f32 %v2625, %v2795
        %v2828 = vadd.f32 %v2626, %v2796
        %v2829 = vadd.f32 %v2627, %v2797
        %v2830 = vadd.f32 %v2628, %v2798
        %v2831 = vadd.f32 %v2629, %v2799
        %v2832 = vadd.f32 %v2630, %v2800
        %v2833 = vadd.f32 %v2631, %v2801
        %v2834 = vadd.f32 %v2632, %v2802
        %v2835 = vadd.f32 %v2633, %v2803
        %v2836 = vadd.f32 %v2634, %v2804
        %v2837 = vadd.f32 %v2635, %v2805
        %v2838 = vadd.f32 %v2636, %v2806
        %v2839 = vadd.f32 %v2637, %v2807
        %v2840 = vadd.f32 %v2638, %v2808
        %v2841 = vadd.f32 %v2639, %v2809
        %v2842 = vadd.f32 %v2640, %v2810
        %v2843 = vadd.f32 %v2641, %v2811
        %s2844 = sld [smem:[#allocation3 + $0xa]]
        %2845 = vset.pattern.permute.xlu0 10
        %2846 = vperm.xlu0 %2845, %v645
        %v2847 = vpop.permute.xlu0 %2846
        %2849 = vset.pattern.permute.xlu0 10
        %2850 = vperm.xlu0 %2849, %v650
        %v2851 = vpop.permute.xlu0 %2850
        %2853 = vset.pattern.permute.xlu0 10
        %2854 = vperm.xlu0 %2853, %v655
        %v2855 = vpop.permute.xlu0 %2854
        %2857 = vset.pattern.permute.xlu0 10
        %2858 = vperm.xlu0 %2857, %v660
        %v2859 = vpop.permute.xlu0 %2858
        %2861 = vset.pattern.permute.xlu0 10
        %2862 = vperm.xlu0 %2861, %v665
        %v2863 = vpop.permute.xlu0 %2862
        %2865 = vset.pattern.permute.xlu0 10
        %2866 = vperm.xlu0 %2865, %v670
        %v2867 = vpop.permute.xlu0 %2866
        %2869 = vset.pattern.permute.xlu0 10
        %2870 = vperm.xlu0 %2869, %v675
        %v2871 = vpop.permute.xlu0 %2870
        %2873 = vset.pattern.permute.xlu0 10
        %2874 = vperm.xlu0 %2873, %v680
        %v2875 = vpop.permute.xlu0 %2874
        %2877 = vset.pattern.permute.xlu0 10
        %2878 = vperm.xlu0 %2877, %v685
        %v2879 = vpop.permute.xlu0 %2878
        %2881 = vset.pattern.permute.xlu0 10
        %2882 = vperm.xlu0 %2881, %v690
        %v2883 = vpop.permute.xlu0 %2882
        %2885 = vset.pattern.permute.xlu0 10
        %2886 = vperm.xlu0 %2885, %v695
        %v2887 = vpop.permute.xlu0 %2886
        %2889 = vset.pattern.permute.xlu0 10
        %2890 = vperm.xlu0 %2889, %v700
        %v2891 = vpop.permute.xlu0 %2890
        %2893 = vset.pattern.permute.xlu0 10
        %2894 = vperm.xlu0 %2893, %v705
        %v2895 = vpop.permute.xlu0 %2894
        %2897 = vset.pattern.permute.xlu0 10
        %2898 = vperm.xlu0 %2897, %v710
        %v2899 = vpop.permute.xlu0 %2898
        %2901 = vset.pattern.permute.xlu0 10
        %2902 = vperm.xlu0 %2901, %v715
        %v2903 = vpop.permute.xlu0 %2902
        %2905 = vset.pattern.permute.xlu0 10
        %2906 = vperm.xlu0 %2905, %v720
        %v2907 = vpop.permute.xlu0 %2906
        %v2909 = vlaneseq
        %v2910 = vshrl.u32 %v2909, 7
        %v2911 = vsub.s32 2, %v2910
        %v2912 = vrot.slane %v804, %v2911
        %v2913 = vlaneseq
        %v2914 = vshrl.u32 %v2913, 7
        %v2915 = vsub.s32 2, %v2914
        %v2916 = vrot.slane %v806, %v2915
        %v2917 = vadd.f32 %v2847, %v2912
        %v2918 = vadd.f32 %v2847, %v2916
        %v2919 = vadd.f32 %v2851, %v2912
        %v2920 = vadd.f32 %v2851, %v2916
        %v2921 = vadd.f32 %v2855, %v2912
        %v2922 = vadd.f32 %v2855, %v2916
        %v2923 = vadd.f32 %v2859, %v2912
        %v2924 = vadd.f32 %v2859, %v2916
        %v2925 = vadd.f32 %v2863, %v2912
        %v2926 = vadd.f32 %v2863, %v2916
        %v2927 = vadd.f32 %v2867, %v2912
        %v2928 = vadd.f32 %v2867, %v2916
        %v2929 = vadd.f32 %v2871, %v2912
        %v2930 = vadd.f32 %v2871, %v2916
        %v2931 = vadd.f32 %v2875, %v2912
        %v2932 = vadd.f32 %v2875, %v2916
        %v2933 = vadd.f32 %v2879, %v2912
        %v2934 = vadd.f32 %v2879, %v2916
        %v2935 = vadd.f32 %v2883, %v2912
        %v2936 = vadd.f32 %v2883, %v2916
        %v2937 = vadd.f32 %v2887, %v2912
        %v2938 = vadd.f32 %v2887, %v2916
        %v2939 = vadd.f32 %v2891, %v2912
        %v2940 = vadd.f32 %v2891, %v2916
        %v2941 = vadd.f32 %v2895, %v2912
        %v2942 = vadd.f32 %v2895, %v2916
        %v2943 = vadd.f32 %v2899, %v2912
        %v2944 = vadd.f32 %v2899, %v2916
        %v2945 = vadd.f32 %v2903, %v2912
        %v2946 = vadd.f32 %v2903, %v2916
        %v2947 = vadd.f32 %v2907, %v2912
        %v2948 = vadd.f32 %v2907, %v2916
        %v2949 = vtanh.pop %v2917
        %v2950 = vtanh.pop %v2918
        %v2951 = vtanh.pop %v2919
        %v2952 = vtanh.pop %v2920
        %v2953 = vtanh.pop %v2921
        %v2954 = vtanh.pop %v2922
        %v2955 = vtanh.pop %v2923
        %v2956 = vtanh.pop %v2924
        %v2957 = vtanh.pop %v2925
        %v2958 = vtanh.pop %v2926
        %v2959 = vtanh.pop %v2927
        %v2960 = vtanh.pop %v2928
        %v2961 = vtanh.pop %v2929
        %v2962 = vtanh.pop %v2930
        %v2963 = vtanh.pop %v2931
        %v2964 = vtanh.pop %v2932
        %v2965 = vtanh.pop %v2933
        %v2966 = vtanh.pop %v2934
        %v2967 = vtanh.pop %v2935
        %v2968 = vtanh.pop %v2936
        %v2969 = vtanh.pop %v2937
        %v2970 = vtanh.pop %v2938
        %v2971 = vtanh.pop %v2939
        %v2972 = vtanh.pop %v2940
        %v2973 = vtanh.pop %v2941
        %v2974 = vtanh.pop %v2942
        %v2975 = vtanh.pop %v2943
        %v2976 = vtanh.pop %v2944
        %v2977 = vtanh.pop %v2945
        %v2978 = vtanh.pop %v2946
        %v2979 = vtanh.pop %v2947
        %v2980 = vtanh.pop %v2948
        %v2981 = vstv %s2844
        %v2982 = vmul.f32 %v2981, %v2949
        %v2983 = vmul.f32 %v2981, %v2950
        %v2984 = vmul.f32 %v2981, %v2951
        %v2985 = vmul.f32 %v2981, %v2952
        %v2986 = vmul.f32 %v2981, %v2953
        %v2987 = vmul.f32 %v2981, %v2954
        %v2988 = vmul.f32 %v2981, %v2955
        %v2989 = vmul.f32 %v2981, %v2956
        %v2990 = vmul.f32 %v2981, %v2957
        %v2991 = vmul.f32 %v2981, %v2958
        %v2992 = vmul.f32 %v2981, %v2959
        %v2993 = vmul.f32 %v2981, %v2960
        %v2994 = vmul.f32 %v2981, %v2961
        %v2995 = vmul.f32 %v2981, %v2962
        %v2996 = vmul.f32 %v2981, %v2963
        %v2997 = vmul.f32 %v2981, %v2964
        %v2998 = vmul.f32 %v2981, %v2965
        %v2999 = vmul.f32 %v2981, %v2966
        %v3000 = vmul.f32 %v2981, %v2967
        %v3001 = vmul.f32 %v2981, %v2968
        %v3002 = vmul.f32 %v2981, %v2969
        %v3003 = vmul.f32 %v2981, %v2970
        %v3004 = vmul.f32 %v2981, %v2971
        %v3005 = vmul.f32 %v2981, %v2972
        %v3006 = vmul.f32 %v2981, %v2973
        %v3007 = vmul.f32 %v2981, %v2974
        %v3008 = vmul.f32 %v2981, %v2975
        %v3009 = vmul.f32 %v2981, %v2976
        %v3010 = vmul.f32 %v2981, %v2977
        %v3011 = vmul.f32 %v2981, %v2978
        %v3012 = vmul.f32 %v2981, %v2979
        %v3013 = vmul.f32 %v2981, %v2980
        %v3014 = vadd.f32 %v2812, %v2982
        %v3015 = vadd.f32 %v2813, %v2983
        %v3016 = vadd.f32 %v2814, %v2984
        %v3017 = vadd.f32 %v2815, %v2985
        %v3018 = vadd.f32 %v2816, %v2986
        %v3019 = vadd.f32 %v2817, %v2987
        %v3020 = vadd.f32 %v2818, %v2988
        %v3021 = vadd.f32 %v2819, %v2989
        %v3022 = vadd.f32 %v2820, %v2990
        %v3023 = vadd.f32 %v2821, %v2991
        %v3024 = vadd.f32 %v2822, %v2992
        %v3025 = vadd.f32 %v2823, %v2993
        %v3026 = vadd.f32 %v2824, %v2994
        %v3027 = vadd.f32 %v2825, %v2995
        %v3028 = vadd.f32 %v2826, %v2996
        %v3029 = vadd.f32 %v2827, %v2997
        %v3030 = vadd.f32 %v2828, %v2998
        %v3031 = vadd.f32 %v2829, %v2999
        %v3032 = vadd.f32 %v2830, %v3000
        %v3033 = vadd.f32 %v2831, %v3001
        %v3034 = vadd.f32 %v2832, %v3002
        %v3035 = vadd.f32 %v2833, %v3003
        %v3036 = vadd.f32 %v2834, %v3004
        %v3037 = vadd.f32 %v2835, %v3005
        %v3038 = vadd.f32 %v2836, %v3006
        %v3039 = vadd.f32 %v2837, %v3007
        %v3040 = vadd.f32 %v2838, %v3008
        %v3041 = vadd.f32 %v2839, %v3009
        %v3042 = vadd.f32 %v2840, %v3010
        %v3043 = vadd.f32 %v2841, %v3011
        %v3044 = vadd.f32 %v2842, %v3012
        %v3045 = vadd.f32 %v2843, %v3013
        %s3046 = sld [smem:[#allocation3 + $0xb]]
        %3047 = vset.pattern.permute.xlu0 11
        %3048 = vperm.xlu0 %3047, %v645
        %v3049 = vpop.permute.xlu0 %3048
        %3051 = vset.pattern.permute.xlu0 11
        %3052 = vperm.xlu0 %3051, %v650
        %v3053 = vpop.permute.xlu0 %3052
        %3055 = vset.pattern.permute.xlu0 11
        %3056 = vperm.xlu0 %3055, %v655
        %v3057 = vpop.permute.xlu0 %3056
        %3059 = vset.pattern.permute.xlu0 11
        %3060 = vperm.xlu0 %3059, %v660
        %v3061 = vpop.permute.xlu0 %3060
        %3063 = vset.pattern.permute.xlu0 11
        %3064 = vperm.xlu0 %3063, %v665
        %v3065 = vpop.permute.xlu0 %3064
        %3067 = vset.pattern.permute.xlu0 11
        %3068 = vperm.xlu0 %3067, %v670
        %v3069 = vpop.permute.xlu0 %3068
        %3071 = vset.pattern.permute.xlu0 11
        %3072 = vperm.xlu0 %3071, %v675
        %v3073 = vpop.permute.xlu0 %3072
        %3075 = vset.pattern.permute.xlu0 11
        %3076 = vperm.xlu0 %3075, %v680
        %v3077 = vpop.permute.xlu0 %3076
        %3079 = vset.pattern.permute.xlu0 11
        %3080 = vperm.xlu0 %3079, %v685
        %v3081 = vpop.permute.xlu0 %3080
        %3083 = vset.pattern.permute.xlu0 11
        %3084 = vperm.xlu0 %3083, %v690
        %v3085 = vpop.permute.xlu0 %3084
        %3087 = vset.pattern.permute.xlu0 11
        %3088 = vperm.xlu0 %3087, %v695
        %v3089 = vpop.permute.xlu0 %3088
        %3091 = vset.pattern.permute.xlu0 11
        %3092 = vperm.xlu0 %3091, %v700
        %v3093 = vpop.permute.xlu0 %3092
        %3095 = vset.pattern.permute.xlu0 11
        %3096 = vperm.xlu0 %3095, %v705
        %v3097 = vpop.permute.xlu0 %3096
        %3099 = vset.pattern.permute.xlu0 11
        %3100 = vperm.xlu0 %3099, %v710
        %v3101 = vpop.permute.xlu0 %3100
        %3103 = vset.pattern.permute.xlu0 11
        %3104 = vperm.xlu0 %3103, %v715
        %v3105 = vpop.permute.xlu0 %3104
        %3107 = vset.pattern.permute.xlu0 11
        %3108 = vperm.xlu0 %3107, %v720
        %v3109 = vpop.permute.xlu0 %3108
        %v3111 = vlaneseq
        %v3112 = vshrl.u32 %v3111, 7
        %v3113 = vsub.s32 3, %v3112
        %v3114 = vrot.slane %v804, %v3113
        %v3115 = vlaneseq
        %v3116 = vshrl.u32 %v3115, 7
        %v3117 = vsub.s32 3, %v3116
        %v3118 = vrot.slane %v806, %v3117
        %v3119 = vadd.f32 %v3049, %v3114
        %v3120 = vadd.f32 %v3049, %v3118
        %v3121 = vadd.f32 %v3053, %v3114
        %v3122 = vadd.f32 %v3053, %v3118
        %v3123 = vadd.f32 %v3057, %v3114
        %v3124 = vadd.f32 %v3057, %v3118
        %v3125 = vadd.f32 %v3061, %v3114
        %v3126 = vadd.f32 %v3061, %v3118
        %v3127 = vadd.f32 %v3065, %v3114
        %v3128 = vadd.f32 %v3065, %v3118
        %v3129 = vadd.f32 %v3069, %v3114
        %v3130 = vadd.f32 %v3069, %v3118
        %v3131 = vadd.f32 %v3073, %v3114
        %v3132 = vadd.f32 %v3073, %v3118
        %v3133 = vadd.f32 %v3077, %v3114
        %v3134 = vadd.f32 %v3077, %v3118
        %v3135 = vadd.f32 %v3081, %v3114
        %v3136 = vadd.f32 %v3081, %v3118
        %v3137 = vadd.f32 %v3085, %v3114
        %v3138 = vadd.f32 %v3085, %v3118
        %v3139 = vadd.f32 %v3089, %v3114
        %v3140 = vadd.f32 %v3089, %v3118
        %v3141 = vadd.f32 %v3093, %v3114
        %v3142 = vadd.f32 %v3093, %v3118
        %v3143 = vadd.f32 %v3097, %v3114
        %v3144 = vadd.f32 %v3097, %v3118
        %v3145 = vadd.f32 %v3101, %v3114
        %v3146 = vadd.f32 %v3101, %v3118
        %v3147 = vadd.f32 %v3105, %v3114
        %v3148 = vadd.f32 %v3105, %v3118
        %v3149 = vadd.f32 %v3109, %v3114
        %v3150 = vadd.f32 %v3109, %v3118
        %v3151 = vtanh.pop %v3119
        %v3152 = vtanh.pop %v3120
        %v3153 = vtanh.pop %v3121
        %v3154 = vtanh.pop %v3122
        %v3155 = vtanh.pop %v3123
        %v3156 = vtanh.pop %v3124
        %v3157 = vtanh.pop %v3125
        %v3158 = vtanh.pop %v3126
        %v3159 = vtanh.pop %v3127
        %v3160 = vtanh.pop %v3128
        %v3161 = vtanh.pop %v3129
        %v3162 = vtanh.pop %v3130
        %v3163 = vtanh.pop %v3131
        %v3164 = vtanh.pop %v3132
        %v3165 = vtanh.pop %v3133
        %v3166 = vtanh.pop %v3134
        %v3167 = vtanh.pop %v3135
        %v3168 = vtanh.pop %v3136
        %v3169 = vtanh.pop %v3137
        %v3170 = vtanh.pop %v3138
        %v3171 = vtanh.pop %v3139
        %v3172 = vtanh.pop %v3140
        %v3173 = vtanh.pop %v3141
        %v3174 = vtanh.pop %v3142
        %v3175 = vtanh.pop %v3143
        %v3176 = vtanh.pop %v3144
        %v3177 = vtanh.pop %v3145
        %v3178 = vtanh.pop %v3146
        %v3179 = vtanh.pop %v3147
        %v3180 = vtanh.pop %v3148
        %v3181 = vtanh.pop %v3149
        %v3182 = vtanh.pop %v3150
        %v3183 = vstv %s3046
        %v3184 = vmul.f32 %v3183, %v3151
        %v3185 = vmul.f32 %v3183, %v3152
        %v3186 = vmul.f32 %v3183, %v3153
        %v3187 = vmul.f32 %v3183, %v3154
        %v3188 = vmul.f32 %v3183, %v3155
        %v3189 = vmul.f32 %v3183, %v3156
        %v3190 = vmul.f32 %v3183, %v3157
        %v3191 = vmul.f32 %v3183, %v3158
        %v3192 = vmul.f32 %v3183, %v3159
        %v3193 = vmul.f32 %v3183, %v3160
        %v3194 = vmul.f32 %v3183, %v3161
        %v3195 = vmul.f32 %v3183, %v3162
        %v3196 = vmul.f32 %v3183, %v3163
        %v3197 = vmul.f32 %v3183, %v3164
        %v3198 = vmul.f32 %v3183, %v3165
        %v3199 = vmul.f32 %v3183, %v3166
        %v3200 = vmul.f32 %v3183, %v3167
        %v3201 = vmul.f32 %v3183, %v3168
        %v3202 = vmul.f32 %v3183, %v3169
        %v3203 = vmul.f32 %v3183, %v3170
        %v3204 = vmul.f32 %v3183, %v3171
        %v3205 = vmul.f32 %v3183, %v3172
        %v3206 = vmul.f32 %v3183, %v3173
        %v3207 = vmul.f32 %v3183, %v3174
        %v3208 = vmul.f32 %v3183, %v3175
        %v3209 = vmul.f32 %v3183, %v3176
        %v3210 = vmul.f32 %v3183, %v3177
        %v3211 = vmul.f32 %v3183, %v3178
        %v3212 = vmul.f32 %v3183, %v3179
        %v3213 = vmul.f32 %v3183, %v3180
        %v3214 = vmul.f32 %v3183, %v3181
        %v3215 = vmul.f32 %v3183, %v3182
        %v3216 = vadd.f32 %v3014, %v3184
        %v3217 = vadd.f32 %v3015, %v3185
        %v3218 = vadd.f32 %v3016, %v3186
        %v3219 = vadd.f32 %v3017, %v3187
        %v3220 = vadd.f32 %v3018, %v3188
        %v3221 = vadd.f32 %v3019, %v3189
        %v3222 = vadd.f32 %v3020, %v3190
        %v3223 = vadd.f32 %v3021, %v3191
        %v3224 = vadd.f32 %v3022, %v3192
        %v3225 = vadd.f32 %v3023, %v3193
        %v3226 = vadd.f32 %v3024, %v3194
        %v3227 = vadd.f32 %v3025, %v3195
        %v3228 = vadd.f32 %v3026, %v3196
        %v3229 = vadd.f32 %v3027, %v3197
        %v3230 = vadd.f32 %v3028, %v3198
        %v3231 = vadd.f32 %v3029, %v3199
        %v3232 = vadd.f32 %v3030, %v3200
        %v3233 = vadd.f32 %v3031, %v3201
        %v3234 = vadd.f32 %v3032, %v3202
        %v3235 = vadd.f32 %v3033, %v3203
        %v3236 = vadd.f32 %v3034, %v3204
        %v3237 = vadd.f32 %v3035, %v3205
        %v3238 = vadd.f32 %v3036, %v3206
        %v3239 = vadd.f32 %v3037, %v3207
        %v3240 = vadd.f32 %v3038, %v3208
        %v3241 = vadd.f32 %v3039, %v3209
        %v3242 = vadd.f32 %v3040, %v3210
        %v3243 = vadd.f32 %v3041, %v3211
        %v3244 = vadd.f32 %v3042, %v3212
        %v3245 = vadd.f32 %v3043, %v3213
        %v3246 = vadd.f32 %v3044, %v3214
        %v3247 = vadd.f32 %v3045, %v3215
        %s3248 = sld [smem:[#allocation3 + $0xc]]
        %3249 = vset.pattern.permute.xlu0 12
        %3250 = vperm.xlu0 %3249, %v645
        %v3251 = vpop.permute.xlu0 %3250
        %3253 = vset.pattern.permute.xlu0 12
        %3254 = vperm.xlu0 %3253, %v650
        %v3255 = vpop.permute.xlu0 %3254
        %3257 = vset.pattern.permute.xlu0 12
        %3258 = vperm.xlu0 %3257, %v655
        %v3259 = vpop.permute.xlu0 %3258
        %3261 = vset.pattern.permute.xlu0 12
        %3262 = vperm.xlu0 %3261, %v660
        %v3263 = vpop.permute.xlu0 %3262
        %3265 = vset.pattern.permute.xlu0 12
        %3266 = vperm.xlu0 %3265, %v665
        %v3267 = vpop.permute.xlu0 %3266
        %3269 = vset.pattern.permute.xlu0 12
        %3270 = vperm.xlu0 %3269, %v670
        %v3271 = vpop.permute.xlu0 %3270
        %3273 = vset.pattern.permute.xlu0 12
        %3274 = vperm.xlu0 %3273, %v675
        %v3275 = vpop.permute.xlu0 %3274
        %3277 = vset.pattern.permute.xlu0 12
        %3278 = vperm.xlu0 %3277, %v680
        %v3279 = vpop.permute.xlu0 %3278
        %3281 = vset.pattern.permute.xlu0 12
        %3282 = vperm.xlu0 %3281, %v685
        %v3283 = vpop.permute.xlu0 %3282
        %3285 = vset.pattern.permute.xlu0 12
        %3286 = vperm.xlu0 %3285, %v690
        %v3287 = vpop.permute.xlu0 %3286
        %3289 = vset.pattern.permute.xlu0 12
        %3290 = vperm.xlu0 %3289, %v695
        %v3291 = vpop.permute.xlu0 %3290
        %3293 = vset.pattern.permute.xlu0 12
        %3294 = vperm.xlu0 %3293, %v700
        %v3295 = vpop.permute.xlu0 %3294
        %3297 = vset.pattern.permute.xlu0 12
        %3298 = vperm.xlu0 %3297, %v705
        %v3299 = vpop.permute.xlu0 %3298
        %3301 = vset.pattern.permute.xlu0 12
        %3302 = vperm.xlu0 %3301, %v710
        %v3303 = vpop.permute.xlu0 %3302
        %3305 = vset.pattern.permute.xlu0 12
        %3306 = vperm.xlu0 %3305, %v715
        %v3307 = vpop.permute.xlu0 %3306
        %3309 = vset.pattern.permute.xlu0 12
        %3310 = vperm.xlu0 %3309, %v720
        %v3311 = vpop.permute.xlu0 %3310
        %v3313 = vlaneseq
        %v3314 = vshrl.u32 %v3313, 7
        %v3315 = vsub.s32 4, %v3314
        %v3316 = vrot.slane %v804, %v3315
        %v3317 = vlaneseq
        %v3318 = vshrl.u32 %v3317, 7
        %v3319 = vsub.s32 4, %v3318
        %v3320 = vrot.slane %v806, %v3319
        %v3321 = vadd.f32 %v3251, %v3316
        %v3322 = vadd.f32 %v3251, %v3320
        %v3323 = vadd.f32 %v3255, %v3316
        %v3324 = vadd.f32 %v3255, %v3320
        %v3325 = vadd.f32 %v3259, %v3316
        %v3326 = vadd.f32 %v3259, %v3320
        %v3327 = vadd.f32 %v3263, %v3316
        %v3328 = vadd.f32 %v3263, %v3320
        %v3329 = vadd.f32 %v3267, %v3316
        %v3330 = vadd.f32 %v3267, %v3320
        %v3331 = vadd.f32 %v3271, %v3316
        %v3332 = vadd.f32 %v3271, %v3320
        %v3333 = vadd.f32 %v3275, %v3316
        %v3334 = vadd.f32 %v3275, %v3320
        %v3335 = vadd.f32 %v3279, %v3316
        %v3336 = vadd.f32 %v3279, %v3320
        %v3337 = vadd.f32 %v3283, %v3316
        %v3338 = vadd.f32 %v3283, %v3320
        %v3339 = vadd.f32 %v3287, %v3316
        %v3340 = vadd.f32 %v3287, %v3320
        %v3341 = vadd.f32 %v3291, %v3316
        %v3342 = vadd.f32 %v3291, %v3320
        %v3343 = vadd.f32 %v3295, %v3316
        %v3344 = vadd.f32 %v3295, %v3320
        %v3345 = vadd.f32 %v3299, %v3316
        %v3346 = vadd.f32 %v3299, %v3320
        %v3347 = vadd.f32 %v3303, %v3316
        %v3348 = vadd.f32 %v3303, %v3320
        %v3349 = vadd.f32 %v3307, %v3316
        %v3350 = vadd.f32 %v3307, %v3320
        %v3351 = vadd.f32 %v3311, %v3316
        %v3352 = vadd.f32 %v3311, %v3320
        %v3353 = vtanh.pop %v3321
        %v3354 = vtanh.pop %v3322
        %v3355 = vtanh.pop %v3323
        %v3356 = vtanh.pop %v3324
        %v3357 = vtanh.pop %v3325
        %v3358 = vtanh.pop %v3326
        %v3359 = vtanh.pop %v3327
        %v3360 = vtanh.pop %v3328
        %v3361 = vtanh.pop %v3329
        %v3362 = vtanh.pop %v3330
        %v3363 = vtanh.pop %v3331
        %v3364 = vtanh.pop %v3332
        %v3365 = vtanh.pop %v3333
        %v3366 = vtanh.pop %v3334
        %v3367 = vtanh.pop %v3335
        %v3368 = vtanh.pop %v3336
        %v3369 = vtanh.pop %v3337
        %v3370 = vtanh.pop %v3338
        %v3371 = vtanh.pop %v3339
        %v3372 = vtanh.pop %v3340
        %v3373 = vtanh.pop %v3341
        %v3374 = vtanh.pop %v3342
        %v3375 = vtanh.pop %v3343
        %v3376 = vtanh.pop %v3344
        %v3377 = vtanh.pop %v3345
        %v3378 = vtanh.pop %v3346
        %v3379 = vtanh.pop %v3347
        %v3380 = vtanh.pop %v3348
        %v3381 = vtanh.pop %v3349
        %v3382 = vtanh.pop %v3350
        %v3383 = vtanh.pop %v3351
        %v3384 = vtanh.pop %v3352
        %v3385 = vstv %s3248
        %v3386 = vmul.f32 %v3385, %v3353
        %v3387 = vmul.f32 %v3385, %v3354
        %v3388 = vmul.f32 %v3385, %v3355
        %v3389 = vmul.f32 %v3385, %v3356
        %v3390 = vmul.f32 %v3385, %v3357
        %v3391 = vmul.f32 %v3385, %v3358
        %v3392 = vmul.f32 %v3385, %v3359
        %v3393 = vmul.f32 %v3385, %v3360
        %v3394 = vmul.f32 %v3385, %v3361
        %v3395 = vmul.f32 %v3385, %v3362
        %v3396 = vmul.f32 %v3385, %v3363
        %v3397 = vmul.f32 %v3385, %v3364
        %v3398 = vmul.f32 %v3385, %v3365
        %v3399 = vmul.f32 %v3385, %v3366
        %v3400 = vmul.f32 %v3385, %v3367
        %v3401 = vmul.f32 %v3385, %v3368
        %v3402 = vmul.f32 %v3385, %v3369
        %v3403 = vmul.f32 %v3385, %v3370
        %v3404 = vmul.f32 %v3385, %v3371
        %v3405 = vmul.f32 %v3385, %v3372
        %v3406 = vmul.f32 %v3385, %v3373
        %v3407 = vmul.f32 %v3385, %v3374
        %v3408 = vmul.f32 %v3385, %v3375
        %v3409 = vmul.f32 %v3385, %v3376
        %v3410 = vmul.f32 %v3385, %v3377
        %v3411 = vmul.f32 %v3385, %v3378
        %v3412 = vmul.f32 %v3385, %v3379
        %v3413 = vmul.f32 %v3385, %v3380
        %v3414 = vmul.f32 %v3385, %v3381
        %v3415 = vmul.f32 %v3385, %v3382
        %v3416 = vmul.f32 %v3385, %v3383
        %v3417 = vmul.f32 %v3385, %v3384
        %v3418 = vadd.f32 %v3216, %v3386
        %v3419 = vadd.f32 %v3217, %v3387
        %v3420 = vadd.f32 %v3218, %v3388
        %v3421 = vadd.f32 %v3219, %v3389
        %v3422 = vadd.f32 %v3220, %v3390
        %v3423 = vadd.f32 %v3221, %v3391
        %v3424 = vadd.f32 %v3222, %v3392
        %v3425 = vadd.f32 %v3223, %v3393
        %v3426 = vadd.f32 %v3224, %v3394
        %v3427 = vadd.f32 %v3225, %v3395
        %v3428 = vadd.f32 %v3226, %v3396
        %v3429 = vadd.f32 %v3227, %v3397
        %v3430 = vadd.f32 %v3228, %v3398
        %v3431 = vadd.f32 %v3229, %v3399
        %v3432 = vadd.f32 %v3230, %v3400
        %v3433 = vadd.f32 %v3231, %v3401
        %v3434 = vadd.f32 %v3232, %v3402
        %v3435 = vadd.f32 %v3233, %v3403
        %v3436 = vadd.f32 %v3234, %v3404
        %v3437 = vadd.f32 %v3235, %v3405
        %v3438 = vadd.f32 %v3236, %v3406
        %v3439 = vadd.f32 %v3237, %v3407
        %v3440 = vadd.f32 %v3238, %v3408
        %v3441 = vadd.f32 %v3239, %v3409
        %v3442 = vadd.f32 %v3240, %v3410
        %v3443 = vadd.f32 %v3241, %v3411
        %v3444 = vadd.f32 %v3242, %v3412
        %v3445 = vadd.f32 %v3243, %v3413
        %v3446 = vadd.f32 %v3244, %v3414
        %v3447 = vadd.f32 %v3245, %v3415
        %v3448 = vadd.f32 %v3246, %v3416
        %v3449 = vadd.f32 %v3247, %v3417
        %s3450 = sld [smem:[#allocation3 + $0xd]]
        %3451 = vset.pattern.permute.xlu0 13
        %3452 = vperm.xlu0 %3451, %v645
        %v3453 = vpop.permute.xlu0 %3452
        %3455 = vset.pattern.permute.xlu0 13
        %3456 = vperm.xlu0 %3455, %v650
        %v3457 = vpop.permute.xlu0 %3456
        %3459 = vset.pattern.permute.xlu0 13
        %3460 = vperm.xlu0 %3459, %v655
        %v3461 = vpop.permute.xlu0 %3460
        %3463 = vset.pattern.permute.xlu0 13
        %3464 = vperm.xlu0 %3463, %v660
        %v3465 = vpop.permute.xlu0 %3464
        %3467 = vset.pattern.permute.xlu0 13
        %3468 = vperm.xlu0 %3467, %v665
        %v3469 = vpop.permute.xlu0 %3468
        %3471 = vset.pattern.permute.xlu0 13
        %3472 = vperm.xlu0 %3471, %v670
        %v3473 = vpop.permute.xlu0 %3472
        %3475 = vset.pattern.permute.xlu0 13
        %3476 = vperm.xlu0 %3475, %v675
        %v3477 = vpop.permute.xlu0 %3476
        %3479 = vset.pattern.permute.xlu0 13
        %3480 = vperm.xlu0 %3479, %v680
        %v3481 = vpop.permute.xlu0 %3480
        %3483 = vset.pattern.permute.xlu0 13
        %3484 = vperm.xlu0 %3483, %v685
        %v3485 = vpop.permute.xlu0 %3484
        %3487 = vset.pattern.permute.xlu0 13
        %3488 = vperm.xlu0 %3487, %v690
        %v3489 = vpop.permute.xlu0 %3488
        %3491 = vset.pattern.permute.xlu0 13
        %3492 = vperm.xlu0 %3491, %v695
        %v3493 = vpop.permute.xlu0 %3492
        %3495 = vset.pattern.permute.xlu0 13
        %3496 = vperm.xlu0 %3495, %v700
        %v3497 = vpop.permute.xlu0 %3496
        %3499 = vset.pattern.permute.xlu0 13
        %3500 = vperm.xlu0 %3499, %v705
        %v3501 = vpop.permute.xlu0 %3500
        %3503 = vset.pattern.permute.xlu0 13
        %3504 = vperm.xlu0 %3503, %v710
        %v3505 = vpop.permute.xlu0 %3504
        %3507 = vset.pattern.permute.xlu0 13
        %3508 = vperm.xlu0 %3507, %v715
        %v3509 = vpop.permute.xlu0 %3508
        %3511 = vset.pattern.permute.xlu0 13
        %3512 = vperm.xlu0 %3511, %v720
        %v3513 = vpop.permute.xlu0 %3512
        %v3515 = vlaneseq
        %v3516 = vshrl.u32 %v3515, 7
        %v3517 = vsub.s32 5, %v3516
        %v3518 = vrot.slane %v804, %v3517
        %v3519 = vlaneseq
        %v3520 = vshrl.u32 %v3519, 7
        %v3521 = vsub.s32 5, %v3520
        %v3522 = vrot.slane %v806, %v3521
        %v3523 = vadd.f32 %v3453, %v3518
        %v3524 = vadd.f32 %v3453, %v3522
        %v3525 = vadd.f32 %v3457, %v3518
        %v3526 = vadd.f32 %v3457, %v3522
        %v3527 = vadd.f32 %v3461, %v3518
        %v3528 = vadd.f32 %v3461, %v3522
        %v3529 = vadd.f32 %v3465, %v3518
        %v3530 = vadd.f32 %v3465, %v3522
        %v3531 = vadd.f32 %v3469, %v3518
        %v3532 = vadd.f32 %v3469, %v3522
        %v3533 = vadd.f32 %v3473, %v3518
        %v3534 = vadd.f32 %v3473, %v3522
        %v3535 = vadd.f32 %v3477, %v3518
        %v3536 = vadd.f32 %v3477, %v3522
        %v3537 = vadd.f32 %v3481, %v3518
        %v3538 = vadd.f32 %v3481, %v3522
        %v3539 = vadd.f32 %v3485, %v3518
        %v3540 = vadd.f32 %v3485, %v3522
        %v3541 = vadd.f32 %v3489, %v3518
        %v3542 = vadd.f32 %v3489, %v3522
        %v3543 = vadd.f32 %v3493, %v3518
        %v3544 = vadd.f32 %v3493, %v3522
        %v3545 = vadd.f32 %v3497, %v3518
        %v3546 = vadd.f32 %v3497, %v3522
        %v3547 = vadd.f32 %v3501, %v3518
        %v3548 = vadd.f32 %v3501, %v3522
        %v3549 = vadd.f32 %v3505, %v3518
        %v3550 = vadd.f32 %v3505, %v3522
        %v3551 = vadd.f32 %v3509, %v3518
        %v3552 = vadd.f32 %v3509, %v3522
        %v3553 = vadd.f32 %v3513, %v3518
        %v3554 = vadd.f32 %v3513, %v3522
        %v3555 = vtanh.pop %v3523
        %v3556 = vtanh.pop %v3524
        %v3557 = vtanh.pop %v3525
        %v3558 = vtanh.pop %v3526
        %v3559 = vtanh.pop %v3527
        %v3560 = vtanh.pop %v3528
        %v3561 = vtanh.pop %v3529
        %v3562 = vtanh.pop %v3530
        %v3563 = vtanh.pop %v3531
        %v3564 = vtanh.pop %v3532
        %v3565 = vtanh.pop %v3533
        %v3566 = vtanh.pop %v3534
        %v3567 = vtanh.pop %v3535
        %v3568 = vtanh.pop %v3536
        %v3569 = vtanh.pop %v3537
        %v3570 = vtanh.pop %v3538
        %v3571 = vtanh.pop %v3539
        %v3572 = vtanh.pop %v3540
        %v3573 = vtanh.pop %v3541
        %v3574 = vtanh.pop %v3542
        %v3575 = vtanh.pop %v3543
        %v3576 = vtanh.pop %v3544
        %v3577 = vtanh.pop %v3545
        %v3578 = vtanh.pop %v3546
        %v3579 = vtanh.pop %v3547
        %v3580 = vtanh.pop %v3548
        %v3581 = vtanh.pop %v3549
        %v3582 = vtanh.pop %v3550
        %v3583 = vtanh.pop %v3551
        %v3584 = vtanh.pop %v3552
        %v3585 = vtanh.pop %v3553
        %v3586 = vtanh.pop %v3554
        %v3587 = vstv %s3450
        %v3588 = vmul.f32 %v3587, %v3555
        %v3589 = vmul.f32 %v3587, %v3556
        %v3590 = vmul.f32 %v3587, %v3557
        %v3591 = vmul.f32 %v3587, %v3558
        %v3592 = vmul.f32 %v3587, %v3559
        %v3593 = vmul.f32 %v3587, %v3560
        %v3594 = vmul.f32 %v3587, %v3561
        %v3595 = vmul.f32 %v3587, %v3562
        %v3596 = vmul.f32 %v3587, %v3563
        %v3597 = vmul.f32 %v3587, %v3564
        %v3598 = vmul.f32 %v3587, %v3565
        %v3599 = vmul.f32 %v3587, %v3566
        %v3600 = vmul.f32 %v3587, %v3567
        %v3601 = vmul.f32 %v3587, %v3568
        %v3602 = vmul.f32 %v3587, %v3569
        %v3603 = vmul.f32 %v3587, %v3570
        %v3604 = vmul.f32 %v3587, %v3571
        %v3605 = vmul.f32 %v3587, %v3572
        %v3606 = vmul.f32 %v3587, %v3573
        %v3607 = vmul.f32 %v3587, %v3574
        %v3608 = vmul.f32 %v3587, %v3575
        %v3609 = vmul.f32 %v3587, %v3576
        %v3610 = vmul.f32 %v3587, %v3577
        %v3611 = vmul.f32 %v3587, %v3578
        %v3612 = vmul.f32 %v3587, %v3579
        %v3613 = vmul.f32 %v3587, %v3580
        %v3614 = vmul.f32 %v3587, %v3581
        %v3615 = vmul.f32 %v3587, %v3582
        %v3616 = vmul.f32 %v3587, %v3583
        %v3617 = vmul.f32 %v3587, %v3584
        %v3618 = vmul.f32 %v3587, %v3585
        %v3619 = vmul.f32 %v3587, %v3586
        %v3620 = vadd.f32 %v3418, %v3588
        %v3621 = vadd.f32 %v3419, %v3589
        %v3622 = vadd.f32 %v3420, %v3590
        %v3623 = vadd.f32 %v3421, %v3591
        %v3624 = vadd.f32 %v3422, %v3592
        %v3625 = vadd.f32 %v3423, %v3593
        %v3626 = vadd.f32 %v3424, %v3594
        %v3627 = vadd.f32 %v3425, %v3595
        %v3628 = vadd.f32 %v3426, %v3596
        %v3629 = vadd.f32 %v3427, %v3597
        %v3630 = vadd.f32 %v3428, %v3598
        %v3631 = vadd.f32 %v3429, %v3599
        %v3632 = vadd.f32 %v3430, %v3600
        %v3633 = vadd.f32 %v3431, %v3601
        %v3634 = vadd.f32 %v3432, %v3602
        %v3635 = vadd.f32 %v3433, %v3603
        %v3636 = vadd.f32 %v3434, %v3604
        %v3637 = vadd.f32 %v3435, %v3605
        %v3638 = vadd.f32 %v3436, %v3606
        %v3639 = vadd.f32 %v3437, %v3607
        %v3640 = vadd.f32 %v3438, %v3608
        %v3641 = vadd.f32 %v3439, %v3609
        %v3642 = vadd.f32 %v3440, %v3610
        %v3643 = vadd.f32 %v3441, %v3611
        %v3644 = vadd.f32 %v3442, %v3612
        %v3645 = vadd.f32 %v3443, %v3613
        %v3646 = vadd.f32 %v3444, %v3614
        %v3647 = vadd.f32 %v3445, %v3615
        %v3648 = vadd.f32 %v3446, %v3616
        %v3649 = vadd.f32 %v3447, %v3617
        %v3650 = vadd.f32 %v3448, %v3618
        %v3651 = vadd.f32 %v3449, %v3619
        %s3652 = sld [smem:[#allocation3 + $0xe]]
        %3653 = vset.pattern.permute.xlu0 14
        %3654 = vperm.xlu0 %3653, %v645
        %v3655 = vpop.permute.xlu0 %3654
        %3657 = vset.pattern.permute.xlu0 14
        %3658 = vperm.xlu0 %3657, %v650
        %v3659 = vpop.permute.xlu0 %3658
        %3661 = vset.pattern.permute.xlu0 14
        %3662 = vperm.xlu0 %3661, %v655
        %v3663 = vpop.permute.xlu0 %3662
        %3665 = vset.pattern.permute.xlu0 14
        %3666 = vperm.xlu0 %3665, %v660
        %v3667 = vpop.permute.xlu0 %3666
        %3669 = vset.pattern.permute.xlu0 14
        %3670 = vperm.xlu0 %3669, %v665
        %v3671 = vpop.permute.xlu0 %3670
        %3673 = vset.pattern.permute.xlu0 14
        %3674 = vperm.xlu0 %3673, %v670
        %v3675 = vpop.permute.xlu0 %3674
        %3677 = vset.pattern.permute.xlu0 14
        %3678 = vperm.xlu0 %3677, %v675
        %v3679 = vpop.permute.xlu0 %3678
        %3681 = vset.pattern.permute.xlu0 14
        %3682 = vperm.xlu0 %3681, %v680
        %v3683 = vpop.permute.xlu0 %3682
        %3685 = vset.pattern.permute.xlu0 14
        %3686 = vperm.xlu0 %3685, %v685
        %v3687 = vpop.permute.xlu0 %3686
        %3689 = vset.pattern.permute.xlu0 14
        %3690 = vperm.xlu0 %3689, %v690
        %v3691 = vpop.permute.xlu0 %3690
        %3693 = vset.pattern.permute.xlu0 14
        %3694 = vperm.xlu0 %3693, %v695
        %v3695 = vpop.permute.xlu0 %3694
        %3697 = vset.pattern.permute.xlu0 14
        %3698 = vperm.xlu0 %3697, %v700
        %v3699 = vpop.permute.xlu0 %3698
        %3701 = vset.pattern.permute.xlu0 14
        %3702 = vperm.xlu0 %3701, %v705
        %v3703 = vpop.permute.xlu0 %3702
        %3705 = vset.pattern.permute.xlu0 14
        %3706 = vperm.xlu0 %3705, %v710
        %v3707 = vpop.permute.xlu0 %3706
        %3709 = vset.pattern.permute.xlu0 14
        %3710 = vperm.xlu0 %3709, %v715
        %v3711 = vpop.permute.xlu0 %3710
        %3713 = vset.pattern.permute.xlu0 14
        %3714 = vperm.xlu0 %3713, %v720
        %v3715 = vpop.permute.xlu0 %3714
        %v3717 = vlaneseq
        %v3718 = vshrl.u32 %v3717, 7
        %v3719 = vsub.s32 6, %v3718
        %v3720 = vrot.slane %v804, %v3719
        %v3721 = vlaneseq
        %v3722 = vshrl.u32 %v3721, 7
        %v3723 = vsub.s32 6, %v3722
        %v3724 = vrot.slane %v806, %v3723
        %v3725 = vadd.f32 %v3655, %v3720
        %v3726 = vadd.f32 %v3655, %v3724
        %v3727 = vadd.f32 %v3659, %v3720
        %v3728 = vadd.f32 %v3659, %v3724
        %v3729 = vadd.f32 %v3663, %v3720
        %v3730 = vadd.f32 %v3663, %v3724
        %v3731 = vadd.f32 %v3667, %v3720
        %v3732 = vadd.f32 %v3667, %v3724
        %v3733 = vadd.f32 %v3671, %v3720
        %v3734 = vadd.f32 %v3671, %v3724
        %v3735 = vadd.f32 %v3675, %v3720
        %v3736 = vadd.f32 %v3675, %v3724
        %v3737 = vadd.f32 %v3679, %v3720
        %v3738 = vadd.f32 %v3679, %v3724
        %v3739 = vadd.f32 %v3683, %v3720
        %v3740 = vadd.f32 %v3683, %v3724
        %v3741 = vadd.f32 %v3687, %v3720
        %v3742 = vadd.f32 %v3687, %v3724
        %v3743 = vadd.f32 %v3691, %v3720
        %v3744 = vadd.f32 %v3691, %v3724
        %v3745 = vadd.f32 %v3695, %v3720
        %v3746 = vadd.f32 %v3695, %v3724
        %v3747 = vadd.f32 %v3699, %v3720
        %v3748 = vadd.f32 %v3699, %v3724
        %v3749 = vadd.f32 %v3703, %v3720
        %v3750 = vadd.f32 %v3703, %v3724
        %v3751 = vadd.f32 %v3707, %v3720
        %v3752 = vadd.f32 %v3707, %v3724
        %v3753 = vadd.f32 %v3711, %v3720
        %v3754 = vadd.f32 %v3711, %v3724
        %v3755 = vadd.f32 %v3715, %v3720
        %v3756 = vadd.f32 %v3715, %v3724
        %v3757 = vtanh.pop %v3725
        %v3758 = vtanh.pop %v3726
        %v3759 = vtanh.pop %v3727
        %v3760 = vtanh.pop %v3728
        %v3761 = vtanh.pop %v3729
        %v3762 = vtanh.pop %v3730
        %v3763 = vtanh.pop %v3731
        %v3764 = vtanh.pop %v3732
        %v3765 = vtanh.pop %v3733
        %v3766 = vtanh.pop %v3734
        %v3767 = vtanh.pop %v3735
        %v3768 = vtanh.pop %v3736
        %v3769 = vtanh.pop %v3737
        %v3770 = vtanh.pop %v3738
        %v3771 = vtanh.pop %v3739
        %v3772 = vtanh.pop %v3740
        %v3773 = vtanh.pop %v3741
        %v3774 = vtanh.pop %v3742
        %v3775 = vtanh.pop %v3743
        %v3776 = vtanh.pop %v3744
        %v3777 = vtanh.pop %v3745
        %v3778 = vtanh.pop %v3746
        %v3779 = vtanh.pop %v3747
        %v3780 = vtanh.pop %v3748
        %v3781 = vtanh.pop %v3749
        %v3782 = vtanh.pop %v3750
        %v3783 = vtanh.pop %v3751
        %v3784 = vtanh.pop %v3752
        %v3785 = vtanh.pop %v3753
        %v3786 = vtanh.pop %v3754
        %v3787 = vtanh.pop %v3755
        %v3788 = vtanh.pop %v3756
        %v3789 = vstv %s3652
        %v3790 = vmul.f32 %v3789, %v3757
        %v3791 = vmul.f32 %v3789, %v3758
        %v3792 = vmul.f32 %v3789, %v3759
        %v3793 = vmul.f32 %v3789, %v3760
        %v3794 = vmul.f32 %v3789, %v3761
        %v3795 = vmul.f32 %v3789, %v3762
        %v3796 = vmul.f32 %v3789, %v3763
        %v3797 = vmul.f32 %v3789, %v3764
        %v3798 = vmul.f32 %v3789, %v3765
        %v3799 = vmul.f32 %v3789, %v3766
        %v3800 = vmul.f32 %v3789, %v3767
        %v3801 = vmul.f32 %v3789, %v3768
        %v3802 = vmul.f32 %v3789, %v3769
        %v3803 = vmul.f32 %v3789, %v3770
        %v3804 = vmul.f32 %v3789, %v3771
        %v3805 = vmul.f32 %v3789, %v3772
        %v3806 = vmul.f32 %v3789, %v3773
        %v3807 = vmul.f32 %v3789, %v3774
        %v3808 = vmul.f32 %v3789, %v3775
        %v3809 = vmul.f32 %v3789, %v3776
        %v3810 = vmul.f32 %v3789, %v3777
        %v3811 = vmul.f32 %v3789, %v3778
        %v3812 = vmul.f32 %v3789, %v3779
        %v3813 = vmul.f32 %v3789, %v3780
        %v3814 = vmul.f32 %v3789, %v3781
        %v3815 = vmul.f32 %v3789, %v3782
        %v3816 = vmul.f32 %v3789, %v3783
        %v3817 = vmul.f32 %v3789, %v3784
        %v3818 = vmul.f32 %v3789, %v3785
        %v3819 = vmul.f32 %v3789, %v3786
        %v3820 = vmul.f32 %v3789, %v3787
        %v3821 = vmul.f32 %v3789, %v3788
        %v3822 = vadd.f32 %v3620, %v3790
        %v3823 = vadd.f32 %v3621, %v3791
        %v3824 = vadd.f32 %v3622, %v3792
        %v3825 = vadd.f32 %v3623, %v3793
        %v3826 = vadd.f32 %v3624, %v3794
        %v3827 = vadd.f32 %v3625, %v3795
        %v3828 = vadd.f32 %v3626, %v3796
        %v3829 = vadd.f32 %v3627, %v3797
        %v3830 = vadd.f32 %v3628, %v3798
        %v3831 = vadd.f32 %v3629, %v3799
        %v3832 = vadd.f32 %v3630, %v3800
        %v3833 = vadd.f32 %v3631, %v3801
        %v3834 = vadd.f32 %v3632, %v3802
        %v3835 = vadd.f32 %v3633, %v3803
        %v3836 = vadd.f32 %v3634, %v3804
        %v3837 = vadd.f32 %v3635, %v3805
        %v3838 = vadd.f32 %v3636, %v3806
        %v3839 = vadd.f32 %v3637, %v3807
        %v3840 = vadd.f32 %v3638, %v3808
        %v3841 = vadd.f32 %v3639, %v3809
        %v3842 = vadd.f32 %v3640, %v3810
        %v3843 = vadd.f32 %v3641, %v3811
        %v3844 = vadd.f32 %v3642, %v3812
        %v3845 = vadd.f32 %v3643, %v3813
        %v3846 = vadd.f32 %v3644, %v3814
        %v3847 = vadd.f32 %v3645, %v3815
        %v3848 = vadd.f32 %v3646, %v3816
        %v3849 = vadd.f32 %v3647, %v3817
        %v3850 = vadd.f32 %v3648, %v3818
        %v3851 = vadd.f32 %v3649, %v3819
        %v3852 = vadd.f32 %v3650, %v3820
        %v3853 = vadd.f32 %v3651, %v3821
        %s3854 = sld [smem:[#allocation3 + $0xf]]
        %3855 = vset.pattern.permute.xlu0 15
        %3856 = vperm.xlu0 %3855, %v645
        %v3857 = vpop.permute.xlu0 %3856
        %3859 = vset.pattern.permute.xlu0 15
        %3860 = vperm.xlu0 %3859, %v650
        %v3861 = vpop.permute.xlu0 %3860
        %3863 = vset.pattern.permute.xlu0 15
        %3864 = vperm.xlu0 %3863, %v655
        %v3865 = vpop.permute.xlu0 %3864
        %3867 = vset.pattern.permute.xlu0 15
        %3868 = vperm.xlu0 %3867, %v660
        %v3869 = vpop.permute.xlu0 %3868
        %3871 = vset.pattern.permute.xlu0 15
        %3872 = vperm.xlu0 %3871, %v665
        %v3873 = vpop.permute.xlu0 %3872
        %3875 = vset.pattern.permute.xlu0 15
        %3876 = vperm.xlu0 %3875, %v670
        %v3877 = vpop.permute.xlu0 %3876
        %3879 = vset.pattern.permute.xlu0 15
        %3880 = vperm.xlu0 %3879, %v675
        %v3881 = vpop.permute.xlu0 %3880
        %3883 = vset.pattern.permute.xlu0 15
        %3884 = vperm.xlu0 %3883, %v680
        %v3885 = vpop.permute.xlu0 %3884
        %3887 = vset.pattern.permute.xlu0 15
        %3888 = vperm.xlu0 %3887, %v685
        %v3889 = vpop.permute.xlu0 %3888
        %3891 = vset.pattern.permute.xlu0 15
        %3892 = vperm.xlu0 %3891, %v690
        %v3893 = vpop.permute.xlu0 %3892
        %3895 = vset.pattern.permute.xlu0 15
        %3896 = vperm.xlu0 %3895, %v695
        %v3897 = vpop.permute.xlu0 %3896
        %3899 = vset.pattern.permute.xlu0 15
        %3900 = vperm.xlu0 %3899, %v700
        %v3901 = vpop.permute.xlu0 %3900
        %3903 = vset.pattern.permute.xlu0 15
        %3904 = vperm.xlu0 %3903, %v705
        %v3905 = vpop.permute.xlu0 %3904
        %3907 = vset.pattern.permute.xlu0 15
        %3908 = vperm.xlu0 %3907, %v710
        %v3909 = vpop.permute.xlu0 %3908
        %3911 = vset.pattern.permute.xlu0 15
        %3912 = vperm.xlu0 %3911, %v715
        %v3913 = vpop.permute.xlu0 %3912
        %3915 = vset.pattern.permute.xlu0 15
        %3916 = vperm.xlu0 %3915, %v720
        %v3917 = vpop.permute.xlu0 %3916
        %v3919 = vlaneseq
        %v3920 = vshrl.u32 %v3919, 7
        %v3921 = vsub.s32 7, %v3920
        %v3922 = vrot.slane %v804, %v3921
        %v3923 = vlaneseq
        %v3924 = vshrl.u32 %v3923, 7
        %v3925 = vsub.s32 7, %v3924
        %v3926 = vrot.slane %v806, %v3925
        %v3927 = vadd.f32 %v3857, %v3922
        %v3928 = vadd.f32 %v3857, %v3926
        %v3929 = vadd.f32 %v3861, %v3922
        %v3930 = vadd.f32 %v3861, %v3926
        %v3931 = vadd.f32 %v3865, %v3922
        %v3932 = vadd.f32 %v3865, %v3926
        %v3933 = vadd.f32 %v3869, %v3922
        %v3934 = vadd.f32 %v3869, %v3926
        %v3935 = vadd.f32 %v3873, %v3922
        %v3936 = vadd.f32 %v3873, %v3926
        %v3937 = vadd.f32 %v3877, %v3922
        %v3938 = vadd.f32 %v3877, %v3926
        %v3939 = vadd.f32 %v3881, %v3922
        %v3940 = vadd.f32 %v3881, %v3926
        %v3941 = vadd.f32 %v3885, %v3922
        %v3942 = vadd.f32 %v3885, %v3926
        %v3943 = vadd.f32 %v3889, %v3922
        %v3944 = vadd.f32 %v3889, %v3926
        %v3945 = vadd.f32 %v3893, %v3922
        %v3946 = vadd.f32 %v3893, %v3926
        %v3947 = vadd.f32 %v3897, %v3922
        %v3948 = vadd.f32 %v3897, %v3926
        %v3949 = vadd.f32 %v3901, %v3922
        %v3950 = vadd.f32 %v3901, %v3926
        %v3951 = vadd.f32 %v3905, %v3922
        %v3952 = vadd.f32 %v3905, %v3926
        %v3953 = vadd.f32 %v3909, %v3922
        %v3954 = vadd.f32 %v3909, %v3926
        %v3955 = vadd.f32 %v3913, %v3922
        %v3956 = vadd.f32 %v3913, %v3926
        %v3957 = vadd.f32 %v3917, %v3922
        %v3958 = vadd.f32 %v3917, %v3926
        %v3959 = vtanh.pop %v3927
        %v3960 = vtanh.pop %v3928
        %v3961 = vtanh.pop %v3929
        %v3962 = vtanh.pop %v3930
        %v3963 = vtanh.pop %v3931
        %v3964 = vtanh.pop %v3932
        %v3965 = vtanh.pop %v3933
        %v3966 = vtanh.pop %v3934
        %v3967 = vtanh.pop %v3935
        %v3968 = vtanh.pop %v3936
        %v3969 = vtanh.pop %v3937
        %v3970 = vtanh.pop %v3938
        %v3971 = vtanh.pop %v3939
        %v3972 = vtanh.pop %v3940
        %v3973 = vtanh.pop %v3941
        %v3974 = vtanh.pop %v3942
        %v3975 = vtanh.pop %v3943
        %v3976 = vtanh.pop %v3944
        %v3977 = vtanh.pop %v3945
        %v3978 = vtanh.pop %v3946
        %v3979 = vtanh.pop %v3947
        %v3980 = vtanh.pop %v3948
        %v3981 = vtanh.pop %v3949
        %v3982 = vtanh.pop %v3950
        %v3983 = vtanh.pop %v3951
        %v3984 = vtanh.pop %v3952
        %v3985 = vtanh.pop %v3953
        %v3986 = vtanh.pop %v3954
        %v3987 = vtanh.pop %v3955
        %v3988 = vtanh.pop %v3956
        %v3989 = vtanh.pop %v3957
        %v3990 = vtanh.pop %v3958
        %v3991 = vstv %s3854
        %v3992 = vmul.f32 %v3991, %v3959
        %v3993 = vmul.f32 %v3991, %v3960
        %v3994 = vmul.f32 %v3991, %v3961
        %v3995 = vmul.f32 %v3991, %v3962
        %v3996 = vmul.f32 %v3991, %v3963
        %v3997 = vmul.f32 %v3991, %v3964
        %v3998 = vmul.f32 %v3991, %v3965
        %v3999 = vmul.f32 %v3991, %v3966
        %v4000 = vmul.f32 %v3991, %v3967
        %v4001 = vmul.f32 %v3991, %v3968
        %v4002 = vmul.f32 %v3991, %v3969
        %v4003 = vmul.f32 %v3991, %v3970
        %v4004 = vmul.f32 %v3991, %v3971
        %v4005 = vmul.f32 %v3991, %v3972
        %v4006 = vmul.f32 %v3991, %v3973
        %v4007 = vmul.f32 %v3991, %v3974
        %v4008 = vmul.f32 %v3991, %v3975
        %v4009 = vmul.f32 %v3991, %v3976
        %v4010 = vmul.f32 %v3991, %v3977
        %v4011 = vmul.f32 %v3991, %v3978
        %v4012 = vmul.f32 %v3991, %v3979
        %v4013 = vmul.f32 %v3991, %v3980
        %v4014 = vmul.f32 %v3991, %v3981
        %v4015 = vmul.f32 %v3991, %v3982
        %v4016 = vmul.f32 %v3991, %v3983
        %v4017 = vmul.f32 %v3991, %v3984
        %v4018 = vmul.f32 %v3991, %v3985
        %v4019 = vmul.f32 %v3991, %v3986
        %v4020 = vmul.f32 %v3991, %v3987
        %v4021 = vmul.f32 %v3991, %v3988
        %v4022 = vmul.f32 %v3991, %v3989
        %v4023 = vmul.f32 %v3991, %v3990
        %v4024 = vadd.f32 %v3822, %v3992
        %v4025 = vadd.f32 %v3823, %v3993
        %v4026 = vadd.f32 %v3824, %v3994
        %v4027 = vadd.f32 %v3825, %v3995
        %v4028 = vadd.f32 %v3826, %v3996
        %v4029 = vadd.f32 %v3827, %v3997
        %v4030 = vadd.f32 %v3828, %v3998
        %v4031 = vadd.f32 %v3829, %v3999
        %v4032 = vadd.f32 %v3830, %v4000
        %v4033 = vadd.f32 %v3831, %v4001
        %v4034 = vadd.f32 %v3832, %v4002
        %v4035 = vadd.f32 %v3833, %v4003
        %v4036 = vadd.f32 %v3834, %v4004
        %v4037 = vadd.f32 %v3835, %v4005
        %v4038 = vadd.f32 %v3836, %v4006
        %v4039 = vadd.f32 %v3837, %v4007
        %v4040 = vadd.f32 %v3838, %v4008
        %v4041 = vadd.f32 %v3839, %v4009
        %v4042 = vadd.f32 %v3840, %v4010
        %v4043 = vadd.f32 %v3841, %v4011
        %v4044 = vadd.f32 %v3842, %v4012
        %v4045 = vadd.f32 %v3843, %v4013
        %v4046 = vadd.f32 %v3844, %v4014
        %v4047 = vadd.f32 %v3845, %v4015
        %v4048 = vadd.f32 %v3846, %v4016
        %v4049 = vadd.f32 %v3847, %v4017
        %v4050 = vadd.f32 %v3848, %v4018
        %v4051 = vadd.f32 %v3849, %v4019
        %v4052 = vadd.f32 %v3850, %v4020
        %v4053 = vadd.f32 %v3851, %v4021
        %v4054 = vadd.f32 %v3852, %v4022
        %v4055 = vadd.f32 %v3853, %v4023
        %s4056 = sld [smem:[#allocation2]]
        %v4057 = vstv %s4056
        %v4058 = vadd.f32 %v4024, %v4057
        %v4059 = vadd.f32 %v4025, %v4057
        %v4060 = vadd.f32 %v4026, %v4057
        %v4061 = vadd.f32 %v4027, %v4057
        %v4062 = vadd.f32 %v4028, %v4057
        %v4063 = vadd.f32 %v4029, %v4057
        %v4064 = vadd.f32 %v4030, %v4057
        %v4065 = vadd.f32 %v4031, %v4057
        %v4066 = vadd.f32 %v4032, %v4057
        %v4067 = vadd.f32 %v4033, %v4057
        %v4068 = vadd.f32 %v4034, %v4057
        %v4069 = vadd.f32 %v4035, %v4057
        %v4070 = vadd.f32 %v4036, %v4057
        %v4071 = vadd.f32 %v4037, %v4057
        %v4072 = vadd.f32 %v4038, %v4057
        %v4073 = vadd.f32 %v4039, %v4057
        %v4074 = vadd.f32 %v4040, %v4057
        %v4075 = vadd.f32 %v4041, %v4057
        %v4076 = vadd.f32 %v4042, %v4057
        %v4077 = vadd.f32 %v4043, %v4057
        %v4078 = vadd.f32 %v4044, %v4057
        %v4079 = vadd.f32 %v4045, %v4057
        %v4080 = vadd.f32 %v4046, %v4057
        %v4081 = vadd.f32 %v4047, %v4057
        %v4082 = vadd.f32 %v4048, %v4057
        %v4083 = vadd.f32 %v4049, %v4057
        %v4084 = vadd.f32 %v4050, %v4057
        %v4085 = vadd.f32 %v4051, %v4057
        %v4086 = vadd.f32 %v4052, %v4057
        %v4087 = vadd.f32 %v4053, %v4057
        %v4088 = vadd.f32 %v4054, %v4057
        %v4089 = vadd.f32 %v4055, %v4057
        %v4090 = vmax.f32 %v4058, %v4059
        %4091 = vmax.xlane.f32.xlu0 %v4090
        %v4092 = vpop.xlane.xlu0 %4091
        %v4093 = vmax.f32 %v4060, %v4061
        %4094 = vmax.xlane.f32.xlu0 %v4093
        %v4095 = vpop.xlane.xlu0 %4094
        %v4096 = vmax.f32 %v4062, %v4063
        %4097 = vmax.xlane.f32.xlu0 %v4096
        %v4098 = vpop.xlane.xlu0 %4097
        %v4099 = vmax.f32 %v4064, %v4065
        %4100 = vmax.xlane.f32.xlu0 %v4099
        %v4101 = vpop.xlane.xlu0 %4100
        %v4102 = vmax.f32 %v4066, %v4067
        %4103 = vmax.xlane.f32.xlu0 %v4102
        %v4104 = vpop.xlane.xlu0 %4103
        %v4105 = vmax.f32 %v4068, %v4069
        %4106 = vmax.xlane.f32.xlu0 %v4105
        %v4107 = vpop.xlane.xlu0 %4106
        %v4108 = vmax.f32 %v4070, %v4071
        %4109 = vmax.xlane.f32.xlu0 %v4108
        %v4110 = vpop.xlane.xlu0 %4109
        %v4111 = vmax.f32 %v4072, %v4073
        %4112 = vmax.xlane.f32.xlu0 %v4111
        %v4113 = vpop.xlane.xlu0 %4112
        %v4114 = vmax.f32 %v4074, %v4075
        %4115 = vmax.xlane.f32.xlu0 %v4114
        %v4116 = vpop.xlane.xlu0 %4115
        %v4117 = vmax.f32 %v4076, %v4077
        %4118 = vmax.xlane.f32.xlu0 %v4117
        %v4119 = vpop.xlane.xlu0 %4118
        %v4120 = vmax.f32 %v4078, %v4079
        %4121 = vmax.xlane.f32.xlu0 %v4120
        %v4122 = vpop.xlane.xlu0 %4121
        %v4123 = vmax.f32 %v4080, %v4081
        %4124 = vmax.xlane.f32.xlu0 %v4123
        %v4125 = vpop.xlane.xlu0 %4124
        %v4126 = vmax.f32 %v4082, %v4083
        %4127 = vmax.xlane.f32.xlu0 %v4126
        %v4128 = vpop.xlane.xlu0 %4127
        %v4129 = vmax.f32 %v4084, %v4085
        %4130 = vmax.xlane.f32.xlu0 %v4129
        %v4131 = vpop.xlane.xlu0 %4130
        %v4132 = vmax.f32 %v4086, %v4087
        %4133 = vmax.xlane.f32.xlu0 %v4132
        %v4134 = vpop.xlane.xlu0 %4133
        %v4135 = vmax.f32 %v4088, %v4089
        %4136 = vmax.xlane.f32.xlu0 %v4135
        %v4137 = vpop.xlane.xlu0 %4136
        %v4138 = vsub.f32 %v4058, %v4092
        %v4139 = vsub.f32 %v4059, %v4092
        %v4140 = vsub.f32 %v4060, %v4095
        %v4141 = vsub.f32 %v4061, %v4095
        %v4142 = vsub.f32 %v4062, %v4098
        %v4143 = vsub.f32 %v4063, %v4098
        %v4144 = vsub.f32 %v4064, %v4101
        %v4145 = vsub.f32 %v4065, %v4101
        %v4146 = vsub.f32 %v4066, %v4104
        %v4147 = vsub.f32 %v4067, %v4104
        %v4148 = vsub.f32 %v4068, %v4107
        %v4149 = vsub.f32 %v4069, %v4107
        %v4150 = vsub.f32 %v4070, %v4110
        %v4151 = vsub.f32 %v4071, %v4110
        %v4152 = vsub.f32 %v4072, %v4113
        %v4153 = vsub.f32 %v4073, %v4113
        %v4154 = vsub.f32 %v4074, %v4116
        %v4155 = vsub.f32 %v4075, %v4116
        %v4156 = vsub.f32 %v4076, %v4119
        %v4157 = vsub.f32 %v4077, %v4119
        %v4158 = vsub.f32 %v4078, %v4122
        %v4159 = vsub.f32 %v4079, %v4122
        %v4160 = vsub.f32 %v4080, %v4125
        %v4161 = vsub.f32 %v4081, %v4125
        %v4162 = vsub.f32 %v4082, %v4128
        %v4163 = vsub.f32 %v4083, %v4128
        %v4164 = vsub.f32 %v4084, %v4131
        %v4165 = vsub.f32 %v4085, %v4131
        %v4166 = vsub.f32 %v4086, %v4134
        %v4167 = vsub.f32 %v4087, %v4134
        %v4168 = vsub.f32 %v4088, %v4137
        %v4169 = vsub.f32 %v4089, %v4137
        %v4170 = vmul.f32 %v4138, 1.442695
        %v4171 = vpow.pop %v4170
        %v4172 = vmul.f32 %v4139, 1.442695
        %v4173 = vpow.pop %v4172
        %v4174 = vmul.f32 %v4140, 1.442695
        %v4175 = vpow.pop %v4174
        %v4176 = vmul.f32 %v4141, 1.442695
        %v4177 = vpow.pop %v4176
        %v4178 = vmul.f32 %v4142, 1.442695
        %v4179 = vpow.pop %v4178
        %v4180 = vmul.f32 %v4143, 1.442695
        %v4181 = vpow.pop %v4180
        %v4182 = vmul.f32 %v4144, 1.442695
        %v4183 = vpow.pop %v4182
        %v4184 = vmul.f32 %v4145, 1.442695
        %v4185 = vpow.pop %v4184
        %v4186 = vmul.f32 %v4146, 1.442695
        %v4187 = vpow.pop %v4186
        %v4188 = vmul.f32 %v4147, 1.442695
        %v4189 = vpow.pop %v4188
        %v4190 = vmul.f32 %v4148, 1.442695
        %v4191 = vpow.pop %v4190
        %v4192 = vmul.f32 %v4149, 1.442695
        %v4193 = vpow.pop %v4192
        %v4194 = vmul.f32 %v4150, 1.442695
        %v4195 = vpow.pop %v4194
        %v4196 = vmul.f32 %v4151, 1.442695
        %v4197 = vpow.pop %v4196
        %v4198 = vmul.f32 %v4152, 1.442695
        %v4199 = vpow.pop %v4198
        %v4200 = vmul.f32 %v4153, 1.442695
        %v4201 = vpow.pop %v4200
        %v4202 = vmul.f32 %v4154, 1.442695
        %v4203 = vpow.pop %v4202
        %v4204 = vmul.f32 %v4155, 1.442695
        %v4205 = vpow.pop %v4204
        %v4206 = vmul.f32 %v4156, 1.442695
        %v4207 = vpow.pop %v4206
        %v4208 = vmul.f32 %v4157, 1.442695
        %v4209 = vpow.pop %v4208
        %v4210 = vmul.f32 %v4158, 1.442695
        %v4211 = vpow.pop %v4210
        %v4212 = vmul.f32 %v4159, 1.442695
        %v4213 = vpow.pop %v4212
        %v4214 = vmul.f32 %v4160, 1.442695
        %v4215 = vpow.pop %v4214
        %v4216 = vmul.f32 %v4161, 1.442695
        %v4217 = vpow.pop %v4216
        %v4218 = vmul.f32 %v4162, 1.442695
        %v4219 = vpow.pop %v4218
        %v4220 = vmul.f32 %v4163, 1.442695
        %v4221 = vpow.pop %v4220
        %v4222 = vmul.f32 %v4164, 1.442695
        %v4223 = vpow.pop %v4222
        %v4224 = vmul.f32 %v4165, 1.442695
        %v4225 = vpow.pop %v4224
        %v4226 = vmul.f32 %v4166, 1.442695
        %v4227 = vpow.pop %v4226
        %v4228 = vmul.f32 %v4167, 1.442695
        %v4229 = vpow.pop %v4228
        %v4230 = vmul.f32 %v4168, 1.442695
        %v4231 = vpow.pop %v4230
        %v4232 = vmul.f32 %v4169, 1.442695
        %v4233 = vpow.pop %v4232
        %v4234 = vadd.f32 %v4171, %v4173
        %4235 = vadd.xlane.f32.xlu0 %v4234
        %v4236 = vpop.xlane.xlu0 %4235
        %v4237 = vadd.f32 %v4175, %v4177
        %4238 = vadd.xlane.f32.xlu0 %v4237
        %v4239 = vpop.xlane.xlu0 %4238
        %v4240 = vadd.f32 %v4179, %v4181
        %4241 = vadd.xlane.f32.xlu0 %v4240
        %v4242 = vpop.xlane.xlu0 %4241
        %v4243 = vadd.f32 %v4183, %v4185
        %4244 = vadd.xlane.f32.xlu0 %v4243
        %v4245 = vpop.xlane.xlu0 %4244
        %v4246 = vadd.f32 %v4187, %v4189
        %4247 = vadd.xlane.f32.xlu0 %v4246
        %v4248 = vpop.xlane.xlu0 %4247
        %v4249 = vadd.f32 %v4191, %v4193
        %4250 = vadd.xlane.f32.xlu0 %v4249
        %v4251 = vpop.xlane.xlu0 %4250
        %v4252 = vadd.f32 %v4195, %v4197
        %4253 = vadd.xlane.f32.xlu0 %v4252
        %v4254 = vpop.xlane.xlu0 %4253
        %v4255 = vadd.f32 %v4199, %v4201
        %4256 = vadd.xlane.f32.xlu0 %v4255
        %v4257 = vpop.xlane.xlu0 %4256
        %v4258 = vadd.f32 %v4203, %v4205
        %4259 = vadd.xlane.f32.xlu0 %v4258
        %v4260 = vpop.xlane.xlu0 %4259
        %v4261 = vadd.f32 %v4207, %v4209
        %4262 = vadd.xlane.f32.xlu0 %v4261
        %v4263 = vpop.xlane.xlu0 %4262
        %v4264 = vadd.f32 %v4211, %v4213
        %4265 = vadd.xlane.f32.xlu0 %v4264
        %v4266 = vpop.xlane.xlu0 %4265
        %v4267 = vadd.f32 %v4215, %v4217
        %4268 = vadd.xlane.f32.xlu0 %v4267
        %v4269 = vpop.xlane.xlu0 %4268
        %v4270 = vadd.f32 %v4219, %v4221
        %4271 = vadd.xlane.f32.xlu0 %v4270
        %v4272 = vpop.xlane.xlu0 %4271
        %v4273 = vadd.f32 %v4223, %v4225
        %4274 = vadd.xlane.f32.xlu0 %v4273
        %v4275 = vpop.xlane.xlu0 %4274
        %v4276 = vadd.f32 %v4227, %v4229
        %4277 = vadd.xlane.f32.xlu0 %v4276
        %v4278 = vpop.xlane.xlu0 %4277
        %v4279 = vadd.f32 %v4231, %v4233
        %4280 = vadd.xlane.f32.xlu0 %v4279
        %v4281 = vpop.xlane.xlu0 %4280
        %v4282 = vadd.f32 %v4236, 1e-06
        %v4283 = vadd.f32 %v4239, 1e-06
        %v4284 = vadd.f32 %v4242, 1e-06
        %v4285 = vadd.f32 %v4245, 1e-06
        %v4286 = vadd.f32 %v4248, 1e-06
        %v4287 = vadd.f32 %v4251, 1e-06
        %v4288 = vadd.f32 %v4254, 1e-06
        %v4289 = vadd.f32 %v4257, 1e-06
        %v4290 = vadd.f32 %v4260, 1e-06
        %v4291 = vadd.f32 %v4263, 1e-06
        %v4292 = vadd.f32 %v4266, 1e-06
        %v4293 = vadd.f32 %v4269, 1e-06
        %v4294 = vadd.f32 %v4272, 1e-06
        %v4295 = vadd.f32 %v4275, 1e-06
        %v4296 = vadd.f32 %v4278, 1e-06
        %v4297 = vadd.f32 %v4281, 1e-06
        %v4298 = vrcp.pop %v4282
        %v4299 = vmul.f32 %v4171, %v4298
        %v4300 = vmul.f32 %v4173, %v4298
        %v4301 = vrcp.pop %v4283
        %v4302 = vmul.f32 %v4175, %v4301
        %v4303 = vmul.f32 %v4177, %v4301
        %v4304 = vrcp.pop %v4284
        %v4305 = vmul.f32 %v4179, %v4304
        %v4306 = vmul.f32 %v4181, %v4304
        %v4307 = vrcp.pop %v4285
        %v4308 = vmul.f32 %v4183, %v4307
        %v4309 = vmul.f32 %v4185, %v4307
        %v4310 = vrcp.pop %v4286
        %v4311 = vmul.f32 %v4187, %v4310
        %v4312 = vmul.f32 %v4189, %v4310
        %v4313 = vrcp.pop %v4287
        %v4314 = vmul.f32 %v4191, %v4313
        %v4315 = vmul.f32 %v4193, %v4313
        %v4316 = vrcp.pop %v4288
        %v4317 = vmul.f32 %v4195, %v4316
        %v4318 = vmul.f32 %v4197, %v4316
        %v4319 = vrcp.pop %v4289
        %v4320 = vmul.f32 %v4199, %v4319
        %v4321 = vmul.f32 %v4201, %v4319
        %v4322 = vrcp.pop %v4290
        %v4323 = vmul.f32 %v4203, %v4322
        %v4324 = vmul.f32 %v4205, %v4322
        %v4325 = vrcp.pop %v4291
        %v4326 = vmul.f32 %v4207, %v4325
        %v4327 = vmul.f32 %v4209, %v4325
        %v4328 = vrcp.pop %v4292
        %v4329 = vmul.f32 %v4211, %v4328
        %v4330 = vmul.f32 %v4213, %v4328
        %v4331 = vrcp.pop %v4293
        %v4332 = vmul.f32 %v4215, %v4331
        %v4333 = vmul.f32 %v4217, %v4331
        %v4334 = vrcp.pop %v4294
        %v4335 = vmul.f32 %v4219, %v4334
        %v4336 = vmul.f32 %v4221, %v4334
        %v4337 = vrcp.pop %v4295
        %v4338 = vmul.f32 %v4223, %v4337
        %v4339 = vmul.f32 %v4225, %v4337
        %v4340 = vrcp.pop %v4296
        %v4341 = vmul.f32 %v4227, %v4340
        %v4342 = vmul.f32 %v4229, %v4340
        %v4343 = vrcp.pop %v4297
        %v4344 = vmul.f32 %v4231, %v4343
        %v4345 = vmul.f32 %v4233, %v4343
        %4346 = vst [vmem:[%s471] sm:$0xff] %v4299
        %4347 = vst [vmem:[%s471 + $0x8] sm:$0xff] %v4300
        %4348 = vst [vmem:[%s471 + $0x10] sm:$0xff] %v4302
        %4349 = vst [vmem:[%s471 + $0x18] sm:$0xff] %v4303
        %4350 = vst [vmem:[%s471 + $0x20] sm:$0xff] %v4305
        %4351 = vst [vmem:[%s471 + $0x28] sm:$0xff] %v4306
        %4352 = vst [vmem:[%s471 + $0x30] sm:$0xff] %v4308
        %4353 = vst [vmem:[%s471 + $0x38] sm:$0xff] %v4309
        %4354 = vst [vmem:[%s471 + $0x40] sm:$0xff] %v4311
        %4355 = vst [vmem:[%s471 + $0x48] sm:$0xff] %v4312
        %4356 = vst [vmem:[%s471 + $0x50] sm:$0xff] %v4314
        %4357 = vst [vmem:[%s471 + $0x58] sm:$0xff] %v4315
        %4358 = vst [vmem:[%s471 + $0x60] sm:$0xff] %v4317
        %4359 = vst [vmem:[%s471 + $0x68] sm:$0xff] %v4318
        %4360 = vst [vmem:[%s471 + $0x70] sm:$0xff] %v4320
        %4361 = vst [vmem:[%s471 + $0x78] sm:$0xff] %v4321
        %4362 = vst [vmem:[%s471 + $0x80] sm:$0xff] %v4323
        %4363 = vst [vmem:[%s471 + $0x88] sm:$0xff] %v4324
        %4364 = vst [vmem:[%s471 + $0x90] sm:$0xff] %v4326
        %4365 = vst [vmem:[%s471 + $0x98] sm:$0xff] %v4327
        %4366 = vst [vmem:[%s471 + $0xa0] sm:$0xff] %v4329
        %4367 = vst [vmem:[%s471 + $0xa8] sm:$0xff] %v4330
        %4368 = vst [vmem:[%s471 + $0xb0] sm:$0xff] %v4332
        %4369 = vst [vmem:[%s471 + $0xb8] sm:$0xff] %v4333
        %4370 = vst [vmem:[%s471 + $0xc0] sm:$0xff] %v4335
        %4371 = vst [vmem:[%s471 + $0xc8] sm:$0xff] %v4336
        %4372 = vst [vmem:[%s471 + $0xd0] sm:$0xff] %v4338
        %4373 = vst [vmem:[%s471 + $0xd8] sm:$0xff] %v4339
        %4374 = vst [vmem:[%s471 + $0xe0] sm:$0xff] %v4341
        %4375 = vst [vmem:[%s471 + $0xe8] sm:$0xff] %v4342
        %4376 = vst [vmem:[%s471 + $0xf0] sm:$0xff] %v4344
        %4377 = vst [vmem:[%s471 + $0xf8] sm:$0xff] %v4345
        %4378 = vmatprep.subr.mxu0 0.0
        %4379 = vmatpush1.xpose.msra.mxu0 0.0
        %4380 = vmatprep.subr.mxu0 0.0
        %4381 = vmatpush1.xpose.msra.mxu0 0.0
        %4382 = vmatprep.subr.mxu0 0.0
        %4383 = vmatpush1.xpose.msra.mxu0 0.0
        %4384 = vmatprep.subr.mxu0 0.0
        %4385 = vmatpush1.xpose.msra.mxu0 0.0
        %4386 = vmatprep.subr.mxu0 0.0
        %4387 = vmatpush1.xpose.msra.mxu0 0.0
        %4388 = vmatprep.subr.mxu0 0.0
        %4389 = vmatpush1.xpose.msra.mxu0 0.0
        %4390 = vmatprep.subr.mxu0 0.0
        %4391 = vmatpush1.xpose.msra.mxu0 0.0
        %4392 = vmatprep.subr.mxu0 0.0
        %4393 = vmatpush1.xpose.msra.mxu0 0.0
        %4394 = vmatprep.subr.mxu0 0.0
        %4395 = vmatpush1.xpose.msra.mxu0 0.0
        %4396 = vmatprep.subr.mxu0 0.0
        %4397 = vmatpush1.xpose.msra.mxu0 0.0
        %4398 = vmatprep.subr.mxu0 0.0
        %4399 = vmatpush1.xpose.msra.mxu0 0.0
        %4400 = vmatprep.subr.mxu0 0.0
        %4401 = vmatpush1.xpose.msra.mxu0 0.0
        %4402 = vmatprep.subr.mxu0 0.0
        %4403 = vmatpush1.xpose.msra.mxu0 0.0
        %4404 = vmatprep.subr.mxu0 0.0
        %4405 = vmatpush1.xpose.msra.mxu0 0.0
        %4406 = vmatprep.subr.mxu0 0.0
        %4407 = vmatpush1.xpose.msra.mxu0 0.0
        %4408 = vmatprep.subr.mxu0 %v488
        %4409 = vmatpush1.xpose.msra.mxu0 %v487
        %4410 = vmatprep.subr.mxu0 0.0
        %4411 = vmatpush2.xpose.msra.mxu0 0.0
        %4412 = vmatprep.subr.mxu0 0.0
        %4413 = vmatpush2.xpose.msra.mxu0 0.0
        %4414 = vmatprep.subr.mxu0 0.0
        %4415 = vmatpush2.xpose.msra.mxu0 0.0
        %4416 = vmatprep.subr.mxu0 0.0
        %4417 = vmatpush2.xpose.msra.mxu0 0.0
        %4418 = vmatprep.subr.mxu0 0.0
        %4419 = vmatpush2.xpose.msra.mxu0 0.0
        %4420 = vmatprep.subr.mxu0 0.0
        %4421 = vmatpush2.xpose.msra.mxu0 0.0
        %4422 = vmatprep.subr.mxu0 0.0
        %4423 = vmatpush2.xpose.msra.mxu0 0.0
        %4424 = vmatprep.subr.mxu0 0.0
        %4425 = vmatpush2.xpose.msra.mxu0 0.0
        %4426 = vmatprep.subr.mxu0 0.0
        %4427 = vmatpush2.xpose.msra.mxu0 0.0
        %4428 = vmatprep.subr.mxu0 0.0
        %4429 = vmatpush2.xpose.msra.mxu0 0.0
        %4430 = vmatprep.subr.mxu0 0.0
        %4431 = vmatpush2.xpose.msra.mxu0 0.0
        %4432 = vmatprep.subr.mxu0 0.0
        %4433 = vmatpush2.xpose.msra.mxu0 0.0
        %4434 = vmatprep.subr.mxu0 0.0
        %4435 = vmatpush2.xpose.msra.mxu0 0.0
        %4436 = vmatprep.subr.mxu0 0.0
        %4437 = vmatpush2.xpose.msra.mxu0 0.0
        %4438 = vmatprep.subr.mxu0 0.0
        %4439 = vmatpush2.xpose.msra.mxu0 0.0
        %4440 = vmatprep.subr.mxu0 0.0
        %4441 = vmatpush2.xpose.msra.mxu0 0.0
        %4442 = vmatprep.mubr.f32.mxu0 %v4300
        %4443 = vmatmul.mubr.f32.gmra.mxu0 %v4299
        %v4444 = vpop.f32.mrf.mxu0
        %v4445 = vadd.f32 0.0, %v4444
        %v4446 = vpop.f32.mrf.mxu0
        %4447 = vmatprep.mubr.f32.mxu0 %v4303
        %4448 = vmatmul.mubr.f32.gmra.mxu0 %v4302
        %v4449 = vpop.f32.mrf.mxu0
        %v4450 = vadd.f32 0.0, %v4449
        %v4451 = vpop.f32.mrf.mxu0
        %4452 = vmatprep.mubr.f32.mxu0 %v4306
        %4453 = vmatmul.mubr.f32.gmra.mxu0 %v4305
        %v4454 = vpop.f32.mrf.mxu0
        %v4455 = vadd.f32 0.0, %v4454
        %v4456 = vpop.f32.mrf.mxu0
        %4457 = vmatprep.mubr.f32.mxu0 %v4309
        %4458 = vmatmul.mubr.f32.gmra.mxu0 %v4308
        %v4459 = vpop.f32.mrf.mxu0
        %v4460 = vadd.f32 0.0, %v4459
        %v4461 = vpop.f32.mrf.mxu0
        %4462 = vmatprep.mubr.f32.mxu0 %v4312
        %4463 = vmatmul.mubr.f32.gmra.mxu0 %v4311
        %v4464 = vpop.f32.mrf.mxu0
        %v4465 = vadd.f32 0.0, %v4464
        %v4466 = vpop.f32.mrf.mxu0
        %4467 = vmatprep.mubr.f32.mxu0 %v4315
        %4468 = vmatmul.mubr.f32.gmra.mxu0 %v4314
        %v4469 = vpop.f32.mrf.mxu0
        %v4470 = vadd.f32 0.0, %v4469
        %v4471 = vpop.f32.mrf.mxu0
        %4472 = vmatprep.mubr.f32.mxu0 %v4318
        %4473 = vmatmul.mubr.f32.gmra.mxu0 %v4317
        %v4474 = vpop.f32.mrf.mxu0
        %v4475 = vadd.f32 0.0, %v4474
        %v4476 = vpop.f32.mrf.mxu0
        %4477 = vmatprep.mubr.f32.mxu0 %v4321
        %4478 = vmatmul.mubr.f32.gmra.mxu0 %v4320
        %v4479 = vpop.f32.mrf.mxu0
        %v4480 = vadd.f32 0.0, %v4479
        %v4481 = vpop.f32.mrf.mxu0
        %4482 = vmatprep.mubr.f32.mxu0 %v4324
        %4483 = vmatmul.mubr.f32.gmra.mxu0 %v4323
        %v4484 = vpop.f32.mrf.mxu0
        %v4485 = vadd.f32 0.0, %v4484
        %v4486 = vpop.f32.mrf.mxu0
        %4487 = vmatprep.mubr.f32.mxu0 %v4327
        %4488 = vmatmul.mubr.f32.gmra.mxu0 %v4326
        %v4489 = vpop.f32.mrf.mxu0
        %v4490 = vadd.f32 0.0, %v4489
        %v4491 = vpop.f32.mrf.mxu0
        %4492 = vmatprep.mubr.f32.mxu0 %v4330
        %4493 = vmatmul.mubr.f32.gmra.mxu0 %v4329
        %v4494 = vpop.f32.mrf.mxu0
        %v4495 = vadd.f32 0.0, %v4494
        %v4496 = vpop.f32.mrf.mxu0
        %4497 = vmatprep.mubr.f32.mxu0 %v4333
        %4498 = vmatmul.mubr.f32.gmra.mxu0 %v4332
        %v4499 = vpop.f32.mrf.mxu0
        %v4500 = vadd.f32 0.0, %v4499
        %v4501 = vpop.f32.mrf.mxu0
        %4502 = vmatprep.mubr.f32.mxu0 %v4336
        %4503 = vmatmul.mubr.f32.gmra.mxu0 %v4335
        %v4504 = vpop.f32.mrf.mxu0
        %v4505 = vadd.f32 0.0, %v4504
        %v4506 = vpop.f32.mrf.mxu0
        %4507 = vmatprep.mubr.f32.mxu0 %v4339
        %4508 = vmatmul.mubr.f32.gmra.mxu0 %v4338
        %v4509 = vpop.f32.mrf.mxu0
        %v4510 = vadd.f32 0.0, %v4509
        %v4511 = vpop.f32.mrf.mxu0
        %4512 = vmatprep.mubr.f32.mxu0 %v4342
        %4513 = vmatmul.mubr.f32.gmra.mxu0 %v4341
        %v4514 = vpop.f32.mrf.mxu0
        %v4515 = vadd.f32 0.0, %v4514
        %v4516 = vpop.f32.mrf.mxu0
        %4517 = vmatprep.mubr.f32.mxu0 %v4345
        %4518 = vmatmul.mubr.f32.gmra.mxu0 %v4344
        %v4519 = vpop.f32.mrf.mxu0
        %v4520 = vadd.f32 0.0, %v4519
        %v4521 = vpop.f32.mrf.mxu0
        %4522 = vdwg.mxu0
        %4523 = vxpose.xlu0.b32.start [1/16] %v4445, 128
        %4524 = vxpose.xlu0.b32.cont [2/16] %v4450, 128
        %4525 = vxpose.xlu0.b32.cont [3/16] %v4455, 128
        %4526 = vxpose.xlu0.b32.cont [4/16] %v4460, 128
        %4527 = vxpose.xlu0.b32.cont [5/16] %v4465, 128
        %4528 = vxpose.xlu0.b32.cont [6/16] %v4470, 128
        %4529 = vxpose.xlu0.b32.cont [7/16] %v4475, 128
        %4530 = vxpose.xlu0.b32.cont [8/16] %v4480, 128
        %4531 = vxpose.xlu0.b32.cont [9/16] %v4485, 128
        %4532 = vxpose.xlu0.b32.cont [10/16] %v4490, 128
        %4533 = vxpose.xlu0.b32.cont [11/16] %v4495, 128
        %4534 = vxpose.xlu0.b32.cont [12/16] %v4500, 128
        %4535 = vxpose.xlu0.b32.cont [13/16] %v4505, 128
        %4536 = vxpose.xlu0.b32.cont [14/16] %v4510, 128
        %4537 = vxpose.xlu0.b32.cont [15/16] %v4515, 128
        %4538 = vxpose.xlu0.b32.end [16/16] %v4520, 128
        %v4539 = vpop.trf.xlu0
        %v4540 = vpop.trf.xlu0
        %v4541 = vpop.trf.xlu0
        %v4542 = vpop.trf.xlu0
        %v4543 = vpop.trf.xlu0
        %v4544 = vpop.trf.xlu0
        %v4545 = vpop.trf.xlu0
        %v4546 = vpop.trf.xlu0
        %v4547 = vpop.trf.xlu0
        %v4548 = vpop.trf.xlu0
        %v4549 = vpop.trf.xlu0
        %v4550 = vpop.trf.xlu0
        %v4551 = vpop.trf.xlu0
        %v4552 = vpop.trf.xlu0
        %v4553 = vpop.trf.xlu0
        %v4554 = vpop.trf.xlu0
        %v4555 = vld [vmem:[%s8] sm:$0xff]
        %v4556 = vadd.f32 %v4539, %v486
        %v4557 = vrot.slane %v4556, 4
        %v4558 = vadd.f32 %v4556, %v4557
        %v4559 = vrot.slane %v4558, 2
        %v4560 = vadd.f32 %v4558, %v4559
        %v4561 = vrot.slane %v4560, 1
        %v4562 = vadd.f32 %v4560, %v4561
        %v4563 = vrcp.pop 8.0
        %v4564 = vmul.f32 %v4562, %v4563
        %v4565 = vsub.f32 %v4556, %v4564
        %v4566 = vmul.f32 %v4565, %v4565
        %v4567 = vrot.slane %v4566, 4
        %v4568 = vadd.f32 %v4566, %v4567
        %v4569 = vrot.slane %v4568, 2
        %v4570 = vadd.f32 %v4568, %v4569
        %v4571 = vrot.slane %v4570, 1
        %v4572 = vadd.f32 %v4570, %v4571
        %v4573 = vmul.f32 %v4572, %v4563
        %v4574 = vadd.f32 %v4573, 1e-05
        %v4575 = vrsqrt.pop %v4574
        %v4576 = vmul.f32 %v4565, %v4575
        %4578 = vset.pattern.permute.xlu0 0
        %4579 = vperm.xlu0 %4578, %v4555
        %v4580 = vpop.permute.xlu0 %4579
        %v4582 = vmul.f32 %v4576, %v4580
        %4583 = vset.pattern.permute.xlu0 1
        %4584 = vperm.xlu0 %4583, %v4555
        %v4585 = vpop.permute.xlu0 %4584
        %v4587 = vadd.f32 %v4582, %v4585
        %v4588 = vld [vmem:[%s5] sm:$0xff]
        %v4589 = vld [vmem:[%s5 + $0x8] sm:$0xff]
        %v4590 = vld [vmem:[%s5 + $0x10] sm:$0xff]
        %v4591 = vld [vmem:[%s5 + $0x18] sm:$0xff]
        %v4592 = vld [vmem:[%s6] sm:$0xff]
        %v4593 = vld [vmem:[%s6 + $0x8] sm:$0xff]
        %v4594 = vld [vmem:[%s6 + $0x10] sm:$0xff]
        %v4595 = vld [vmem:[%s6 + $0x18] sm:$0xff]
        %4597 = vset.pattern.permute.xlu0 0
        %4598 = vperm.xlu0 %4597, %v4592
        %v4599 = vpop.permute.xlu0 %4598
        %4602 = vset.pattern.permute.xlu0 0
        %4603 = vperm.xlu0 %4602, %v4593
        %v4604 = vpop.permute.xlu0 %4603
        %4607 = vset.pattern.permute.xlu0 0
        %4608 = vperm.xlu0 %4607, %v4594
        %v4609 = vpop.permute.xlu0 %4608
        %4612 = vset.pattern.permute.xlu0 0
        %4613 = vperm.xlu0 %4612, %v4595
        %v4614 = vpop.permute.xlu0 %4613
        %v4617 = vsel %vm529, %v4588, 0
        %v4620 = vsel %vm529, %v4589, 0
        %v4623 = vsel %vm529, %v4590, 0
        %v4626 = vsel %vm529, %v4591, 0
        %4628 = vmatprep.subr.mxu0 0.0
        %4629 = vmatpush1.msra.mxu0 0.0
        %4630 = vmatprep.subr.mxu0 0.0
        %4631 = vmatpush1.msra.mxu0 0.0
        %4632 = vmatprep.subr.mxu0 0.0
        %4633 = vmatpush1.msra.mxu0 0.0
        %4634 = vmatprep.subr.mxu0 0.0
        %4635 = vmatpush1.msra.mxu0 0.0
        %4636 = vmatprep.subr.mxu0 0.0
        %4637 = vmatpush1.msra.mxu0 0.0
        %4638 = vmatprep.subr.mxu0 0.0
        %4639 = vmatpush1.msra.mxu0 0.0
        %4640 = vmatprep.subr.mxu0 0.0
        %4641 = vmatpush1.msra.mxu0 0.0
        %4642 = vmatprep.subr.mxu0 0.0
        %4643 = vmatpush1.msra.mxu0 0.0
        %4644 = vmatprep.subr.mxu0 0.0
        %4645 = vmatpush1.msra.mxu0 0.0
        %4646 = vmatprep.subr.mxu0 0.0
        %4647 = vmatpush1.msra.mxu0 0.0
        %4648 = vmatprep.subr.mxu0 0.0
        %4649 = vmatpush1.msra.mxu0 0.0
        %4650 = vmatprep.subr.mxu0 0.0
        %4651 = vmatpush1.msra.mxu0 0.0
        %4652 = vmatprep.subr.mxu0 0.0
        %4653 = vmatpush1.msra.mxu0 0.0
        %4654 = vmatprep.subr.mxu0 0.0
        %4655 = vmatpush1.msra.mxu0 0.0
        %4656 = vmatprep.subr.mxu0 0.0
        %4657 = vmatpush1.msra.mxu0 0.0
        %4658 = vmatprep.subr.mxu0 0.0
        %4659 = vmatpush1.msra.mxu0 %v4587
        %4660 = vmatprep.subr.mxu0 0.0
        %4661 = vmatpush2.msra.mxu0 0.0
        %4662 = vmatprep.subr.mxu0 0.0
        %4663 = vmatpush2.msra.mxu0 0.0
        %4664 = vmatprep.subr.mxu0 0.0
        %4665 = vmatpush2.msra.mxu0 0.0
        %4666 = vmatprep.subr.mxu0 0.0
        %4667 = vmatpush2.msra.mxu0 0.0
        %4668 = vmatprep.subr.mxu0 0.0
        %4669 = vmatpush2.msra.mxu0 0.0
        %4670 = vmatprep.subr.mxu0 0.0
        %4671 = vmatpush2.msra.mxu0 0.0
        %4672 = vmatprep.subr.mxu0 0.0
        %4673 = vmatpush2.msra.mxu0 0.0
        %4674 = vmatprep.subr.mxu0 0.0
        %4675 = vmatpush2.msra.mxu0 0.0
        %4676 = vmatprep.subr.mxu0 0.0
        %4677 = vmatpush2.msra.mxu0 0.0
        %4678 = vmatprep.subr.mxu0 0.0
        %4679 = vmatpush2.msra.mxu0 0.0
        %4680 = vmatprep.subr.mxu0 0.0
        %4681 = vmatpush2.msra.mxu0 0.0
        %4682 = vmatprep.subr.mxu0 0.0
        %4683 = vmatpush2.msra.mxu0 0.0
        %4684 = vmatprep.subr.mxu0 0.0
        %4685 = vmatpush2.msra.mxu0 0.0
        %4686 = vmatprep.subr.mxu0 0.0
        %4687 = vmatpush2.msra.mxu0 0.0
        %4688 = vmatprep.subr.mxu0 0.0
        %4689 = vmatpush2.msra.mxu0 0.0
        %4690 = vmatprep.subr.mxu0 0.0
        %4691 = vmatpush2.msra.mxu0 0.0
        %4692 = vmatprep.mubr.f32.mxu0 0.0
        %4693 = vmatmul.mubr.f32.gmra.mxu0 %v4617
        %v4694 = vpop.f32.mrf.mxu0
        %v4695 = vadd.f32 %v4599, %v4694
        %v4696 = vpop.f32.mrf.mxu0
        %4697 = vmatprep.mubr.f32.mxu0 0.0
        %4698 = vmatmul.mubr.f32.gmra.mxu0 %v4620
        %v4699 = vpop.f32.mrf.mxu0
        %v4700 = vadd.f32 %v4604, %v4699
        %v4701 = vpop.f32.mrf.mxu0
        %4702 = vmatprep.mubr.f32.mxu0 0.0
        %4703 = vmatmul.mubr.f32.gmra.mxu0 %v4623
        %v4704 = vpop.f32.mrf.mxu0
        %v4705 = vadd.f32 %v4609, %v4704
        %v4706 = vpop.f32.mrf.mxu0
        %4707 = vmatprep.mubr.f32.mxu0 0.0
        %4708 = vmatmul.mubr.f32.gmra.mxu0 %v4626
        %v4709 = vpop.f32.mrf.mxu0
        %v4710 = vadd.f32 %v4614, %v4709
        %v4711 = vpop.f32.mrf.mxu0
        %4712 = vdwg.mxu0
        %v4713 = vmax.f32 %v4695, 0.0
        %v4714 = vmax.f32 %v4700, 0.0
        %v4715 = vmax.f32 %v4705, 0.0
        %v4716 = vmax.f32 %v4710, 0.0
        %v4717 = vld [vmem:[%s7] sm:$0xff]
        %4718 = vset.pattern.permute.xlu0 4
        %4719 = vperm.xlu0 %4718, %v4555
        %v4720 = vpop.permute.xlu0 %4719
        %vm4722 = vcmask 261120
        %v4724 = vsel %vm4722, %v4717, 0
        %4726 = vmatprep.subr.mxu0 0.0
        %4727 = vmatpush1.msra.mxu0 0.0
        %4728 = vmatprep.subr.mxu0 0.0
        %4729 = vmatpush1.msra.mxu0 0.0
        %4730 = vmatprep.subr.mxu0 0.0
        %4731 = vmatpush1.msra.mxu0 0.0
        %4732 = vmatprep.subr.mxu0 0.0
        %4733 = vmatpush1.msra.mxu0 0.0
        %4734 = vmatprep.subr.mxu0 0.0
        %4735 = vmatpush1.msra.mxu0 0.0
        %4736 = vmatprep.subr.mxu0 0.0
        %4737 = vmatpush1.msra.mxu0 0.0
        %4738 = vmatprep.subr.mxu0 0.0
        %4739 = vmatpush1.msra.mxu0 0.0
        %4740 = vmatprep.subr.mxu0 0.0
        %4741 = vmatpush1.msra.mxu0 0.0
        %4742 = vmatprep.subr.mxu0 0.0
        %4743 = vmatpush1.msra.mxu0 0.0
        %4744 = vmatprep.subr.mxu0 0.0
        %4745 = vmatpush1.msra.mxu0 0.0
        %4746 = vmatprep.subr.mxu0 0.0
        %4747 = vmatpush1.msra.mxu0 0.0
        %4748 = vmatprep.subr.mxu0 0.0
        %4749 = vmatpush1.msra.mxu0 0.0
        %4750 = vmatprep.subr.mxu0 0.0
        %4751 = vmatpush1.msra.mxu0 %v4716
        %4752 = vmatprep.subr.mxu0 0.0
        %4753 = vmatpush1.msra.mxu0 %v4715
        %4754 = vmatprep.subr.mxu0 0.0
        %4755 = vmatpush1.msra.mxu0 %v4714
        %4756 = vmatprep.subr.mxu0 0.0
        %4757 = vmatpush1.msra.mxu0 %v4713
        %4758 = vmatprep.subr.mxu0 0.0
        %4759 = vmatpush2.msra.mxu0 0.0
        %4760 = vmatprep.subr.mxu0 0.0
        %4761 = vmatpush2.msra.mxu0 0.0
        %4762 = vmatprep.subr.mxu0 0.0
        %4763 = vmatpush2.msra.mxu0 0.0
        %4764 = vmatprep.subr.mxu0 0.0
        %4765 = vmatpush2.msra.mxu0 0.0
        %4766 = vmatprep.subr.mxu0 0.0
        %4767 = vmatpush2.msra.mxu0 0.0
        %4768 = vmatprep.subr.mxu0 0.0
        %4769 = vmatpush2.msra.mxu0 0.0
        %4770 = vmatprep.subr.mxu0 0.0
        %4771 = vmatpush2.msra.mxu0 0.0
        %4772 = vmatprep.subr.mxu0 0.0
        %4773 = vmatpush2.msra.mxu0 0.0
        %4774 = vmatprep.subr.mxu0 0.0
        %4775 = vmatpush2.msra.mxu0 0.0
        %4776 = vmatprep.subr.mxu0 0.0
        %4777 = vmatpush2.msra.mxu0 0.0
        %4778 = vmatprep.subr.mxu0 0.0
        %4779 = vmatpush2.msra.mxu0 0.0
        %4780 = vmatprep.subr.mxu0 0.0
        %4781 = vmatpush2.msra.mxu0 0.0
        %4782 = vmatprep.subr.mxu0 0.0
        %4783 = vmatpush2.msra.mxu0 0.0
        %4784 = vmatprep.subr.mxu0 0.0
        %4785 = vmatpush2.msra.mxu0 0.0
        %4786 = vmatprep.subr.mxu0 0.0
        %4787 = vmatpush2.msra.mxu0 0.0
        %4788 = vmatprep.subr.mxu0 0.0
        %4789 = vmatpush2.msra.mxu0 0.0
        %4790 = vmatprep.mubr.f32.mxu0 0.0
        %4791 = vmatmul.mubr.f32.gmra.mxu0 %v4724
        %v4792 = vpop.f32.mrf.mxu0
        %v4793 = vadd.f32 %v4720, %v4792
        %v4794 = vpop.f32.mrf.mxu0
        %4795 = vdwg.mxu0
        %v4796 = vadd.f32 %v4793, %v4587
        %v4797 = vrot.slane %v4796, 4
        %v4798 = vadd.f32 %v4796, %v4797
        %v4799 = vrot.slane %v4798, 2
        %v4800 = vadd.f32 %v4798, %v4799
        %v4801 = vrot.slane %v4800, 1
        %v4802 = vadd.f32 %v4800, %v4801
        %v4803 = vmul.f32 %v4802, %v4563
        %v4804 = vsub.f32 %v4796, %v4803
        %v4805 = vmul.f32 %v4804, %v4804
        %v4806 = vrot.slane %v4805, 4
        %v4807 = vadd.f32 %v4805, %v4806
        %v4808 = vrot.slane %v4807, 2
        %v4809 = vadd.f32 %v4807, %v4808
        %v4810 = vrot.slane %v4809, 1
        %v4811 = vadd.f32 %v4809, %v4810
        %v4812 = vmul.f32 %v4811, %v4563
        %v4813 = vadd.f32 %v4812, 1e-05
        %v4814 = vrsqrt.pop %v4813
        %v4815 = vmul.f32 %v4804, %v4814
        %4816 = vset.pattern.permute.xlu0 2
        %4817 = vperm.xlu0 %4816, %v4555
        %v4818 = vpop.permute.xlu0 %4817
        %v4820 = vmul.f32 %v4815, %v4818
        %4821 = vset.pattern.permute.xlu0 3
        %4822 = vperm.xlu0 %4821, %v4555
        %v4823 = vpop.permute.xlu0 %4822
        %v4825 = vadd.f32 %v4820, %v4823
        %4826 = vst [vmem:[%s464] sm:$0xff] %v4825
        %s4827 = sand.u32 %s297, 1
        %s4828 = scalar_lea.sflag [#allocation4], %s4827
        %s4829 = sand.u32 %s297, 1
        %s4830 = smul.addr %s4829, 8
        %s4831 = scalar_lea.vmem [#allocation6], %s4830
        %s4832 = sand.u32 %s325, 1
        %s4833 = scalar_lea.sflag [#allocation8], %s4832
        %s4834 = sand.u32 %s325, 1
        %s4835 = smul.addr %s4834, 256
        %s4836 = scalar_lea.vmem [#allocation7], %s4835
        // Predicated region
        $region69: #{tpu_custom_call.1} parent=63 // pred_check
          %p4837 = pneg %p307
        $region70: #{tpu_custom_call.1} parent=63 // pred_check_branch
          %4839 = sbr.rel (%p4837) target = $region72
        $region71: #{tpu_custom_call.1} parent=63 // pred_region
          %s4841 = ssub.s32 128, 128
          %4842 = vsyncadd %s4828, %s4841
          %s4843 = smul.addr %s36, 2
          %s4844 = sadd.s32 %s37, %s4843
          %s4845 = smul.addr %s4844, 128
          %s4846 = scalar_lea.hbm %s11, %s4845
          %s4848 = sshll.u32 %s4831, 4
          %s4849 = int_to_ptr.vmem [resolvable:$true] %s4848
          %4851 = dma.vmem_to_hbm [thread:$0]  %s4849, 128, %s4846, %s4828
        $region72: #{tpu_custom_call.1} parent=63 // pred_fallthru
          _
        // Predicated region
        $region73: #{tpu_custom_call.1} parent=63 // pred_check
          %p4852 = pneg %p335
        $region74: #{tpu_custom_call.1} parent=63 // pred_check_branch
          %4854 = sbr.rel (%p4852) target = $region76
        $region75: #{tpu_custom_call.1} parent=63 // pred_region
          %s4855 = smul.u32 16, %s37
          %s4857 = ssub.s32 4096, 4096
          %4858 = vsyncadd %s4833, %s4857
          %s4859 = smul.addr %s4855, 2
          %s4860 = smul.addr %s36, 64
          %s4861 = sadd.s32 %s4859, %s4860
          %s4862 = smul.addr %s4861, 128
          %s4863 = scalar_lea.hbm %s12, %s4862
          %s4864 = sshll.u32 %s4836, 4
          %s4865 = int_to_ptr.vmem [resolvable:$true] %s4864
          %4870 = dma.vmem_to_hbm [thread:$0]  %s4865, 4096, %s4863, %s4833, 256, 256, 16
        $region76: #{tpu_custom_call.1} parent=63 // pred_fallthru
          _
      $region64: #{tpu_custom_call.1} parent=5 // pred_fallthru
        _
      %p4871 = scmp.le.s32.totalorder 2, %s27
      // Predicated region
      $region77: #{tpu_custom_call.1} parent=5 // pred_check
        %p4872 = pneg %p4871
      $region78: #{tpu_custom_call.1} parent=5 // pred_check_branch
        %4874 = sbr.rel (%p4872) target = $region80
      $region79: #{tpu_custom_call.1} parent=5 // pred_region
        %s4875 = ssub.s32 %s27, 2
        // Predicated region
        $region81: #{tpu_custom_call.1} parent=79 // pred_check
          %p4876 = pneg %p313
        $region82: #{tpu_custom_call.1} parent=79 // pred_check_branch
          %4878 = sbr.rel (%p4876) target = $region84
        $region83: #{tpu_custom_call.1} parent=79 // pred_region
          %s4879 = sand.u32 %s298, 1
          %s4880 = scalar_lea.sflag [#allocation4], %s4879
          %s4881 = sand.u32 %s298, 1
          %s4882 = smul.addr %s4881, 8
          %s4883 = scalar_lea.vmem [#allocation6], %s4882
          %4884 = dma.done %s4880, 128
        $region84: #{tpu_custom_call.1} parent=79 // pred_fallthru
          _
        // Predicated region
        $region85: #{tpu_custom_call.1} parent=79 // pred_check
          %p4885 = pneg %p341
        $region86: #{tpu_custom_call.1} parent=79 // pred_check_branch
          %4887 = sbr.rel (%p4885) target = $region88
        $region87: #{tpu_custom_call.1} parent=79 // pred_region
          %s4888 = sand.u32 %s326, 1
          %s4889 = scalar_lea.sflag [#allocation8], %s4888
          %s4890 = sand.u32 %s326, 1
          %s4891 = smul.addr %s4890, 256
          %s4892 = scalar_lea.vmem [#allocation7], %s4891
          %4893 = dma.done %s4889, 4096
        $region88: #{tpu_custom_call.1} parent=79 // pred_fallthru
          _
      $region80: #{tpu_custom_call.1} parent=5 // pred_fallthru
        _
    $region6: #{tpu_custom_call.1} parent=1 // loop_footer
      %s31 = sadd.s32 1, %s27
    $region7: #{tpu_custom_call.1} parent=1 // loop_footer_branch
      %26 = sbr.rel target = $region3
    $region8: #{tpu_custom_call.1} parent=1 // loop_exit
      _
    %4894 = vsyncpa [#allocation4], 1
    %s4895 = scalar_lea.sflag [#allocation4], 1
    %4896 = vsyncpa %s4895, 1
    %4897 = vsyncpa [#allocation8], 1
    %s4898 = scalar_lea.sflag [#allocation8], 1
    %4899 = vsyncpa %s4898, 1
    %4900 = vsyncpa [#allocation5], 1
    %s4901 = scalar_lea.sflag [#allocation5], 1
    %4902 = vsyncpa %s4901, 1

</llo_original>
